<compile_context>
chip_gen: v7x
topology: tpu7x:2x2x1
jax: 0.10.0
libtpu: 0.0.40
codegen_flags: <defaults>
</compile_context>

<pallas_src>
import functools

import jax
import jax.numpy as jnp
from jax import lax
from jax.experimental import pallas as pl
from jax.experimental.pallas import tpu as pltpu

INPUT_SIZE = 1
OUT_SIZE = 1
HIDDEN_SIZE = 64

_LANES = 128


def _round_up(x, m):
    return ((x + m - 1) // m) * m


def _lstm_kernel(gx_ref, whh_ref, wout_ref, bout_ref, out_ref, h_ref, c_ref, *,
                 seq_len, chunk_len, need_mask, unroll):
    """One (batch-tile, time-chunk) grid step of the LSTM recurrence.

    Batch on lanes, gate rows (PyTorch order i,f,g,o) on sublanes.
      gx_ref  : (chunk_len, 4H, B_BLK) f32  pre-scaled input projection + fused bias
      whh_ref : (4H, H) f32                 pre-scaled recurrent weights
      wout_ref: (H, 1)  f32                 output projection column
      bout_ref: (1, 1)  f32
      out_ref : (1, B_BLK) f32              Linear(h_T) == output[:, -1, :] (transposed)
      h_ref, c_ref : (H, B_BLK) f32         state carried across time chunks
    """
    t_blk = pl.program_id(1)

    @pl.when(t_blk == 0)
    def _():
        h_ref[...] = jnp.zeros_like(h_ref)
        c_ref[...] = jnp.zeros_like(c_ref)

    H = whh_ref.shape[1]
    whh = whh_ref[...]  # (4H, H), resident across the chunk

    def step(t, carry):
        h, c = carry
        # gates rows [i; f; g; o]; i/f/o rows of gx & whh were pre-scaled by 0.5 so a
        # single full-width tanh gives sigmoid via 0.5*tanh(0.5x)+0.5.
        gates = gx_ref[t] + jnp.dot(whh, h, preferred_element_type=jnp.float32)  # (4H,B)
        tg = jnp.tanh(gates)                       # one EUP pass over the whole tensor
        i_g = 0.5 * tg[0 * H:1 * H] + 0.5
        f_g = 0.5 * tg[1 * H:2 * H] + 0.5
        g_g = tg[2 * H:3 * H]
        o_g = 0.5 * tg[3 * H:4 * H] + 0.5
        c_new = f_g * c + i_g * g_g
        h_new = o_g * jnp.tanh(c_new)
        if need_mask:  # only traced when T % chunk_len != 0 (padded tail steps)
            valid = (t_blk * chunk_len + t) < seq_len
            h_new = jnp.where(valid, h_new, h)
            c_new = jnp.where(valid, c_new, c)
        return h_new, c_new

    h, c = lax.fori_loop(0, chunk_len, step, (h_ref[...], c_ref[...]), unroll=unroll)
    h_ref[...] = h
    c_ref[...] = c

    @pl.when(t_blk == pl.num_programs(1) - 1)
    def _():
        # Linear(H -> 1) as VPU multiply + sublane reduction; lane-dense (1, B_BLK) store.
        out = jnp.sum(h_ref[...] * wout_ref[...], axis=0, keepdims=True) + bout_ref[...]
        out_ref[...] = out.astype(out_ref.dtype)


def make_params(key, input_size=INPUT_SIZE, hidden=HIDDEN_SIZE, out=OUT_SIZE):
    """Deterministic parameter init (shapes match nn.LSTM / nn.Linear)."""
    ks = jax.random.split(key, 6)
    bound = 1.0 / jnp.sqrt(hidden)
    w_ih = jax.random.uniform(ks[0], (4 * hidden, input_size), jnp.float32, -bound, bound)
    w_hh = jax.random.uniform(ks[1], (4 * hidden, hidden), jnp.float32, -bound, bound)
    b_ih = jax.random.uniform(ks[2], (4 * hidden,), jnp.float32, -bound, bound)
    b_hh = jax.random.uniform(ks[3], (4 * hidden,), jnp.float32, -bound, bound)
    w_out = jax.random.uniform(ks[4], (out, hidden), jnp.float32, -bound, bound)
    b_out = jax.random.uniform(ks[5], (out,), jnp.float32, -bound, bound)
    return dict(w_ih=w_ih, w_hh=w_hh, b_ih=b_ih, b_hh=b_hh, w_out=w_out, b_out=b_out)


def lstm_forward(x_bct, params, *, t_chunk=32):
    """x_bct: (B, INPUT_SIZE, T) like the PyTorch module's input. Returns (B, OUT_SIZE)."""
    B, IN, T = x_bct.shape
    assert IN == 1, "module spec fixes INPUT_SIZE=1"
    H = params["w_hh"].shape[1]
    G = 4 * H
    OUT = params["w_out"].shape[0]
    assert OUT == 1, "module spec fixes OUT_SIZE=1"

    # ---- batch tiling: batch is the LANE axis -> pad to a multiple of 128 lanes ----
    B_pad = _round_up(B, _LANES)
    # >=2 parallel tiles when the batch is large enough (keeps both v7x TensorCores busy);
    # a single bigger tile otherwise (grid steps are a serial loop on v5e/v6e).
    B_BLK = 256 if (B_pad >= 512 and B_pad % 256 == 0) else 128
    n_btiles = B_pad // B_BLK

    # ---- time chunking: VMEM bounded & pipelined regardless of T ----
    T_CHUNK = min(t_chunk, T)
    n_chunks = pl.cdiv(T, T_CHUNK)
    T_pad = n_chunks * T_CHUNK
    need_mask = T_pad != T
    unroll = max(1, min(8, T_CHUNK))

    # ---- wrapper-side prep (plain XLA, runs once) ----
    # (B, 1, T) -> (T, B_pad) f32
    x_tb = jnp.transpose(x_bct[:, 0, :], (1, 0)).astype(jnp.float32)
    if B_pad != B:
        x_tb = jnp.pad(x_tb, ((0, 0), (0, B_pad - B)))

    # per-gate-row scale: 0.5 for i/f/o (sigmoid via tanh), 1.0 for g (plain tanh).
    gate_scale = jnp.concatenate(
        [jnp.full((H,), 0.5), jnp.full((H,), 0.5), jnp.ones((H,)), jnp.full((H,), 0.5)]
    ).astype(jnp.float32)                                                      # (4H,)

    wih_col = params["w_ih"].reshape(G).astype(jnp.float32)                    # (4H,)
    bias = (params["b_ih"] + params["b_hh"]).astype(jnp.float32)               # (4H,)
    # hoisted input projection + fused bias (exact for IN==1), pre-scaled per gate row
    gx = (x_tb[:, None, :] * wih_col[None, :, None] + bias[None, :, None]) \
        * gate_scale[None, :, None]                                            # (T, 4H, B_pad)
    if T_pad != T:
        gx = jnp.pad(gx, ((0, T_pad - T), (0, 0), (0, 0)))

    whh_scaled = params["w_hh"].astype(jnp.float32) * gate_scale[:, None]      # (4H, H)
    wout_col = params["w_out"].astype(jnp.float32).reshape(OUT, H).T           # (H, 1)
    bout = params["b_out"].astype(jnp.float32).reshape(1, OUT)                 # (1, 1)

    kernel = functools.partial(
        _lstm_kernel, seq_len=T, chunk_len=T_CHUNK, need_mask=need_mask, unroll=unroll
    )

    cost = pl.CostEstimate(
        flops=int(2 * T * B_pad * G * H + 12 * T * B_pad * G),
        transcendentals=int(T * B_pad * (G + H)),
        bytes_accessed=int(gx.size * 4 + whh_scaled.size * 4 + B_pad * 4),
    )

    out_t = pl.pallas_call(
        kernel,
        out_shape=jax.ShapeDtypeStruct((1, B_pad), jnp.float32),
        grid=(n_btiles, n_chunks),
        in_specs=[
            pl.BlockSpec((T_CHUNK, G, B_BLK), lambda b, t: (t, 0, b)),  # gx, pipelined in T
            pl.BlockSpec((G, H), lambda b, t: (0, 0)),                  # W_hh (pre-scaled)
            pl.BlockSpec((H, OUT), lambda b, t: (0, 0)),                # w_out column
            pl.BlockSpec((1, OUT), lambda b, t: (0, 0)),                # b_out
        ],
        out_specs=pl.BlockSpec((1, B_BLK), lambda b, t: (0, b)),
        scratch_shapes=[
            pltpu.VMEM((H, B_BLK), jnp.float32),   # h, carried across time chunks
            pltpu.VMEM((H, B_BLK), jnp.float32),   # c
        ],
        compiler_params=pltpu.CompilerParams(
            dimension_semantics=("parallel", "arbitrary"),
            vmem_limit_bytes=32 * 1024 * 1024,
        ),
        cost_estimate=cost,
    )(gx, whh_scaled, wout_col, bout)

    # padded batch lanes ran garbage through the recurrence -> slice them off here.
    return jnp.transpose(out_t[:, :B])   # (B, OUT)


def lstm_forward_ref(x_bct, params):
    """Pure-JAX f32 reference matching PyTorch LSTM + Linear, task='duration'."""
    H = params["w_hh"].shape[1]
    x = jnp.transpose(x_bct[:, 0, :], (1, 0)).astype(jnp.float32)  # (T, B)
    T, B = x.shape
    w_ih = params["w_ih"].astype(jnp.float32)                      # (4H, 1)
    w_hh = params["w_hh"].astype(jnp.float32)                      # (4H, H)
    b = (params["b_ih"] + params["b_hh"]).astype(jnp.float32)      # (4H,)

    def step(carry, x_t):
        h, c = carry                                               # (B, H)
        gates = (x_t[:, None] * w_ih[:, 0][None, :]
                 + jnp.dot(h, w_hh.T, precision=jax.lax.Precision.HIGHEST)
                 + b[None, :])                                     # (B, 4H)
        i = jax.nn.sigmoid(gates[:, 0 * H:1 * H])
        f = jax.nn.sigmoid(gates[:, 1 * H:2 * H])
        g = jnp.tanh(gates[:, 2 * H:3 * H])
        o = jax.nn.sigmoid(gates[:, 3 * H:4 * H])
        c = f * c + i * g
        h = o * jnp.tanh(c)
        return (h, c), None

    (h_fin, _), _ = lax.scan(step, (jnp.zeros((B, H)), jnp.zeros((B, H))), x)
    return (jnp.dot(h_fin, params["w_out"].T.astype(jnp.float32),
                    precision=jax.lax.Precision.HIGHEST)
            + params["b_out"].astype(jnp.float32))


if __name__ == "__main__":
    key = jax.random.PRNGKey(0)
    k_param, k_x = jax.random.split(key)

    B, T = 2, 8
    params = make_params(k_param)
    x = jax.random.normal(k_x, (B, INPUT_SIZE, T), jnp.float32)   # (B, C=1, T)

    out = jax.block_until_ready(lstm_forward(x, params))
    assert out.shape == (B, OUT_SIZE), out.shape

    ref = lstm_forward_ref(x, params)
    assert jnp.allclose(out, ref, atol=2e-3, rtol=2e-3), (out, ref)

    print("KERNEL_OK")
</pallas_src>

<mosaic_0001>
module attributes {stable_mosaic.version = 11 : i64} {
  func.func @_lstm_kernel(%arg0: i32, %arg1: i32, %arg2: memref<8x256x128xf32, #tpu.memory_space<vmem>>, %arg3: memref<256x64xf32, #tpu.memory_space<vmem>>, %arg4: memref<64x1xf32, #tpu.memory_space<vmem>>, %arg5: memref<1x1xf32, #tpu.memory_space<vmem>>, %arg6: memref<1x128xf32, #tpu.memory_space<vmem>>, %arg7: memref<64x128xf32, #tpu.memory_space<vmem>>, %arg8: memref<64x128xf32, #tpu.memory_space<vmem>>) attributes {dimension_semantics = [#tpu.dimension_semantics<parallel>, #tpu.dimension_semantics<arbitrary>], iteration_bounds = array<i64: 1, 1>, scalar_prefetch = 0 : i64, scratch_operands = 2 : i64, tpu.core_type = #tpu.core_type<tc>, window_params = [{transform_indices = @transform_0, window_bounds = array<i64: 8, 256, 128>}, {pipeline_mode = #tpu.pipeline_mode<synchronous>, transform_indices = @transform_1, window_bounds = array<i64: 256, 64>}, {pipeline_mode = #tpu.pipeline_mode<synchronous>, transform_indices = @transform_2, window_bounds = array<i64: 64, 1>}, {pipeline_mode = #tpu.pipeline_mode<synchronous>, transform_indices = @transform_3, window_bounds = array<i64: 1, 1>}, {transform_indices = @transform_4, window_bounds = array<i64: 1, 128>}]} {
    %c0_i32 = arith.constant 0 : i32
    %0 = arith.cmpi eq, %arg1, %c0_i32 : i32
    %1 = arith.extui %0 : i1 to i32
    %c0_i32_0 = arith.constant 0 : i32
    %2 = arith.cmpi ne, %1, %c0_i32_0 : i32
    scf.if %2 {
      %cst_84 = arith.constant 0.000000e+00 : f32
      %227 = vector.broadcast %cst_84 : f32 to vector<64x128xf32>
      %c0_85 = arith.constant 0 : index
      %c0_86 = arith.constant 0 : index
      %228 = vector.load %arg7[%c0_85, %c0_86] : memref<64x128xf32, #tpu.memory_space<vmem>>, vector<64x128xf32>
      tpu.vector_store %arg7[%c0_85, %c0_86], %227 {strides = array<i32>} : memref<64x128xf32, #tpu.memory_space<vmem>>, vector<64x128xf32>,
      %cst_87 = arith.constant 0.000000e+00 : f32
      %229 = vector.broadcast %cst_87 : f32 to vector<64x128xf32>
      %c0_88 = arith.constant 0 : index
      %c0_89 = arith.constant 0 : index
      %230 = vector.load %arg8[%c0_88, %c0_89] : memref<64x128xf32, #tpu.memory_space<vmem>>, vector<64x128xf32>
      tpu.vector_store %arg8[%c0_88, %c0_89], %229 {strides = array<i32>} : memref<64x128xf32, #tpu.memory_space<vmem>>, vector<64x128xf32>,
    } else {
    }
    %c0 = arith.constant 0 : index
    %c0_1 = arith.constant 0 : index
    %3 = vector.load %arg3[%c0, %c0_1] : memref<256x64xf32, #tpu.memory_space<vmem>>, vector<256x64xf32>
    %c0_2 = arith.constant 0 : index
    %c0_3 = arith.constant 0 : index
    %4 = vector.load %arg7[%c0_2, %c0_3] : memref<64x128xf32, #tpu.memory_space<vmem>>, vector<64x128xf32>
    %c0_4 = arith.constant 0 : index
    %c0_5 = arith.constant 0 : index
    %5 = vector.load %arg8[%c0_4, %c0_5] : memref<64x128xf32, #tpu.memory_space<vmem>>, vector<64x128xf32>
    %c0_i32_6 = arith.constant 0 : i32
    %6 = arith.index_cast %c0_i32_6 : i32 to index
    %c0_7 = arith.constant 0 : index
    %c0_8 = arith.constant 0 : index
    %7 = vector.load %arg2[%6, %c0_7, %c0_8] : memref<8x256x128xf32, #tpu.memory_space<vmem>>, vector<1x256x128xf32>
    %8 = vector.shape_cast %7 : vector<1x256x128xf32> to vector<256x128xf32>
    %cst = arith.constant dense<0.000000e+00> : vector<256x128xf32>
    %9 = tpu.matmul %3, %4, %cst {dimension_numbers = #tpu.dot_dimension_numbers<[1], [0], [0], [1], [0, 0, 1, 1], [], []>} : vector<256x64xf32>, vector<64x128xf32>, vector<256x128xf32> -> vector<256x128xf32>
    %10 = arith.addf %8, %9 : vector<256x128xf32>
    %11 = math.tanh %10 : vector<256x128xf32>
    %12 = vector.extract_strided_slice %11 {offsets = [0, 0], sizes = [64, 128], strides = [1, 1]} : vector<256x128xf32> to vector<64x128xf32>
    %cst_9 = arith.constant 5.000000e-01 : f32
    %13 = vector.broadcast %cst_9 : f32 to vector<64x128xf32>
    %14 = arith.mulf %13, %12 : vector<64x128xf32>
    %cst_10 = arith.constant 5.000000e-01 : f32
    %15 = vector.broadcast %cst_10 : f32 to vector<64x128xf32>
    %16 = arith.addf %14, %15 : vector<64x128xf32>
    %17 = vector.extract_strided_slice %11 {offsets = [64, 0], sizes = [64, 128], strides = [1, 1]} : vector<256x128xf32> to vector<64x128xf32>
    %cst_11 = arith.constant 5.000000e-01 : f32
    %18 = vector.broadcast %cst_11 : f32 to vector<64x128xf32>
    %19 = arith.mulf %18, %17 : vector<64x128xf32>
    %cst_12 = arith.constant 5.000000e-01 : f32
    %20 = vector.broadcast %cst_12 : f32 to vector<64x128xf32>
    %21 = arith.addf %19, %20 : vector<64x128xf32>
    %22 = vector.extract_strided_slice %11 {offsets = [128, 0], sizes = [64, 128], strides = [1, 1]} : vector<256x128xf32> to vector<64x128xf32>
    %23 = vector.extract_strided_slice %11 {offsets = [192, 0], sizes = [64, 128], strides = [1, 1]} : vector<256x128xf32> to vector<64x128xf32>
    %cst_13 = arith.constant 5.000000e-01 : f32
    %24 = vector.broadcast %cst_13 : f32 to vector<64x128xf32>
    %25 = arith.mulf %24, %23 : vector<64x128xf32>
    %cst_14 = arith.constant 5.000000e-01 : f32
    %26 = vector.broadcast %cst_14 : f32 to vector<64x128xf32>
    %27 = arith.addf %25, %26 : vector<64x128xf32>
    %28 = arith.mulf %21, %5 : vector<64x128xf32>
    %29 = arith.mulf %16, %22 : vector<64x128xf32>
    %30 = arith.addf %28, %29 : vector<64x128xf32>
    %31 = math.tanh %30 : vector<64x128xf32>
    %32 = arith.mulf %27, %31 : vector<64x128xf32>
    %c1_i32 = arith.constant 1 : i32
    %33 = arith.index_cast %c1_i32 : i32 to index
    %c0_15 = arith.constant 0 : index
    %c0_16 = arith.constant 0 : index
    %34 = vector.load %arg2[%33, %c0_15, %c0_16] : memref<8x256x128xf32, #tpu.memory_space<vmem>>, vector<1x256x128xf32>
    %35 = vector.shape_cast %34 : vector<1x256x128xf32> to vector<256x128xf32>
    %cst_17 = arith.constant dense<0.000000e+00> : vector<256x128xf32>
    %36 = tpu.matmul %3, %32, %cst_17 {dimension_numbers = #tpu.dot_dimension_numbers<[1], [0], [0], [1], [0, 0, 1, 1], [], []>} : vector<256x64xf32>, vector<64x128xf32>, vector<256x128xf32> -> vector<256x128xf32>
    %37 = arith.addf %35, %36 : vector<256x128xf32>
    %38 = math.tanh %37 : vector<256x128xf32>
    %39 = vector.extract_strided_slice %38 {offsets = [0, 0], sizes = [64, 128], strides = [1, 1]} : vector<256x128xf32> to vector<64x128xf32>
    %cst_18 = arith.constant 5.000000e-01 : f32
    %40 = vector.broadcast %cst_18 : f32 to vector<64x128xf32>
    %41 = arith.mulf %40, %39 : vector<64x128xf32>
    %cst_19 = arith.constant 5.000000e-01 : f32
    %42 = vector.broadcast %cst_19 : f32 to vector<64x128xf32>
    %43 = arith.addf %41, %42 : vector<64x128xf32>
    %44 = vector.extract_strided_slice %38 {offsets = [64, 0], sizes = [64, 128], strides = [1, 1]} : vector<256x128xf32> to vector<64x128xf32>
    %cst_20 = arith.constant 5.000000e-01 : f32
    %45 = vector.broadcast %cst_20 : f32 to vector<64x128xf32>
    %46 = arith.mulf %45, %44 : vector<64x128xf32>
    %cst_21 = arith.constant 5.000000e-01 : f32
    %47 = vector.broadcast %cst_21 : f32 to vector<64x128xf32>
    %48 = arith.addf %46, %47 : vector<64x128xf32>
    %49 = vector.extract_strided_slice %38 {offsets = [128, 0], sizes = [64, 128], strides = [1, 1]} : vector<256x128xf32> to vector<64x128xf32>
    %50 = vector.extract_strided_slice %38 {offsets = [192, 0], sizes = [64, 128], strides = [1, 1]} : vector<256x128xf32> to vector<64x128xf32>
    %cst_22 = arith.constant 5.000000e-01 : f32
    %51 = vector.broadcast %cst_22 : f32 to vector<64x128xf32>
    %52 = arith.mulf %51, %50 : vector<64x128xf32>
    %cst_23 = arith.constant 5.000000e-01 : f32
    %53 = vector.broadcast %cst_23 : f32 to vector<64x128xf32>
    %54 = arith.addf %52, %53 : vector<64x128xf32>
    %55 = arith.mulf %48, %30 : vector<64x128xf32>
    %56 = arith.mulf %43, %49 : vector<64x128xf32>
    %57 = arith.addf %55, %56 : vector<64x128xf32>
    %58 = math.tanh %57 : vector<64x128xf32>
    %59 = arith.mulf %54, %58 : vector<64x128xf32>
    %c2_i32 = arith.constant 2 : i32
    %60 = arith.index_cast %c2_i32 : i32 to index
    %c0_24 = arith.constant 0 : index
    %c0_25 = arith.constant 0 : index
    %61 = vector.load %arg2[%60, %c0_24, %c0_25] : memref<8x256x128xf32, #tpu.memory_space<vmem>>, vector<1x256x128xf32>
    %62 = vector.shape_cast %61 : vector<1x256x128xf32> to vector<256x128xf32>
    %cst_26 = arith.constant dense<0.000000e+00> : vector<256x128xf32>
    %63 = tpu.matmul %3, %59, %cst_26 {dimension_numbers = #tpu.dot_dimension_numbers<[1], [0], [0], [1], [0, 0, 1, 1], [], []>} : vector<256x64xf32>, vector<64x128xf32>, vector<256x128xf32> -> vector<256x128xf32>
    %64 = arith.addf %62, %63 : vector<256x128xf32>
    %65 = math.tanh %64 : vector<256x128xf32>
    %66 = vector.extract_strided_slice %65 {offsets = [0, 0], sizes = [64, 128], strides = [1, 1]} : vector<256x128xf32> to vector<64x128xf32>
    %cst_27 = arith.constant 5.000000e-01 : f32
    %67 = vector.broadcast %cst_27 : f32 to vector<64x128xf32>
    %68 = arith.mulf %67, %66 : vector<64x128xf32>
    %cst_28 = arith.constant 5.000000e-01 : f32
    %69 = vector.broadcast %cst_28 : f32 to vector<64x128xf32>
    %70 = arith.addf %68, %69 : vector<64x128xf32>
    %71 = vector.extract_strided_slice %65 {offsets = [64, 0], sizes = [64, 128], strides = [1, 1]} : vector<256x128xf32> to vector<64x128xf32>
    %cst_29 = arith.constant 5.000000e-01 : f32
    %72 = vector.broadcast %cst_29 : f32 to vector<64x128xf32>
    %73 = arith.mulf %72, %71 : vector<64x128xf32>
    %cst_30 = arith.constant 5.000000e-01 : f32
    %74 = vector.broadcast %cst_30 : f32 to vector<64x128xf32>
    %75 = arith.addf %73, %74 : vector<64x128xf32>
    %76 = vector.extract_strided_slice %65 {offsets = [128, 0], sizes = [64, 128], strides = [1, 1]} : vector<256x128xf32> to vector<64x128xf32>
    %77 = vector.extract_strided_slice %65 {offsets = [192, 0], sizes = [64, 128], strides = [1, 1]} : vector<256x128xf32> to vector<64x128xf32>
    %cst_31 = arith.constant 5.000000e-01 : f32
    %78 = vector.broadcast %cst_31 : f32 to vector<64x128xf32>
    %79 = arith.mulf %78, %77 : vector<64x128xf32>
    %cst_32 = arith.constant 5.000000e-01 : f32
    %80 = vector.broadcast %cst_32 : f32 to vector<64x128xf32>
    %81 = arith.addf %79, %80 : vector<64x128xf32>
    %82 = arith.mulf %75, %57 : vector<64x128xf32>
    %83 = arith.mulf %70, %76 : vector<64x128xf32>
    %84 = arith.addf %82, %83 : vector<64x128xf32>
    %85 = math.tanh %84 : vector<64x128xf32>
    %86 = arith.mulf %81, %85 : vector<64x128xf32>
    %c3_i32 = arith.constant 3 : i32
    %87 = arith.index_cast %c3_i32 : i32 to index
    %c0_33 = arith.constant 0 : index
    %c0_34 = arith.constant 0 : index
    %88 = vector.load %arg2[%87, %c0_33, %c0_34] : memref<8x256x128xf32, #tpu.memory_space<vmem>>, vector<1x256x128xf32>
    %89 = vector.shape_cast %88 : vector<1x256x128xf32> to vector<256x128xf32>
    %cst_35 = arith.constant dense<0.000000e+00> : vector<256x128xf32>
    %90 = tpu.matmul %3, %86, %cst_35 {dimension_numbers = #tpu.dot_dimension_numbers<[1], [0], [0], [1], [0, 0, 1, 1], [], []>} : vector<256x64xf32>, vector<64x128xf32>, vector<256x128xf32> -> vector<256x128xf32>
    %91 = arith.addf %89, %90 : vector<256x128xf32>
    %92 = math.tanh %91 : vector<256x128xf32>
    %93 = vector.extract_strided_slice %92 {offsets = [0, 0], sizes = [64, 128], strides = [1, 1]} : vector<256x128xf32> to vector<64x128xf32>
    %cst_36 = arith.constant 5.000000e-01 : f32
    %94 = vector.broadcast %cst_36 : f32 to vector<64x128xf32>
    %95 = arith.mulf %94, %93 : vector<64x128xf32>
    %cst_37 = arith.constant 5.000000e-01 : f32
    %96 = vector.broadcast %cst_37 : f32 to vector<64x128xf32>
    %97 = arith.addf %95, %96 : vector<64x128xf32>
    %98 = vector.extract_strided_slice %92 {offsets = [64, 0], sizes = [64, 128], strides = [1, 1]} : vector<256x128xf32> to vector<64x128xf32>
    %cst_38 = arith.constant 5.000000e-01 : f32
    %99 = vector.broadcast %cst_38 : f32 to vector<64x128xf32>
    %100 = arith.mulf %99, %98 : vector<64x128xf32>
    %cst_39 = arith.constant 5.000000e-01 : f32
    %101 = vector.broadcast %cst_39 : f32 to vector<64x128xf32>
    %102 = arith.addf %100, %101 : vector<64x128xf32>
    %103 = vector.extract_strided_slice %92 {offsets = [128, 0], sizes = [64, 128], strides = [1, 1]} : vector<256x128xf32> to vector<64x128xf32>
    %104 = vector.extract_strided_slice %92 {offsets = [192, 0], sizes = [64, 128], strides = [1, 1]} : vector<256x128xf32> to vector<64x128xf32>
    %cst_40 = arith.constant 5.000000e-01 : f32
    %105 = vector.broadcast %cst_40 : f32 to vector<64x128xf32>
    %106 = arith.mulf %105, %104 : vector<64x128xf32>
    %cst_41 = arith.constant 5.000000e-01 : f32
    %107 = vector.broadcast %cst_41 : f32 to vector<64x128xf32>
    %108 = arith.addf %106, %107 : vector<64x128xf32>
    %109 = arith.mulf %102, %84 : vector<64x128xf32>
    %110 = arith.mulf %97, %103 : vector<64x128xf32>
    %111 = arith.addf %109, %110 : vector<64x128xf32>
    %112 = math.tanh %111 : vector<64x128xf32>
    %113 = arith.mulf %108, %112 : vector<64x128xf32>
    %c4_i32 = arith.constant 4 : i32
    %114 = arith.index_cast %c4_i32 : i32 to index
    %c0_42 = arith.constant 0 : index
    %c0_43 = arith.constant 0 : index
    %115 = vector.load %arg2[%114, %c0_42, %c0_43] : memref<8x256x128xf32, #tpu.memory_space<vmem>>, vector<1x256x128xf32>
    %116 = vector.shape_cast %115 : vector<1x256x128xf32> to vector<256x128xf32>
    %cst_44 = arith.constant dense<0.000000e+00> : vector<256x128xf32>
    %117 = tpu.matmul %3, %113, %cst_44 {dimension_numbers = #tpu.dot_dimension_numbers<[1], [0], [0], [1], [0, 0, 1, 1], [], []>} : vector<256x64xf32>, vector<64x128xf32>, vector<256x128xf32> -> vector<256x128xf32>
    %118 = arith.addf %116, %117 : vector<256x128xf32>
    %119 = math.tanh %118 : vector<256x128xf32>
    %120 = vector.extract_strided_slice %119 {offsets = [0, 0], sizes = [64, 128], strides = [1, 1]} : vector<256x128xf32> to vector<64x128xf32>
    %cst_45 = arith.constant 5.000000e-01 : f32
    %121 = vector.broadcast %cst_45 : f32 to vector<64x128xf32>
    %122 = arith.mulf %121, %120 : vector<64x128xf32>
    %cst_46 = arith.constant 5.000000e-01 : f32
    %123 = vector.broadcast %cst_46 : f32 to vector<64x128xf32>
    %124 = arith.addf %122, %123 : vector<64x128xf32>
    %125 = vector.extract_strided_slice %119 {offsets = [64, 0], sizes = [64, 128], strides = [1, 1]} : vector<256x128xf32> to vector<64x128xf32>
    %cst_47 = arith.constant 5.000000e-01 : f32
    %126 = vector.broadcast %cst_47 : f32 to vector<64x128xf32>
    %127 = arith.mulf %126, %125 : vector<64x128xf32>
    %cst_48 = arith.constant 5.000000e-01 : f32
    %128 = vector.broadcast %cst_48 : f32 to vector<64x128xf32>
    %129 = arith.addf %127, %128 : vector<64x128xf32>
    %130 = vector.extract_strided_slice %119 {offsets = [128, 0], sizes = [64, 128], strides = [1, 1]} : vector<256x128xf32> to vector<64x128xf32>
    %131 = vector.extract_strided_slice %119 {offsets = [192, 0], sizes = [64, 128], strides = [1, 1]} : vector<256x128xf32> to vector<64x128xf32>
    %cst_49 = arith.constant 5.000000e-01 : f32
    %132 = vector.broadcast %cst_49 : f32 to vector<64x128xf32>
    %133 = arith.mulf %132, %131 : vector<64x128xf32>
    %cst_50 = arith.constant 5.000000e-01 : f32
    %134 = vector.broadcast %cst_50 : f32 to vector<64x128xf32>
    %135 = arith.addf %133, %134 : vector<64x128xf32>
    %136 = arith.mulf %129, %111 : vector<64x128xf32>
    %137 = arith.mulf %124, %130 : vector<64x128xf32>
    %138 = arith.addf %136, %137 : vector<64x128xf32>
    %139 = math.tanh %138 : vector<64x128xf32>
    %140 = arith.mulf %135, %139 : vector<64x128xf32>
    %c5_i32 = arith.constant 5 : i32
    %141 = arith.index_cast %c5_i32 : i32 to index
    %c0_51 = arith.constant 0 : index
    %c0_52 = arith.constant 0 : index
    %142 = vector.load %arg2[%141, %c0_51, %c0_52] : memref<8x256x128xf32, #tpu.memory_space<vmem>>, vector<1x256x128xf32>
    %143 = vector.shape_cast %142 : vector<1x256x128xf32> to vector<256x128xf32>
    %cst_53 = arith.constant dense<0.000000e+00> : vector<256x128xf32>
    %144 = tpu.matmul %3, %140, %cst_53 {dimension_numbers = #tpu.dot_dimension_numbers<[1], [0], [0], [1], [0, 0, 1, 1], [], []>} : vector<256x64xf32>, vector<64x128xf32>, vector<256x128xf32> -> vector<256x128xf32>
    %145 = arith.addf %143, %144 : vector<256x128xf32>
    %146 = math.tanh %145 : vector<256x128xf32>
    %147 = vector.extract_strided_slice %146 {offsets = [0, 0], sizes = [64, 128], strides = [1, 1]} : vector<256x128xf32> to vector<64x128xf32>
    %cst_54 = arith.constant 5.000000e-01 : f32
    %148 = vector.broadcast %cst_54 : f32 to vector<64x128xf32>
    %149 = arith.mulf %148, %147 : vector<64x128xf32>
    %cst_55 = arith.constant 5.000000e-01 : f32
    %150 = vector.broadcast %cst_55 : f32 to vector<64x128xf32>
    %151 = arith.addf %149, %150 : vector<64x128xf32>
    %152 = vector.extract_strided_slice %146 {offsets = [64, 0], sizes = [64, 128], strides = [1, 1]} : vector<256x128xf32> to vector<64x128xf32>
    %cst_56 = arith.constant 5.000000e-01 : f32
    %153 = vector.broadcast %cst_56 : f32 to vector<64x128xf32>
    %154 = arith.mulf %153, %152 : vector<64x128xf32>
    %cst_57 = arith.constant 5.000000e-01 : f32
    %155 = vector.broadcast %cst_57 : f32 to vector<64x128xf32>
    %156 = arith.addf %154, %155 : vector<64x128xf32>
    %157 = vector.extract_strided_slice %146 {offsets = [128, 0], sizes = [64, 128], strides = [1, 1]} : vector<256x128xf32> to vector<64x128xf32>
    %158 = vector.extract_strided_slice %146 {offsets = [192, 0], sizes = [64, 128], strides = [1, 1]} : vector<256x128xf32> to vector<64x128xf32>
    %cst_58 = arith.constant 5.000000e-01 : f32
    %159 = vector.broadcast %cst_58 : f32 to vector<64x128xf32>
    %160 = arith.mulf %159, %158 : vector<64x128xf32>
    %cst_59 = arith.constant 5.000000e-01 : f32
    %161 = vector.broadcast %cst_59 : f32 to vector<64x128xf32>
    %162 = arith.addf %160, %161 : vector<64x128xf32>
    %163 = arith.mulf %156, %138 : vector<64x128xf32>
    %164 = arith.mulf %151, %157 : vector<64x128xf32>
    %165 = arith.addf %163, %164 : vector<64x128xf32>
    %166 = math.tanh %165 : vector<64x128xf32>
    %167 = arith.mulf %162, %166 : vector<64x128xf32>
    %c6_i32 = arith.constant 6 : i32
    %168 = arith.index_cast %c6_i32 : i32 to index
    %c0_60 = arith.constant 0 : index
    %c0_61 = arith.constant 0 : index
    %169 = vector.load %arg2[%168, %c0_60, %c0_61] : memref<8x256x128xf32, #tpu.memory_space<vmem>>, vector<1x256x128xf32>
    %170 = vector.shape_cast %169 : vector<1x256x128xf32> to vector<256x128xf32>
    %cst_62 = arith.constant dense<0.000000e+00> : vector<256x128xf32>
    %171 = tpu.matmul %3, %167, %cst_62 {dimension_numbers = #tpu.dot_dimension_numbers<[1], [0], [0], [1], [0, 0, 1, 1], [], []>} : vector<256x64xf32>, vector<64x128xf32>, vector<256x128xf32> -> vector<256x128xf32>
    %172 = arith.addf %170, %171 : vector<256x128xf32>
    %173 = math.tanh %172 : vector<256x128xf32>
    %174 = vector.extract_strided_slice %173 {offsets = [0, 0], sizes = [64, 128], strides = [1, 1]} : vector<256x128xf32> to vector<64x128xf32>
    %cst_63 = arith.constant 5.000000e-01 : f32
    %175 = vector.broadcast %cst_63 : f32 to vector<64x128xf32>
    %176 = arith.mulf %175, %174 : vector<64x128xf32>
    %cst_64 = arith.constant 5.000000e-01 : f32
    %177 = vector.broadcast %cst_64 : f32 to vector<64x128xf32>
    %178 = arith.addf %176, %177 : vector<64x128xf32>
    %179 = vector.extract_strided_slice %173 {offsets = [64, 0], sizes = [64, 128], strides = [1, 1]} : vector<256x128xf32> to vector<64x128xf32>
    %cst_65 = arith.constant 5.000000e-01 : f32
    %180 = vector.broadcast %cst_65 : f32 to vector<64x128xf32>
    %181 = arith.mulf %180, %179 : vector<64x128xf32>
    %cst_66 = arith.constant 5.000000e-01 : f32
    %182 = vector.broadcast %cst_66 : f32 to vector<64x128xf32>
    %183 = arith.addf %181, %182 : vector<64x128xf32>
    %184 = vector.extract_strided_slice %173 {offsets = [128, 0], sizes = [64, 128], strides = [1, 1]} : vector<256x128xf32> to vector<64x128xf32>
    %185 = vector.extract_strided_slice %173 {offsets = [192, 0], sizes = [64, 128], strides = [1, 1]} : vector<256x128xf32> to vector<64x128xf32>
    %cst_67 = arith.constant 5.000000e-01 : f32
    %186 = vector.broadcast %cst_67 : f32 to vector<64x128xf32>
    %187 = arith.mulf %186, %185 : vector<64x128xf32>
    %cst_68 = arith.constant 5.000000e-01 : f32
    %188 = vector.broadcast %cst_68 : f32 to vector<64x128xf32>
    %189 = arith.addf %187, %188 : vector<64x128xf32>
    %190 = arith.mulf %183, %165 : vector<64x128xf32>
    %191 = arith.mulf %178, %184 : vector<64x128xf32>
    %192 = arith.addf %190, %191 : vector<64x128xf32>
    %193 = math.tanh %192 : vector<64x128xf32>
    %194 = arith.mulf %189, %193 : vector<64x128xf32>
    %c7_i32 = arith.constant 7 : i32
    %195 = arith.index_cast %c7_i32 : i32 to index
    %c0_69 = arith.constant 0 : index
    %c0_70 = arith.constant 0 : index
    %196 = vector.load %arg2[%195, %c0_69, %c0_70] : memref<8x256x128xf32, #tpu.memory_space<vmem>>, vector<1x256x128xf32>
    %197 = vector.shape_cast %196 : vector<1x256x128xf32> to vector<256x128xf32>
    %cst_71 = arith.constant dense<0.000000e+00> : vector<256x128xf32>
    %198 = tpu.matmul %3, %194, %cst_71 {dimension_numbers = #tpu.dot_dimension_numbers<[1], [0], [0], [1], [0, 0, 1, 1], [], []>} : vector<256x64xf32>, vector<64x128xf32>, vector<256x128xf32> -> vector<256x128xf32>
    %199 = arith.addf %197, %198 : vector<256x128xf32>
    %200 = math.tanh %199 : vector<256x128xf32>
    %201 = vector.extract_strided_slice %200 {offsets = [0, 0], sizes = [64, 128], strides = [1, 1]} : vector<256x128xf32> to vector<64x128xf32>
    %cst_72 = arith.constant 5.000000e-01 : f32
    %202 = vector.broadcast %cst_72 : f32 to vector<64x128xf32>
    %203 = arith.mulf %202, %201 : vector<64x128xf32>
    %cst_73 = arith.constant 5.000000e-01 : f32
    %204 = vector.broadcast %cst_73 : f32 to vector<64x128xf32>
    %205 = arith.addf %203, %204 : vector<64x128xf32>
    %206 = vector.extract_strided_slice %200 {offsets = [64, 0], sizes = [64, 128], strides = [1, 1]} : vector<256x128xf32> to vector<64x128xf32>
    %cst_74 = arith.constant 5.000000e-01 : f32
    %207 = vector.broadcast %cst_74 : f32 to vector<64x128xf32>
    %208 = arith.mulf %207, %206 : vector<64x128xf32>
    %cst_75 = arith.constant 5.000000e-01 : f32
    %209 = vector.broadcast %cst_75 : f32 to vector<64x128xf32>
    %210 = arith.addf %208, %209 : vector<64x128xf32>
    %211 = vector.extract_strided_slice %200 {offsets = [128, 0], sizes = [64, 128], strides = [1, 1]} : vector<256x128xf32> to vector<64x128xf32>
    %212 = vector.extract_strided_slice %200 {offsets = [192, 0], sizes = [64, 128], strides = [1, 1]} : vector<256x128xf32> to vector<64x128xf32>
    %cst_76 = arith.constant 5.000000e-01 : f32
    %213 = vector.broadcast %cst_76 : f32 to vector<64x128xf32>
    %214 = arith.mulf %213, %212 : vector<64x128xf32>
    %cst_77 = arith.constant 5.000000e-01 : f32
    %215 = vector.broadcast %cst_77 : f32 to vector<64x128xf32>
    %216 = arith.addf %214, %215 : vector<64x128xf32>
    %217 = arith.mulf %210, %192 : vector<64x128xf32>
    %218 = arith.mulf %205, %211 : vector<64x128xf32>
    %219 = arith.addf %217, %218 : vector<64x128xf32>
    %220 = math.tanh %219 : vector<64x128xf32>
    %221 = arith.mulf %216, %220 : vector<64x128xf32>
    %c8_i32 = arith.constant 8 : i32
    %c0_78 = arith.constant 0 : index
    %c0_79 = arith.constant 0 : index
    %222 = vector.load %arg7[%c0_78, %c0_79] : memref<64x128xf32, #tpu.memory_space<vmem>>, vector<64x128xf32>
    tpu.vector_store %arg7[%c0_78, %c0_79], %221 {strides = array<i32>} : memref<64x128xf32, #tpu.memory_space<vmem>>, vector<64x128xf32>,
    %c0_80 = arith.constant 0 : index
    %c0_81 = arith.constant 0 : index
    %223 = vector.load %arg8[%c0_80, %c0_81] : memref<64x128xf32, #tpu.memory_space<vmem>>, vector<64x128xf32>
    tpu.vector_store %arg8[%c0_80, %c0_81], %219 {strides = array<i32>} : memref<64x128xf32, #tpu.memory_space<vmem>>, vector<64x128xf32>,
    %c0_i32_82 = arith.constant 0 : i32
    %224 = arith.cmpi eq, %arg1, %c0_i32_82 : i32
    %225 = arith.extui %224 : i1 to i32
    %c0_i32_83 = arith.constant 0 : i32
    %226 = arith.cmpi ne, %225, %c0_i32_83 : i32
    scf.if %226 {
      %c0_84 = arith.constant 0 : index
      %c0_85 = arith.constant 0 : index
      %227 = vector.load %arg7[%c0_84, %c0_85] : memref<64x128xf32, #tpu.memory_space<vmem>>, vector<64x128xf32>
      %c0_86 = arith.constant 0 : index
      %c0_87 = arith.constant 0 : index
      %228 = vector.load %arg4[%c0_86, %c0_87] : memref<64x1xf32, #tpu.memory_space<vmem>>, vector<64x1xf32>
      %229 = vector.broadcast %228 : vector<64x1xf32> to vector<64x128xf32>
      %230 = arith.mulf %227, %229 : vector<64x128xf32>
      %cst_88 = arith.constant dense<0.000000e+00> : vector<128xf32>
      %231 = vector.multi_reduction <add>, %230, %cst_88 [0] : vector<64x128xf32> to vector<128xf32>
      %232 = vector.shape_cast %231 : vector<128xf32> to vector<1x128xf32>
      %c0_89 = arith.constant 0 : index
      %c0_90 = arith.constant 0 : index
      %233 = vector.load %arg5[%c0_89, %c0_90] : memref<1x1xf32, #tpu.memory_space<vmem>>, vector<1x1xf32>
      %234 = vector.broadcast %233 : vector<1x1xf32> to vector<1x128xf32>
      %235 = arith.addf %232, %234 : vector<1x128xf32>
      %c0_91 = arith.constant 0 : index
      %c0_92 = arith.constant 0 : index
      %236 = vector.load %arg6[%c0_91, %c0_92] : memref<1x128xf32, #tpu.memory_space<vmem>>, vector<1x128xf32>
      tpu.vector_store %arg6[%c0_91, %c0_92], %235 {strides = array<i32>} : memref<1x128xf32, #tpu.memory_space<vmem>>, vector<1x128xf32>,
    } else {
    }
    return
  }
  func.func @transform_0(%arg0: i32, %arg1: i32) -> (i32, i32, i32) {
    %c0_i32 = arith.constant 0 : i32
    %c0_i32_0 = arith.constant 0 : i32
    return %arg1, %c0_i32, %arg0 : i32, i32, i32
  }
  func.func @transform_1(%arg0: i32, %arg1: i32) -> (i32, i32) {
    %c0_i32 = arith.constant 0 : i32
    %c0_i32_0 = arith.constant 0 : i32
    %c0_i32_1 = arith.constant 0 : i32
    return %c0_i32, %c0_i32_0 : i32, i32
  }
  func.func @transform_2(%arg0: i32, %arg1: i32) -> (i32, i32) {
    %c0_i32 = arith.constant 0 : i32
    %c0_i32_0 = arith.constant 0 : i32
    %c0_i32_1 = arith.constant 0 : i32
    return %c0_i32, %c0_i32_0 : i32, i32
  }
  func.func @transform_3(%arg0: i32, %arg1: i32) -> (i32, i32) {
    %c0_i32 = arith.constant 0 : i32
    %c0_i32_0 = arith.constant 0 : i32
    %c0_i32_1 = arith.constant 0 : i32
    return %c0_i32, %c0_i32_0 : i32, i32
  }
  func.func @transform_4(%arg0: i32, %arg1: i32) -> (i32, i32) {
    %c0_i32 = arith.constant 0 : i32
    %c0_i32_0 = arith.constant 0 : i32
    return %c0_i32, %arg0 : i32, i32
  }
}

</mosaic_0001>

<llo_original>
// kernel: tpu_custom_call.1
$region0: #{tpu_custom_call.1}
  #allocation0 [shape = 'u32[]', space=smem, size = 0x4, offset = 0x4, fixed_abs, tag = 'smem constant byte address 0x4 - core index']
  #allocation1 [shape = 'u32[144,128]{1,0:T(1,128)}', space=vmem, size = 0x12000, scoped, tag = 'internal scratch']
  #allocation2 [shape = 'f32[64,128]{1,0:T(8,128)}', space=vmem, size = 0x8000, scoped, tag = 'scratch operand']
  #allocation3 [shape = 'f32[64,128]{1,0:T(8,128)}', space=vmem, size = 0x8000, scoped, tag = 'scratch operand']
  #allocation4 [shape = 'f32[1,1]{1,0:T(1,128)S(1)}', space=vmem, size = 0x200, scoped, tag = 'scoped memory for tpu_custom_call.1']
  %s0 = inlined_call_operand.hbm [shape: f32[8,256,128], index: 0, kind: input, shape index: {}]
  %s1 = inlined_call_operand.vmem [shape: f32[256,64], index: 1, kind: input, shape index: {}]
  %s2 = inlined_call_operand.vmem [shape: f32[64,1], index: 2, kind: input, shape index: {}]
  %s3 = inlined_call_operand.<no memory space> [shape: f32[1,1], index: 3, kind: input, shape index: {}]
  %s4 = inlined_call_operand.hbm [shape: f32[1,128], index: 4, kind: output, shape index: {}]
  %s5 = sld [smem:[#allocation0]]
  $region38: #{tpu_custom_call.1} parent=0
    _
  %s7 = ssub.s32 1, %s5
  %s8 = scalar_select 0, %s7, %s5
  %v9 = vstv %s3
  %10 = vst [vmem:[#allocation4] sm:$0x1] %v9
  $region1: #{tpu_custom_call.1} parent=0
    #allocation5 [shape = 'u8[1048576]{0}', space=vmem, size = 0x100000, scoped, tag = 'input window, operand 0, single buffered']
    #allocation6 [shape = 's32[1]{0}', space=sflag, size = 0x4, scoped, tag = 'scoped memory for tpu_custom_call.1']
    #allocation7 [shape = 's32[1]{0}', space=sflag, size = 0x4, scoped, tag = 'scoped memory for tpu_custom_call.1']
    #allocation8 [shape = 'u8[512]{0}', space=vmem, size = 0x400, scoped, tag = 'output window, operand 0, single buffered']
    %11 = vsyncpa [#allocation6], 0
    %12 = vsyncpa [#allocation7], 0
    // Predicated region
    $region2: #{tpu_custom_call.1} parent=1 // pred_check
      _
    $region3: #{tpu_custom_call.1} parent=1 // pred_check_branch
      %14 = sbr.rel (0) target = $region5
    $region4: #{tpu_custom_call.1} parent=1 // pred_region
      %s16 = ssub.s32 32768, 32768
      %17 = vsyncadd [#allocation6], %s16
      %s18 = sshll.u32 [#allocation5], 4
      %s19 = int_to_ptr.vmem [resolvable:$true] %s18
      %24 = dma.hbm_to_vmem [thread:$0]  %s0, 32768, %s19, [#allocation6], 128, 128, 8
    $region5: #{tpu_custom_call.1} parent=1 // pred_fallthru
      _
    // Predicated region
    $region6: #{tpu_custom_call.1} parent=1 // pred_check
      _
    $region7: #{tpu_custom_call.1} parent=1 // pred_check_branch
      %26 = sbr.rel (0) target = $region9
    $region8: #{tpu_custom_call.1} parent=1 // pred_region
      _
    $region9: #{tpu_custom_call.1} parent=1 // pred_fallthru
      _
    // Predicated region
    $region10: #{tpu_custom_call.1} parent=1 // pred_check
      _
    $region11: #{tpu_custom_call.1} parent=1 // pred_check_branch
      %28 = sbr.rel (0) target = $region13
    $region12: #{tpu_custom_call.1} parent=1 // pred_region
      _
    $region13: #{tpu_custom_call.1} parent=1 // pred_fallthru
      _
    // Predicated region
    $region14: #{tpu_custom_call.1} parent=1 // pred_check
      _
    $region15: #{tpu_custom_call.1} parent=1 // pred_check_branch
      %30 = sbr.rel (0) target = $region17
    $region16: #{tpu_custom_call.1} parent=1 // pred_region
      _
    $region17: #{tpu_custom_call.1} parent=1 // pred_fallthru
      _
    // Predicated region
    $region18: #{tpu_custom_call.1} parent=1 // pred_check
      _
    $region19: #{tpu_custom_call.1} parent=1 // pred_check_branch
      %32 = sbr.rel (0) target = $region21
    $region20: #{tpu_custom_call.1} parent=1 // pred_region
      %33 = dma.done [#allocation6], 32768
    $region21: #{tpu_custom_call.1} parent=1 // pred_fallthru
      _
    %p34 = scmp.eq.s32.totalorder 0, 0
    // Predicated region
    $region22: #{tpu_custom_call.1} parent=1 // pred_check
      %p35 = pneg %p34
    $region23: #{tpu_custom_call.1} parent=1 // pred_check_branch
      %37 = sbr.rel (%p35) target = $region25
    $region24: #{tpu_custom_call.1} parent=1 // pred_region
      %38 = vst [vmem:[#allocation2] sm:$0xff] 0.0
      %39 = vst [vmem:[#allocation2 + $0x8] sm:$0xff] 0.0
      %40 = vst [vmem:[#allocation2 + $0x10] sm:$0xff] 0.0
      %41 = vst [vmem:[#allocation2 + $0x18] sm:$0xff] 0.0
      %42 = vst [vmem:[#allocation2 + $0x20] sm:$0xff] 0.0
      %43 = vst [vmem:[#allocation2 + $0x28] sm:$0xff] 0.0
      %44 = vst [vmem:[#allocation2 + $0x30] sm:$0xff] 0.0
      %45 = vst [vmem:[#allocation2 + $0x38] sm:$0xff] 0.0
      %46 = vst [vmem:[#allocation3] sm:$0xff] 0.0
      %47 = vst [vmem:[#allocation3 + $0x8] sm:$0xff] 0.0
      %48 = vst [vmem:[#allocation3 + $0x10] sm:$0xff] 0.0
      %49 = vst [vmem:[#allocation3 + $0x18] sm:$0xff] 0.0
      %50 = vst [vmem:[#allocation3 + $0x20] sm:$0xff] 0.0
      %51 = vst [vmem:[#allocation3 + $0x28] sm:$0xff] 0.0
      %52 = vst [vmem:[#allocation3 + $0x30] sm:$0xff] 0.0
      %53 = vst [vmem:[#allocation3 + $0x38] sm:$0xff] 0.0
    $region25: #{tpu_custom_call.1} parent=1 // pred_fallthru
      _
    %v54 = vld [vmem:[%s1] sm:$0xff]
    %v55 = vld [vmem:[%s1 + $0x8] sm:$0xff]
    %v56 = vld [vmem:[%s1 + $0x10] sm:$0xff]
    %v57 = vld [vmem:[%s1 + $0x18] sm:$0xff]
    %v58 = vld [vmem:[%s1 + $0x20] sm:$0xff]
    %v59 = vld [vmem:[%s1 + $0x28] sm:$0xff]
    %v60 = vld [vmem:[%s1 + $0x30] sm:$0xff]
    %v61 = vld [vmem:[%s1 + $0x38] sm:$0xff]
    %v62 = vld [vmem:[%s1 + $0x40] sm:$0xff]
    %v63 = vld [vmem:[%s1 + $0x48] sm:$0xff]
    %v64 = vld [vmem:[%s1 + $0x50] sm:$0xff]
    %v65 = vld [vmem:[%s1 + $0x58] sm:$0xff]
    %v66 = vld [vmem:[%s1 + $0x60] sm:$0xff]
    %v67 = vld [vmem:[%s1 + $0x68] sm:$0xff]
    %v68 = vld [vmem:[%s1 + $0x70] sm:$0xff]
    %v69 = vld [vmem:[%s1 + $0x78] sm:$0xff]
    %v70 = vld [vmem:[%s1 + $0x80] sm:$0xff]
    %v71 = vld [vmem:[%s1 + $0x88] sm:$0xff]
    %v72 = vld [vmem:[%s1 + $0x90] sm:$0xff]
    %v73 = vld [vmem:[%s1 + $0x98] sm:$0xff]
    %v74 = vld [vmem:[%s1 + $0xa0] sm:$0xff]
    %v75 = vld [vmem:[%s1 + $0xa8] sm:$0xff]
    %v76 = vld [vmem:[%s1 + $0xb0] sm:$0xff]
    %v77 = vld [vmem:[%s1 + $0xb8] sm:$0xff]
    %v78 = vld [vmem:[%s1 + $0xc0] sm:$0xff]
    %v79 = vld [vmem:[%s1 + $0xc8] sm:$0xff]
    %v80 = vld [vmem:[%s1 + $0xd0] sm:$0xff]
    %v81 = vld [vmem:[%s1 + $0xd8] sm:$0xff]
    %v82 = vld [vmem:[%s1 + $0xe0] sm:$0xff]
    %v83 = vld [vmem:[%s1 + $0xe8] sm:$0xff]
    %v84 = vld [vmem:[%s1 + $0xf0] sm:$0xff]
    %v85 = vld [vmem:[%s1 + $0xf8] sm:$0xff]
    %v86 = vld [vmem:[#allocation2] sm:$0xff]
    %v87 = vld [vmem:[#allocation2 + $0x8] sm:$0xff]
    %v88 = vld [vmem:[#allocation2 + $0x10] sm:$0xff]
    %v89 = vld [vmem:[#allocation2 + $0x18] sm:$0xff]
    %v90 = vld [vmem:[#allocation2 + $0x20] sm:$0xff]
    %v91 = vld [vmem:[#allocation2 + $0x28] sm:$0xff]
    %v92 = vld [vmem:[#allocation2 + $0x30] sm:$0xff]
    %v93 = vld [vmem:[#allocation2 + $0x38] sm:$0xff]
    %v94 = vld [vmem:[#allocation3] sm:$0xff]
    %v95 = vld [vmem:[#allocation3 + $0x8] sm:$0xff]
    %v96 = vld [vmem:[#allocation3 + $0x10] sm:$0xff]
    %v97 = vld [vmem:[#allocation3 + $0x18] sm:$0xff]
    %v98 = vld [vmem:[#allocation3 + $0x20] sm:$0xff]
    %v99 = vld [vmem:[#allocation3 + $0x28] sm:$0xff]
    %v100 = vld [vmem:[#allocation3 + $0x30] sm:$0xff]
    %v101 = vld [vmem:[#allocation3 + $0x38] sm:$0xff]
    %v102 = vld [vmem:[#allocation5] sm:$0xff]
    %v103 = vld [vmem:[#allocation5 + $0x8] sm:$0xff]
    %v104 = vld [vmem:[#allocation5 + $0x10] sm:$0xff]
    %v105 = vld [vmem:[#allocation5 + $0x18] sm:$0xff]
    %v106 = vld [vmem:[#allocation5 + $0x20] sm:$0xff]
    %v107 = vld [vmem:[#allocation5 + $0x28] sm:$0xff]
    %v108 = vld [vmem:[#allocation5 + $0x30] sm:$0xff]
    %v109 = vld [vmem:[#allocation5 + $0x38] sm:$0xff]
    %v110 = vld [vmem:[#allocation5 + $0x40] sm:$0xff]
    %v111 = vld [vmem:[#allocation5 + $0x48] sm:$0xff]
    %v112 = vld [vmem:[#allocation5 + $0x50] sm:$0xff]
    %v113 = vld [vmem:[#allocation5 + $0x58] sm:$0xff]
    %v114 = vld [vmem:[#allocation5 + $0x60] sm:$0xff]
    %v115 = vld [vmem:[#allocation5 + $0x68] sm:$0xff]
    %v116 = vld [vmem:[#allocation5 + $0x70] sm:$0xff]
    %v117 = vld [vmem:[#allocation5 + $0x78] sm:$0xff]
    %v118 = vld [vmem:[#allocation5 + $0x80] sm:$0xff]
    %v119 = vld [vmem:[#allocation5 + $0x88] sm:$0xff]
    %v120 = vld [vmem:[#allocation5 + $0x90] sm:$0xff]
    %v121 = vld [vmem:[#allocation5 + $0x98] sm:$0xff]
    %v122 = vld [vmem:[#allocation5 + $0xa0] sm:$0xff]
    %v123 = vld [vmem:[#allocation5 + $0xa8] sm:$0xff]
    %v124 = vld [vmem:[#allocation5 + $0xb0] sm:$0xff]
    %v125 = vld [vmem:[#allocation5 + $0xb8] sm:$0xff]
    %v126 = vld [vmem:[#allocation5 + $0xc0] sm:$0xff]
    %v127 = vld [vmem:[#allocation5 + $0xc8] sm:$0xff]
    %v128 = vld [vmem:[#allocation5 + $0xd0] sm:$0xff]
    %v129 = vld [vmem:[#allocation5 + $0xd8] sm:$0xff]
    %v130 = vld [vmem:[#allocation5 + $0xe0] sm:$0xff]
    %v131 = vld [vmem:[#allocation5 + $0xe8] sm:$0xff]
    %v132 = vld [vmem:[#allocation5 + $0xf0] sm:$0xff]
    %v133 = vld [vmem:[#allocation5 + $0xf8] sm:$0xff]
    %vm134 = vcmask 523264
    %v136 = vsel %vm134, %v54, 0
    %v139 = vsel %vm134, %v55, 0
    %v142 = vsel %vm134, %v56, 0
    %v145 = vsel %vm134, %v57, 0
    %v148 = vsel %vm134, %v58, 0
    %v151 = vsel %vm134, %v59, 0
    %v154 = vsel %vm134, %v60, 0
    %v157 = vsel %vm134, %v61, 0
    %v160 = vsel %vm134, %v62, 0
    %v163 = vsel %vm134, %v63, 0
    %v166 = vsel %vm134, %v64, 0
    %v169 = vsel %vm134, %v65, 0
    %v172 = vsel %vm134, %v66, 0
    %v175 = vsel %vm134, %v67, 0
    %v178 = vsel %vm134, %v68, 0
    %v181 = vsel %vm134, %v69, 0
    %v184 = vsel %vm134, %v70, 0
    %v187 = vsel %vm134, %v71, 0
    %v190 = vsel %vm134, %v72, 0
    %v193 = vsel %vm134, %v73, 0
    %v196 = vsel %vm134, %v74, 0
    %v199 = vsel %vm134, %v75, 0
    %v202 = vsel %vm134, %v76, 0
    %v205 = vsel %vm134, %v77, 0
    %v208 = vsel %vm134, %v78, 0
    %v211 = vsel %vm134, %v79, 0
    %v214 = vsel %vm134, %v80, 0
    %v217 = vsel %vm134, %v81, 0
    %v220 = vsel %vm134, %v82, 0
    %v223 = vsel %vm134, %v83, 0
    %v226 = vsel %vm134, %v84, 0
    %v229 = vsel %vm134, %v85, 0
    %231 = vmatprep.subr.mxu0 0.0
    %232 = vmatpush1.msra.mxu0 %v86
    %233 = vmatprep.subr.mxu0 0.0
    %234 = vmatpush1.msra.mxu0 %v87
    %235 = vmatprep.subr.mxu0 0.0
    %236 = vmatpush1.msra.mxu0 %v88
    %237 = vmatprep.subr.mxu0 0.0
    %238 = vmatpush1.msra.mxu0 %v89
    %239 = vmatprep.subr.mxu0 0.0
    %240 = vmatpush1.msra.mxu0 %v90
    %241 = vmatprep.subr.mxu0 0.0
    %242 = vmatpush1.msra.mxu0 %v91
    %243 = vmatprep.subr.mxu0 0.0
    %244 = vmatpush1.msra.mxu0 %v92
    %245 = vmatprep.subr.mxu0 0.0
    %246 = vmatpush1.msra.mxu0 %v93
    %247 = vmatprep.subr.mxu0 0.0
    %248 = vmatpush1.msra.mxu0 0.0
    %249 = vmatprep.subr.mxu0 0.0
    %250 = vmatpush1.msra.mxu0 0.0
    %251 = vmatprep.subr.mxu0 0.0
    %252 = vmatpush1.msra.mxu0 0.0
    %253 = vmatprep.subr.mxu0 0.0
    %254 = vmatpush1.msra.mxu0 0.0
    %255 = vmatprep.subr.mxu0 0.0
    %256 = vmatpush1.msra.mxu0 0.0
    %257 = vmatprep.subr.mxu0 0.0
    %258 = vmatpush1.msra.mxu0 0.0
    %259 = vmatprep.subr.mxu0 0.0
    %260 = vmatpush1.msra.mxu0 0.0
    %261 = vmatprep.subr.mxu0 0.0
    %262 = vmatpush1.msra.mxu0 0.0
    %263 = vmatprep.subr.mxu0 0.0
    %264 = vmatpush1.msra.mxu0 0.0
    %265 = vmatprep.subr.mxu0 0.0
    %266 = vmatpush1.msra.mxu0 0.0
    %267 = vmatprep.subr.mxu0 0.0
    %268 = vmatpush1.msra.mxu0 0.0
    %269 = vmatprep.subr.mxu0 0.0
    %270 = vmatpush1.msra.mxu0 0.0
    %271 = vmatprep.subr.mxu0 0.0
    %272 = vmatpush1.msra.mxu0 0.0
    %273 = vmatprep.subr.mxu0 0.0
    %274 = vmatpush1.msra.mxu0 0.0
    %275 = vmatprep.subr.mxu0 0.0
    %276 = vmatpush1.msra.mxu0 0.0
    %277 = vmatprep.subr.mxu0 0.0
    %278 = vmatpush1.msra.mxu0 0.0
    %279 = vmatprep.subr.mxu0 0.0
    %280 = vmatpush1.msra.mxu0 0.0
    %281 = vmatprep.subr.mxu0 0.0
    %282 = vmatpush1.msra.mxu0 0.0
    %283 = vmatprep.subr.mxu0 0.0
    %284 = vmatpush1.msra.mxu0 0.0
    %285 = vmatprep.subr.mxu0 0.0
    %286 = vmatpush1.msra.mxu0 0.0
    %287 = vmatprep.subr.mxu0 0.0
    %288 = vmatpush1.msra.mxu0 0.0
    %289 = vmatprep.subr.mxu0 0.0
    %290 = vmatpush1.msra.mxu0 0.0
    %291 = vmatprep.subr.mxu0 0.0
    %292 = vmatpush1.msra.mxu0 0.0
    %293 = vmatprep.subr.mxu0 0.0
    %294 = vmatpush1.msra.mxu0 0.0
    %295 = vmatprep.mubr.f32.mxu0 0.0
    %296 = vmatmul.mubr.f32.gmra.mrb[0].mxu0 %v136
    %v297 = vpop.f32.mrb[0].mxu0
    %v298 = vadd.f32 0.0, %v297
    %v299 = vpop.f32.mrb[0].mxu0
    %300 = vmatprep.mubr.f32.mxu0 0.0
    %301 = vmatmul.mubr.f32.gmra.mrb[0].mxu0 %v139
    %v302 = vpop.f32.mrb[0].mxu0
    %v303 = vadd.f32 0.0, %v302
    %v304 = vpop.f32.mrb[0].mxu0
    %305 = vmatprep.mubr.f32.mxu0 0.0
    %306 = vmatmul.mubr.f32.gmra.mrb[0].mxu0 %v142
    %v307 = vpop.f32.mrb[0].mxu0
    %v308 = vadd.f32 0.0, %v307
    %v309 = vpop.f32.mrb[0].mxu0
    %310 = vmatprep.mubr.f32.mxu0 0.0
    %311 = vmatmul.mubr.f32.gmra.mrb[0].mxu0 %v145
    %v312 = vpop.f32.mrb[0].mxu0
    %v313 = vadd.f32 0.0, %v312
    %v314 = vpop.f32.mrb[0].mxu0
    %315 = vmatprep.mubr.f32.mxu0 0.0
    %316 = vmatmul.mubr.f32.gmra.mrb[0].mxu0 %v148
    %v317 = vpop.f32.mrb[0].mxu0
    %v318 = vadd.f32 0.0, %v317
    %v319 = vpop.f32.mrb[0].mxu0
    %320 = vmatprep.mubr.f32.mxu0 0.0
    %321 = vmatmul.mubr.f32.gmra.mrb[0].mxu0 %v151
    %v322 = vpop.f32.mrb[0].mxu0
    %v323 = vadd.f32 0.0, %v322
    %v324 = vpop.f32.mrb[0].mxu0
    %325 = vmatprep.mubr.f32.mxu0 0.0
    %326 = vmatmul.mubr.f32.gmra.mrb[0].mxu0 %v154
    %v327 = vpop.f32.mrb[0].mxu0
    %v328 = vadd.f32 0.0, %v327
    %v329 = vpop.f32.mrb[0].mxu0
    %330 = vmatprep.mubr.f32.mxu0 0.0
    %331 = vmatmul.mubr.f32.gmra.mrb[0].mxu0 %v157
    %v332 = vpop.f32.mrb[0].mxu0
    %v333 = vadd.f32 0.0, %v332
    %v334 = vpop.f32.mrb[0].mxu0
    %335 = vmatprep.mubr.f32.mxu0 0.0
    %336 = vmatmul.mubr.f32.gmra.mrb[0].mxu0 %v160
    %v337 = vpop.f32.mrb[0].mxu0
    %v338 = vadd.f32 0.0, %v337
    %v339 = vpop.f32.mrb[0].mxu0
    %340 = vmatprep.mubr.f32.mxu0 0.0
    %341 = vmatmul.mubr.f32.gmra.mrb[0].mxu0 %v163
    %v342 = vpop.f32.mrb[0].mxu0
    %v343 = vadd.f32 0.0, %v342
    %v344 = vpop.f32.mrb[0].mxu0
    %345 = vmatprep.mubr.f32.mxu0 0.0
    %346 = vmatmul.mubr.f32.gmra.mrb[0].mxu0 %v166
    %v347 = vpop.f32.mrb[0].mxu0
    %v348 = vadd.f32 0.0, %v347
    %v349 = vpop.f32.mrb[0].mxu0
    %350 = vmatprep.mubr.f32.mxu0 0.0
    %351 = vmatmul.mubr.f32.gmra.mrb[0].mxu0 %v169
    %v352 = vpop.f32.mrb[0].mxu0
    %v353 = vadd.f32 0.0, %v352
    %v354 = vpop.f32.mrb[0].mxu0
    %355 = vmatprep.mubr.f32.mxu0 0.0
    %356 = vmatmul.mubr.f32.gmra.mrb[0].mxu0 %v172
    %v357 = vpop.f32.mrb[0].mxu0
    %v358 = vadd.f32 0.0, %v357
    %v359 = vpop.f32.mrb[0].mxu0
    %360 = vmatprep.mubr.f32.mxu0 0.0
    %361 = vmatmul.mubr.f32.gmra.mrb[0].mxu0 %v175
    %v362 = vpop.f32.mrb[0].mxu0
    %v363 = vadd.f32 0.0, %v362
    %v364 = vpop.f32.mrb[0].mxu0
    %365 = vmatprep.mubr.f32.mxu0 0.0
    %366 = vmatmul.mubr.f32.gmra.mrb[0].mxu0 %v178
    %v367 = vpop.f32.mrb[0].mxu0
    %v368 = vadd.f32 0.0, %v367
    %v369 = vpop.f32.mrb[0].mxu0
    %370 = vmatprep.mubr.f32.mxu0 0.0
    %371 = vmatmul.mubr.f32.gmra.mrb[0].mxu0 %v181
    %v372 = vpop.f32.mrb[0].mxu0
    %v373 = vadd.f32 0.0, %v372
    %v374 = vpop.f32.mrb[0].mxu0
    %375 = vmatprep.mubr.f32.mxu0 0.0
    %376 = vmatmul.mubr.f32.gmra.mrb[0].mxu0 %v184
    %v377 = vpop.f32.mrb[0].mxu0
    %v378 = vadd.f32 0.0, %v377
    %v379 = vpop.f32.mrb[0].mxu0
    %380 = vmatprep.mubr.f32.mxu0 0.0
    %381 = vmatmul.mubr.f32.gmra.mrb[0].mxu0 %v187
    %v382 = vpop.f32.mrb[0].mxu0
    %v383 = vadd.f32 0.0, %v382
    %v384 = vpop.f32.mrb[0].mxu0
    %385 = vmatprep.mubr.f32.mxu0 0.0
    %386 = vmatmul.mubr.f32.gmra.mrb[0].mxu0 %v190
    %v387 = vpop.f32.mrb[0].mxu0
    %v388 = vadd.f32 0.0, %v387
    %v389 = vpop.f32.mrb[0].mxu0
    %390 = vmatprep.mubr.f32.mxu0 0.0
    %391 = vmatmul.mubr.f32.gmra.mrb[0].mxu0 %v193
    %v392 = vpop.f32.mrb[0].mxu0
    %v393 = vadd.f32 0.0, %v392
    %v394 = vpop.f32.mrb[0].mxu0
    %395 = vmatprep.mubr.f32.mxu0 0.0
    %396 = vmatmul.mubr.f32.gmra.mrb[0].mxu0 %v196
    %v397 = vpop.f32.mrb[0].mxu0
    %v398 = vadd.f32 0.0, %v397
    %v399 = vpop.f32.mrb[0].mxu0
    %400 = vmatprep.mubr.f32.mxu0 0.0
    %401 = vmatmul.mubr.f32.gmra.mrb[0].mxu0 %v199
    %v402 = vpop.f32.mrb[0].mxu0
    %v403 = vadd.f32 0.0, %v402
    %v404 = vpop.f32.mrb[0].mxu0
    %405 = vmatprep.mubr.f32.mxu0 0.0
    %406 = vmatmul.mubr.f32.gmra.mrb[0].mxu0 %v202
    %v407 = vpop.f32.mrb[0].mxu0
    %v408 = vadd.f32 0.0, %v407
    %v409 = vpop.f32.mrb[0].mxu0
    %410 = vmatprep.mubr.f32.mxu0 0.0
    %411 = vmatmul.mubr.f32.gmra.mrb[0].mxu0 %v205
    %v412 = vpop.f32.mrb[0].mxu0
    %v413 = vadd.f32 0.0, %v412
    %v414 = vpop.f32.mrb[0].mxu0
    %415 = vmatprep.mubr.f32.mxu0 0.0
    %416 = vmatmul.mubr.f32.gmra.mrb[0].mxu0 %v208
    %v417 = vpop.f32.mrb[0].mxu0
    %v418 = vadd.f32 0.0, %v417
    %v419 = vpop.f32.mrb[0].mxu0
    %420 = vmatprep.mubr.f32.mxu0 0.0
    %421 = vmatmul.mubr.f32.gmra.mrb[0].mxu0 %v211
    %v422 = vpop.f32.mrb[0].mxu0
    %v423 = vadd.f32 0.0, %v422
    %v424 = vpop.f32.mrb[0].mxu0
    %425 = vmatprep.mubr.f32.mxu0 0.0
    %426 = vmatmul.mubr.f32.gmra.mrb[0].mxu0 %v214
    %v427 = vpop.f32.mrb[0].mxu0
    %v428 = vadd.f32 0.0, %v427
    %v429 = vpop.f32.mrb[0].mxu0
    %430 = vmatprep.mubr.f32.mxu0 0.0
    %431 = vmatmul.mubr.f32.gmra.mrb[0].mxu0 %v217
    %v432 = vpop.f32.mrb[0].mxu0
    %v433 = vadd.f32 0.0, %v432
    %v434 = vpop.f32.mrb[0].mxu0
    %435 = vmatprep.mubr.f32.mxu0 0.0
    %436 = vmatmul.mubr.f32.gmra.mrb[0].mxu0 %v220
    %v437 = vpop.f32.mrb[0].mxu0
    %v438 = vadd.f32 0.0, %v437
    %v439 = vpop.f32.mrb[0].mxu0
    %440 = vmatprep.mubr.f32.mxu0 0.0
    %441 = vmatmul.mubr.f32.gmra.mrb[0].mxu0 %v223
    %v442 = vpop.f32.mrb[0].mxu0
    %v443 = vadd.f32 0.0, %v442
    %v444 = vpop.f32.mrb[0].mxu0
    %445 = vmatprep.mubr.f32.mxu0 0.0
    %446 = vmatmul.mubr.f32.gmra.mrb[0].mxu0 %v226
    %v447 = vpop.f32.mrb[0].mxu0
    %v448 = vadd.f32 0.0, %v447
    %v449 = vpop.f32.mrb[0].mxu0
    %450 = vmatprep.mubr.f32.mxu0 0.0
    %451 = vmatmul.mubr.f32.gmra.mrb[0].mxu0 %v229
    %v452 = vpop.f32.mrb[0].mxu0
    %v453 = vadd.f32 0.0, %v452
    %v454 = vpop.f32.mrb[0].mxu0
    %455 = vdwg.mxu0
    %v456 = vadd.f32 %v102, %v298
    %v457 = vadd.f32 %v103, %v303
    %v458 = vadd.f32 %v104, %v308
    %v459 = vadd.f32 %v105, %v313
    %v460 = vadd.f32 %v106, %v318
    %v461 = vadd.f32 %v107, %v323
    %v462 = vadd.f32 %v108, %v328
    %v463 = vadd.f32 %v109, %v333
    %v464 = vadd.f32 %v110, %v338
    %v465 = vadd.f32 %v111, %v343
    %v466 = vadd.f32 %v112, %v348
    %v467 = vadd.f32 %v113, %v353
    %v468 = vadd.f32 %v114, %v358
    %v469 = vadd.f32 %v115, %v363
    %v470 = vadd.f32 %v116, %v368
    %v471 = vadd.f32 %v117, %v373
    %v472 = vadd.f32 %v118, %v378
    %v473 = vadd.f32 %v119, %v383
    %v474 = vadd.f32 %v120, %v388
    %v475 = vadd.f32 %v121, %v393
    %v476 = vadd.f32 %v122, %v398
    %v477 = vadd.f32 %v123, %v403
    %v478 = vadd.f32 %v124, %v408
    %v479 = vadd.f32 %v125, %v413
    %v480 = vadd.f32 %v126, %v418
    %v481 = vadd.f32 %v127, %v423
    %v482 = vadd.f32 %v128, %v428
    %v483 = vadd.f32 %v129, %v433
    %v484 = vadd.f32 %v130, %v438
    %v485 = vadd.f32 %v131, %v443
    %v486 = vadd.f32 %v132, %v448
    %v487 = vadd.f32 %v133, %v453
    %v488 = vtanh.pop %v456
    %v489 = vtanh.pop %v457
    %v490 = vtanh.pop %v458
    %v491 = vtanh.pop %v459
    %v492 = vtanh.pop %v460
    %v493 = vtanh.pop %v461
    %v494 = vtanh.pop %v462
    %v495 = vtanh.pop %v463
    %v496 = vtanh.pop %v464
    %v497 = vtanh.pop %v465
    %v498 = vtanh.pop %v466
    %v499 = vtanh.pop %v467
    %v500 = vtanh.pop %v468
    %v501 = vtanh.pop %v469
    %v502 = vtanh.pop %v470
    %v503 = vtanh.pop %v471
    %v504 = vtanh.pop %v472
    %v505 = vtanh.pop %v473
    %v506 = vtanh.pop %v474
    %v507 = vtanh.pop %v475
    %v508 = vtanh.pop %v476
    %v509 = vtanh.pop %v477
    %v510 = vtanh.pop %v478
    %v511 = vtanh.pop %v479
    %v512 = vtanh.pop %v480
    %v513 = vtanh.pop %v481
    %v514 = vtanh.pop %v482
    %v515 = vtanh.pop %v483
    %v516 = vtanh.pop %v484
    %v517 = vtanh.pop %v485
    %v518 = vtanh.pop %v486
    %v519 = vtanh.pop %v487
    %v520 = vmul.f32 %v488, 0.5
    %v521 = vmul.f32 %v489, 0.5
    %v522 = vmul.f32 %v490, 0.5
    %v523 = vmul.f32 %v491, 0.5
    %v524 = vmul.f32 %v492, 0.5
    %v525 = vmul.f32 %v493, 0.5
    %v526 = vmul.f32 %v494, 0.5
    %v527 = vmul.f32 %v495, 0.5
    %v528 = vadd.f32 %v520, 0.5
    %v529 = vadd.f32 %v521, 0.5
    %v530 = vadd.f32 %v522, 0.5
    %v531 = vadd.f32 %v523, 0.5
    %v532 = vadd.f32 %v524, 0.5
    %v533 = vadd.f32 %v525, 0.5
    %v534 = vadd.f32 %v526, 0.5
    %v535 = vadd.f32 %v527, 0.5
    %v536 = vmul.f32 %v496, 0.5
    %v537 = vmul.f32 %v497, 0.5
    %v538 = vmul.f32 %v498, 0.5
    %v539 = vmul.f32 %v499, 0.5
    %v540 = vmul.f32 %v500, 0.5
    %v541 = vmul.f32 %v501, 0.5
    %v542 = vmul.f32 %v502, 0.5
    %v543 = vmul.f32 %v503, 0.5
    %v544 = vadd.f32 %v536, 0.5
    %v545 = vadd.f32 %v537, 0.5
    %v546 = vadd.f32 %v538, 0.5
    %v547 = vadd.f32 %v539, 0.5
    %v548 = vadd.f32 %v540, 0.5
    %v549 = vadd.f32 %v541, 0.5
    %v550 = vadd.f32 %v542, 0.5
    %v551 = vadd.f32 %v543, 0.5
    %v552 = vmul.f32 %v512, 0.5
    %v553 = vmul.f32 %v513, 0.5
    %v554 = vmul.f32 %v514, 0.5
    %v555 = vmul.f32 %v515, 0.5
    %v556 = vmul.f32 %v516, 0.5
    %v557 = vmul.f32 %v517, 0.5
    %v558 = vmul.f32 %v518, 0.5
    %v559 = vmul.f32 %v519, 0.5
    %v560 = vadd.f32 %v552, 0.5
    %v561 = vadd.f32 %v553, 0.5
    %v562 = vadd.f32 %v554, 0.5
    %v563 = vadd.f32 %v555, 0.5
    %v564 = vadd.f32 %v556, 0.5
    %v565 = vadd.f32 %v557, 0.5
    %v566 = vadd.f32 %v558, 0.5
    %v567 = vadd.f32 %v559, 0.5
    %v568 = vmul.f32 %v544, %v94
    %v569 = vmul.f32 %v545, %v95
    %v570 = vmul.f32 %v546, %v96
    %v571 = vmul.f32 %v547, %v97
    %v572 = vmul.f32 %v548, %v98
    %v573 = vmul.f32 %v549, %v99
    %v574 = vmul.f32 %v550, %v100
    %v575 = vmul.f32 %v551, %v101
    %v576 = vmul.f32 %v528, %v504
    %v577 = vmul.f32 %v529, %v505
    %v578 = vmul.f32 %v530, %v506
    %v579 = vmul.f32 %v531, %v507
    %v580 = vmul.f32 %v532, %v508
    %v581 = vmul.f32 %v533, %v509
    %v582 = vmul.f32 %v534, %v510
    %v583 = vmul.f32 %v535, %v511
    %v584 = vadd.f32 %v568, %v576
    %v585 = vadd.f32 %v569, %v577
    %v586 = vadd.f32 %v570, %v578
    %v587 = vadd.f32 %v571, %v579
    %v588 = vadd.f32 %v572, %v580
    %v589 = vadd.f32 %v573, %v581
    %v590 = vadd.f32 %v574, %v582
    %v591 = vadd.f32 %v575, %v583
    %v592 = vtanh.pop %v584
    %v593 = vtanh.pop %v585
    %v594 = vtanh.pop %v586
    %v595 = vtanh.pop %v587
    %v596 = vtanh.pop %v588
    %v597 = vtanh.pop %v589
    %v598 = vtanh.pop %v590
    %v599 = vtanh.pop %v591
    %v600 = vmul.f32 %v560, %v592
    %v601 = vmul.f32 %v561, %v593
    %v602 = vmul.f32 %v562, %v594
    %v603 = vmul.f32 %v563, %v595
    %v604 = vmul.f32 %v564, %v596
    %v605 = vmul.f32 %v565, %v597
    %v606 = vmul.f32 %v566, %v598
    %v607 = vmul.f32 %v567, %v599
    %s608 = scalar_lea.vmem [#allocation5], 256
    %v609 = vld [vmem:[%s608] sm:$0xff]
    %v610 = vld [vmem:[%s608 + $0x8] sm:$0xff]
    %v611 = vld [vmem:[%s608 + $0x10] sm:$0xff]
    %v612 = vld [vmem:[%s608 + $0x18] sm:$0xff]
    %v613 = vld [vmem:[%s608 + $0x20] sm:$0xff]
    %v614 = vld [vmem:[%s608 + $0x28] sm:$0xff]
    %v615 = vld [vmem:[%s608 + $0x30] sm:$0xff]
    %v616 = vld [vmem:[%s608 + $0x38] sm:$0xff]
    %v617 = vld [vmem:[%s608 + $0x40] sm:$0xff]
    %v618 = vld [vmem:[%s608 + $0x48] sm:$0xff]
    %v619 = vld [vmem:[%s608 + $0x50] sm:$0xff]
    %v620 = vld [vmem:[%s608 + $0x58] sm:$0xff]
    %v621 = vld [vmem:[%s608 + $0x60] sm:$0xff]
    %v622 = vld [vmem:[%s608 + $0x68] sm:$0xff]
    %v623 = vld [vmem:[%s608 + $0x70] sm:$0xff]
    %v624 = vld [vmem:[%s608 + $0x78] sm:$0xff]
    %v625 = vld [vmem:[%s608 + $0x80] sm:$0xff]
    %v626 = vld [vmem:[%s608 + $0x88] sm:$0xff]
    %v627 = vld [vmem:[%s608 + $0x90] sm:$0xff]
    %v628 = vld [vmem:[%s608 + $0x98] sm:$0xff]
    %v629 = vld [vmem:[%s608 + $0xa0] sm:$0xff]
    %v630 = vld [vmem:[%s608 + $0xa8] sm:$0xff]
    %v631 = vld [vmem:[%s608 + $0xb0] sm:$0xff]
    %v632 = vld [vmem:[%s608 + $0xb8] sm:$0xff]
    %v633 = vld [vmem:[%s608 + $0xc0] sm:$0xff]
    %v634 = vld [vmem:[%s608 + $0xc8] sm:$0xff]
    %v635 = vld [vmem:[%s608 + $0xd0] sm:$0xff]
    %v636 = vld [vmem:[%s608 + $0xd8] sm:$0xff]
    %v637 = vld [vmem:[%s608 + $0xe0] sm:$0xff]
    %v638 = vld [vmem:[%s608 + $0xe8] sm:$0xff]
    %v639 = vld [vmem:[%s608 + $0xf0] sm:$0xff]
    %v640 = vld [vmem:[%s608 + $0xf8] sm:$0xff]
    %641 = vmatprep.subr.mxu0 0.0
    %642 = vmatpush1.msra.mxu0 %v600
    %643 = vmatprep.subr.mxu0 0.0
    %644 = vmatpush1.msra.mxu0 %v601
    %645 = vmatprep.subr.mxu0 0.0
    %646 = vmatpush1.msra.mxu0 %v602
    %647 = vmatprep.subr.mxu0 0.0
    %648 = vmatpush1.msra.mxu0 %v603
    %649 = vmatprep.subr.mxu0 0.0
    %650 = vmatpush1.msra.mxu0 %v604
    %651 = vmatprep.subr.mxu0 0.0
    %652 = vmatpush1.msra.mxu0 %v605
    %653 = vmatprep.subr.mxu0 0.0
    %654 = vmatpush1.msra.mxu0 %v606
    %655 = vmatprep.subr.mxu0 0.0
    %656 = vmatpush1.msra.mxu0 %v607
    %657 = vmatprep.subr.mxu0 0.0
    %658 = vmatpush1.msra.mxu0 0.0
    %659 = vmatprep.subr.mxu0 0.0
    %660 = vmatpush1.msra.mxu0 0.0
    %661 = vmatprep.subr.mxu0 0.0
    %662 = vmatpush1.msra.mxu0 0.0
    %663 = vmatprep.subr.mxu0 0.0
    %664 = vmatpush1.msra.mxu0 0.0
    %665 = vmatprep.subr.mxu0 0.0
    %666 = vmatpush1.msra.mxu0 0.0
    %667 = vmatprep.subr.mxu0 0.0
    %668 = vmatpush1.msra.mxu0 0.0
    %669 = vmatprep.subr.mxu0 0.0
    %670 = vmatpush1.msra.mxu0 0.0
    %671 = vmatprep.subr.mxu0 0.0
    %672 = vmatpush1.msra.mxu0 0.0
    %673 = vmatprep.subr.mxu0 0.0
    %674 = vmatpush1.msra.mxu0 0.0
    %675 = vmatprep.subr.mxu0 0.0
    %676 = vmatpush1.msra.mxu0 0.0
    %677 = vmatprep.subr.mxu0 0.0
    %678 = vmatpush1.msra.mxu0 0.0
    %679 = vmatprep.subr.mxu0 0.0
    %680 = vmatpush1.msra.mxu0 0.0
    %681 = vmatprep.subr.mxu0 0.0
    %682 = vmatpush1.msra.mxu0 0.0
    %683 = vmatprep.subr.mxu0 0.0
    %684 = vmatpush1.msra.mxu0 0.0
    %685 = vmatprep.subr.mxu0 0.0
    %686 = vmatpush1.msra.mxu0 0.0
    %687 = vmatprep.subr.mxu0 0.0
    %688 = vmatpush1.msra.mxu0 0.0
    %689 = vmatprep.subr.mxu0 0.0
    %690 = vmatpush1.msra.mxu0 0.0
    %691 = vmatprep.subr.mxu0 0.0
    %692 = vmatpush1.msra.mxu0 0.0
    %693 = vmatprep.subr.mxu0 0.0
    %694 = vmatpush1.msra.mxu0 0.0
    %695 = vmatprep.subr.mxu0 0.0
    %696 = vmatpush1.msra.mxu0 0.0
    %697 = vmatprep.subr.mxu0 0.0
    %698 = vmatpush1.msra.mxu0 0.0
    %699 = vmatprep.subr.mxu0 0.0
    %700 = vmatpush1.msra.mxu0 0.0
    %701 = vmatprep.subr.mxu0 0.0
    %702 = vmatpush1.msra.mxu0 0.0
    %703 = vmatprep.subr.mxu0 0.0
    %704 = vmatpush1.msra.mxu0 0.0
    %705 = vmatprep.mubr.f32.mxu0 0.0
    %706 = vmatmul.mubr.f32.gmra.mrb[0].mxu0 %v136
    %v707 = vpop.f32.mrb[0].mxu0
    %v708 = vadd.f32 0.0, %v707
    %v709 = vpop.f32.mrb[0].mxu0
    %710 = vmatprep.mubr.f32.mxu0 0.0
    %711 = vmatmul.mubr.f32.gmra.mrb[0].mxu0 %v139
    %v712 = vpop.f32.mrb[0].mxu0
    %v713 = vadd.f32 0.0, %v712
    %v714 = vpop.f32.mrb[0].mxu0
    %715 = vmatprep.mubr.f32.mxu0 0.0
    %716 = vmatmul.mubr.f32.gmra.mrb[0].mxu0 %v142
    %v717 = vpop.f32.mrb[0].mxu0
    %v718 = vadd.f32 0.0, %v717
    %v719 = vpop.f32.mrb[0].mxu0
    %720 = vmatprep.mubr.f32.mxu0 0.0
    %721 = vmatmul.mubr.f32.gmra.mrb[0].mxu0 %v145
    %v722 = vpop.f32.mrb[0].mxu0
    %v723 = vadd.f32 0.0, %v722
    %v724 = vpop.f32.mrb[0].mxu0
    %725 = vmatprep.mubr.f32.mxu0 0.0
    %726 = vmatmul.mubr.f32.gmra.mrb[0].mxu0 %v148
    %v727 = vpop.f32.mrb[0].mxu0
    %v728 = vadd.f32 0.0, %v727
    %v729 = vpop.f32.mrb[0].mxu0
    %730 = vmatprep.mubr.f32.mxu0 0.0
    %731 = vmatmul.mubr.f32.gmra.mrb[0].mxu0 %v151
    %v732 = vpop.f32.mrb[0].mxu0
    %v733 = vadd.f32 0.0, %v732
    %v734 = vpop.f32.mrb[0].mxu0
    %735 = vmatprep.mubr.f32.mxu0 0.0
    %736 = vmatmul.mubr.f32.gmra.mrb[0].mxu0 %v154
    %v737 = vpop.f32.mrb[0].mxu0
    %v738 = vadd.f32 0.0, %v737
    %v739 = vpop.f32.mrb[0].mxu0
    %740 = vmatprep.mubr.f32.mxu0 0.0
    %741 = vmatmul.mubr.f32.gmra.mrb[0].mxu0 %v157
    %v742 = vpop.f32.mrb[0].mxu0
    %v743 = vadd.f32 0.0, %v742
    %v744 = vpop.f32.mrb[0].mxu0
    %745 = vmatprep.mubr.f32.mxu0 0.0
    %746 = vmatmul.mubr.f32.gmra.mrb[0].mxu0 %v160
    %v747 = vpop.f32.mrb[0].mxu0
    %v748 = vadd.f32 0.0, %v747
    %v749 = vpop.f32.mrb[0].mxu0
    %750 = vmatprep.mubr.f32.mxu0 0.0
    %751 = vmatmul.mubr.f32.gmra.mrb[0].mxu0 %v163
    %v752 = vpop.f32.mrb[0].mxu0
    %v753 = vadd.f32 0.0, %v752
    %v754 = vpop.f32.mrb[0].mxu0
    %755 = vmatprep.mubr.f32.mxu0 0.0
    %756 = vmatmul.mubr.f32.gmra.mrb[0].mxu0 %v166
    %v757 = vpop.f32.mrb[0].mxu0
    %v758 = vadd.f32 0.0, %v757
    %v759 = vpop.f32.mrb[0].mxu0
    %760 = vmatprep.mubr.f32.mxu0 0.0
    %761 = vmatmul.mubr.f32.gmra.mrb[0].mxu0 %v169
    %v762 = vpop.f32.mrb[0].mxu0
    %v763 = vadd.f32 0.0, %v762
    %v764 = vpop.f32.mrb[0].mxu0
    %765 = vmatprep.mubr.f32.mxu0 0.0
    %766 = vmatmul.mubr.f32.gmra.mrb[0].mxu0 %v172
    %v767 = vpop.f32.mrb[0].mxu0
    %v768 = vadd.f32 0.0, %v767
    %v769 = vpop.f32.mrb[0].mxu0
    %770 = vmatprep.mubr.f32.mxu0 0.0
    %771 = vmatmul.mubr.f32.gmra.mrb[0].mxu0 %v175
    %v772 = vpop.f32.mrb[0].mxu0
    %v773 = vadd.f32 0.0, %v772
    %v774 = vpop.f32.mrb[0].mxu0
    %775 = vmatprep.mubr.f32.mxu0 0.0
    %776 = vmatmul.mubr.f32.gmra.mrb[0].mxu0 %v178
    %v777 = vpop.f32.mrb[0].mxu0
    %v778 = vadd.f32 0.0, %v777
    %v779 = vpop.f32.mrb[0].mxu0
    %780 = vmatprep.mubr.f32.mxu0 0.0
    %781 = vmatmul.mubr.f32.gmra.mrb[0].mxu0 %v181
    %v782 = vpop.f32.mrb[0].mxu0
    %v783 = vadd.f32 0.0, %v782
    %v784 = vpop.f32.mrb[0].mxu0
    %785 = vmatprep.mubr.f32.mxu0 0.0
    %786 = vmatmul.mubr.f32.gmra.mrb[0].mxu0 %v184
    %v787 = vpop.f32.mrb[0].mxu0
    %v788 = vadd.f32 0.0, %v787
    %v789 = vpop.f32.mrb[0].mxu0
    %790 = vmatprep.mubr.f32.mxu0 0.0
    %791 = vmatmul.mubr.f32.gmra.mrb[0].mxu0 %v187
    %v792 = vpop.f32.mrb[0].mxu0
    %v793 = vadd.f32 0.0, %v792
    %v794 = vpop.f32.mrb[0].mxu0
    %795 = vmatprep.mubr.f32.mxu0 0.0
    %796 = vmatmul.mubr.f32.gmra.mrb[0].mxu0 %v190
    %v797 = vpop.f32.mrb[0].mxu0
    %v798 = vadd.f32 0.0, %v797
    %v799 = vpop.f32.mrb[0].mxu0
    %800 = vmatprep.mubr.f32.mxu0 0.0
    %801 = vmatmul.mubr.f32.gmra.mrb[0].mxu0 %v193
    %v802 = vpop.f32.mrb[0].mxu0
    %v803 = vadd.f32 0.0, %v802
    %v804 = vpop.f32.mrb[0].mxu0
    %805 = vmatprep.mubr.f32.mxu0 0.0
    %806 = vmatmul.mubr.f32.gmra.mrb[0].mxu0 %v196
    %v807 = vpop.f32.mrb[0].mxu0
    %v808 = vadd.f32 0.0, %v807
    %v809 = vpop.f32.mrb[0].mxu0
    %810 = vmatprep.mubr.f32.mxu0 0.0
    %811 = vmatmul.mubr.f32.gmra.mrb[0].mxu0 %v199
    %v812 = vpop.f32.mrb[0].mxu0
    %v813 = vadd.f32 0.0, %v812
    %v814 = vpop.f32.mrb[0].mxu0
    %815 = vmatprep.mubr.f32.mxu0 0.0
    %816 = vmatmul.mubr.f32.gmra.mrb[0].mxu0 %v202
    %v817 = vpop.f32.mrb[0].mxu0
    %v818 = vadd.f32 0.0, %v817
    %v819 = vpop.f32.mrb[0].mxu0
    %820 = vmatprep.mubr.f32.mxu0 0.0
    %821 = vmatmul.mubr.f32.gmra.mrb[0].mxu0 %v205
    %v822 = vpop.f32.mrb[0].mxu0
    %v823 = vadd.f32 0.0, %v822
    %v824 = vpop.f32.mrb[0].mxu0
    %825 = vmatprep.mubr.f32.mxu0 0.0
    %826 = vmatmul.mubr.f32.gmra.mrb[0].mxu0 %v208
    %v827 = vpop.f32.mrb[0].mxu0
    %v828 = vadd.f32 0.0, %v827
    %v829 = vpop.f32.mrb[0].mxu0
    %830 = vmatprep.mubr.f32.mxu0 0.0
    %831 = vmatmul.mubr.f32.gmra.mrb[0].mxu0 %v211
    %v832 = vpop.f32.mrb[0].mxu0
    %v833 = vadd.f32 0.0, %v832
    %v834 = vpop.f32.mrb[0].mxu0
    %835 = vmatprep.mubr.f32.mxu0 0.0
    %836 = vmatmul.mubr.f32.gmra.mrb[0].mxu0 %v214
    %v837 = vpop.f32.mrb[0].mxu0
    %v838 = vadd.f32 0.0, %v837
    %v839 = vpop.f32.mrb[0].mxu0
    %840 = vmatprep.mubr.f32.mxu0 0.0
    %841 = vmatmul.mubr.f32.gmra.mrb[0].mxu0 %v217
    %v842 = vpop.f32.mrb[0].mxu0
    %v843 = vadd.f32 0.0, %v842
    %v844 = vpop.f32.mrb[0].mxu0
    %845 = vmatprep.mubr.f32.mxu0 0.0
    %846 = vmatmul.mubr.f32.gmra.mrb[0].mxu0 %v220
    %v847 = vpop.f32.mrb[0].mxu0
    %v848 = vadd.f32 0.0, %v847
    %v849 = vpop.f32.mrb[0].mxu0
    %850 = vmatprep.mubr.f32.mxu0 0.0
    %851 = vmatmul.mubr.f32.gmra.mrb[0].mxu0 %v223
    %v852 = vpop.f32.mrb[0].mxu0
    %v853 = vadd.f32 0.0, %v852
    %v854 = vpop.f32.mrb[0].mxu0
    %855 = vmatprep.mubr.f32.mxu0 0.0
    %856 = vmatmul.mubr.f32.gmra.mrb[0].mxu0 %v226
    %v857 = vpop.f32.mrb[0].mxu0
    %v858 = vadd.f32 0.0, %v857
    %v859 = vpop.f32.mrb[0].mxu0
    %860 = vmatprep.mubr.f32.mxu0 0.0
    %861 = vmatmul.mubr.f32.gmra.mrb[0].mxu0 %v229
    %v862 = vpop.f32.mrb[0].mxu0
    %v863 = vadd.f32 0.0, %v862
    %v864 = vpop.f32.mrb[0].mxu0
    %865 = vdwg.mxu0
    %v866 = vadd.f32 %v609, %v708
    %v867 = vadd.f32 %v610, %v713
    %v868 = vadd.f32 %v611, %v718
    %v869 = vadd.f32 %v612, %v723
    %v870 = vadd.f32 %v613, %v728
    %v871 = vadd.f32 %v614, %v733
    %v872 = vadd.f32 %v615, %v738
    %v873 = vadd.f32 %v616, %v743
    %v874 = vadd.f32 %v617, %v748
    %v875 = vadd.f32 %v618, %v753
    %v876 = vadd.f32 %v619, %v758
    %v877 = vadd.f32 %v620, %v763
    %v878 = vadd.f32 %v621, %v768
    %v879 = vadd.f32 %v622, %v773
    %v880 = vadd.f32 %v623, %v778
    %v881 = vadd.f32 %v624, %v783
    %v882 = vadd.f32 %v625, %v788
    %v883 = vadd.f32 %v626, %v793
    %v884 = vadd.f32 %v627, %v798
    %v885 = vadd.f32 %v628, %v803
    %v886 = vadd.f32 %v629, %v808
    %v887 = vadd.f32 %v630, %v813
    %v888 = vadd.f32 %v631, %v818
    %v889 = vadd.f32 %v632, %v823
    %v890 = vadd.f32 %v633, %v828
    %v891 = vadd.f32 %v634, %v833
    %v892 = vadd.f32 %v635, %v838
    %v893 = vadd.f32 %v636, %v843
    %v894 = vadd.f32 %v637, %v848
    %v895 = vadd.f32 %v638, %v853
    %v896 = vadd.f32 %v639, %v858
    %v897 = vadd.f32 %v640, %v863
    %v898 = vtanh.pop %v866
    %v899 = vtanh.pop %v867
    %v900 = vtanh.pop %v868
    %v901 = vtanh.pop %v869
    %v902 = vtanh.pop %v870
    %v903 = vtanh.pop %v871
    %v904 = vtanh.pop %v872
    %v905 = vtanh.pop %v873
    %v906 = vtanh.pop %v874
    %v907 = vtanh.pop %v875
    %v908 = vtanh.pop %v876
    %v909 = vtanh.pop %v877
    %v910 = vtanh.pop %v878
    %v911 = vtanh.pop %v879
    %v912 = vtanh.pop %v880
    %v913 = vtanh.pop %v881
    %v914 = vtanh.pop %v882
    %v915 = vtanh.pop %v883
    %v916 = vtanh.pop %v884
    %v917 = vtanh.pop %v885
    %v918 = vtanh.pop %v886
    %v919 = vtanh.pop %v887
    %v920 = vtanh.pop %v888
    %v921 = vtanh.pop %v889
    %v922 = vtanh.pop %v890
    %v923 = vtanh.pop %v891
    %v924 = vtanh.pop %v892
    %v925 = vtanh.pop %v893
    %v926 = vtanh.pop %v894
    %v927 = vtanh.pop %v895
    %v928 = vtanh.pop %v896
    %v929 = vtanh.pop %v897
    %v930 = vmul.f32 %v898, 0.5
    %v931 = vmul.f32 %v899, 0.5
    %v932 = vmul.f32 %v900, 0.5
    %v933 = vmul.f32 %v901, 0.5
    %v934 = vmul.f32 %v902, 0.5
    %v935 = vmul.f32 %v903, 0.5
    %v936 = vmul.f32 %v904, 0.5
    %v937 = vmul.f32 %v905, 0.5
    %v938 = vadd.f32 %v930, 0.5
    %v939 = vadd.f32 %v931, 0.5
    %v940 = vadd.f32 %v932, 0.5
    %v941 = vadd.f32 %v933, 0.5
    %v942 = vadd.f32 %v934, 0.5
    %v943 = vadd.f32 %v935, 0.5
    %v944 = vadd.f32 %v936, 0.5
    %v945 = vadd.f32 %v937, 0.5
    %v946 = vmul.f32 %v906, 0.5
    %v947 = vmul.f32 %v907, 0.5
    %v948 = vmul.f32 %v908, 0.5
    %v949 = vmul.f32 %v909, 0.5
    %v950 = vmul.f32 %v910, 0.5
    %v951 = vmul.f32 %v911, 0.5
    %v952 = vmul.f32 %v912, 0.5
    %v953 = vmul.f32 %v913, 0.5
    %v954 = vadd.f32 %v946, 0.5
    %v955 = vadd.f32 %v947, 0.5
    %v956 = vadd.f32 %v948, 0.5
    %v957 = vadd.f32 %v949, 0.5
    %v958 = vadd.f32 %v950, 0.5
    %v959 = vadd.f32 %v951, 0.5
    %v960 = vadd.f32 %v952, 0.5
    %v961 = vadd.f32 %v953, 0.5
    %v962 = vmul.f32 %v922, 0.5
    %v963 = vmul.f32 %v923, 0.5
    %v964 = vmul.f32 %v924, 0.5
    %v965 = vmul.f32 %v925, 0.5
    %v966 = vmul.f32 %v926, 0.5
    %v967 = vmul.f32 %v927, 0.5
    %v968 = vmul.f32 %v928, 0.5
    %v969 = vmul.f32 %v929, 0.5
    %v970 = vadd.f32 %v962, 0.5
    %v971 = vadd.f32 %v963, 0.5
    %v972 = vadd.f32 %v964, 0.5
    %v973 = vadd.f32 %v965, 0.5
    %v974 = vadd.f32 %v966, 0.5
    %v975 = vadd.f32 %v967, 0.5
    %v976 = vadd.f32 %v968, 0.5
    %v977 = vadd.f32 %v969, 0.5
    %v978 = vmul.f32 %v954, %v584
    %v979 = vmul.f32 %v955, %v585
    %v980 = vmul.f32 %v956, %v586
    %v981 = vmul.f32 %v957, %v587
    %v982 = vmul.f32 %v958, %v588
    %v983 = vmul.f32 %v959, %v589
    %v984 = vmul.f32 %v960, %v590
    %v985 = vmul.f32 %v961, %v591
    %v986 = vmul.f32 %v938, %v914
    %v987 = vmul.f32 %v939, %v915
    %v988 = vmul.f32 %v940, %v916
    %v989 = vmul.f32 %v941, %v917
    %v990 = vmul.f32 %v942, %v918
    %v991 = vmul.f32 %v943, %v919
    %v992 = vmul.f32 %v944, %v920
    %v993 = vmul.f32 %v945, %v921
    %v994 = vadd.f32 %v978, %v986
    %v995 = vadd.f32 %v979, %v987
    %v996 = vadd.f32 %v980, %v988
    %v997 = vadd.f32 %v981, %v989
    %v998 = vadd.f32 %v982, %v990
    %v999 = vadd.f32 %v983, %v991
    %v1000 = vadd.f32 %v984, %v992
    %v1001 = vadd.f32 %v985, %v993
    %v1002 = vtanh.pop %v994
    %v1003 = vtanh.pop %v995
    %v1004 = vtanh.pop %v996
    %v1005 = vtanh.pop %v997
    %v1006 = vtanh.pop %v998
    %v1007 = vtanh.pop %v999
    %v1008 = vtanh.pop %v1000
    %v1009 = vtanh.pop %v1001
    %v1010 = vmul.f32 %v970, %v1002
    %v1011 = vmul.f32 %v971, %v1003
    %v1012 = vmul.f32 %v972, %v1004
    %v1013 = vmul.f32 %v973, %v1005
    %v1014 = vmul.f32 %v974, %v1006
    %v1015 = vmul.f32 %v975, %v1007
    %v1016 = vmul.f32 %v976, %v1008
    %v1017 = vmul.f32 %v977, %v1009
    %s1018 = scalar_lea.vmem [#allocation5], 512
    %v1019 = vld [vmem:[%s1018] sm:$0xff]
    %v1020 = vld [vmem:[%s1018 + $0x8] sm:$0xff]
    %v1021 = vld [vmem:[%s1018 + $0x10] sm:$0xff]
    %v1022 = vld [vmem:[%s1018 + $0x18] sm:$0xff]
    %v1023 = vld [vmem:[%s1018 + $0x20] sm:$0xff]
    %v1024 = vld [vmem:[%s1018 + $0x28] sm:$0xff]
    %v1025 = vld [vmem:[%s1018 + $0x30] sm:$0xff]
    %v1026 = vld [vmem:[%s1018 + $0x38] sm:$0xff]
    %v1027 = vld [vmem:[%s1018 + $0x40] sm:$0xff]
    %v1028 = vld [vmem:[%s1018 + $0x48] sm:$0xff]
    %v1029 = vld [vmem:[%s1018 + $0x50] sm:$0xff]
    %v1030 = vld [vmem:[%s1018 + $0x58] sm:$0xff]
    %v1031 = vld [vmem:[%s1018 + $0x60] sm:$0xff]
    %v1032 = vld [vmem:[%s1018 + $0x68] sm:$0xff]
    %v1033 = vld [vmem:[%s1018 + $0x70] sm:$0xff]
    %v1034 = vld [vmem:[%s1018 + $0x78] sm:$0xff]
    %v1035 = vld [vmem:[%s1018 + $0x80] sm:$0xff]
    %v1036 = vld [vmem:[%s1018 + $0x88] sm:$0xff]
    %v1037 = vld [vmem:[%s1018 + $0x90] sm:$0xff]
    %v1038 = vld [vmem:[%s1018 + $0x98] sm:$0xff]
    %v1039 = vld [vmem:[%s1018 + $0xa0] sm:$0xff]
    %v1040 = vld [vmem:[%s1018 + $0xa8] sm:$0xff]
    %v1041 = vld [vmem:[%s1018 + $0xb0] sm:$0xff]
    %v1042 = vld [vmem:[%s1018 + $0xb8] sm:$0xff]
    %v1043 = vld [vmem:[%s1018 + $0xc0] sm:$0xff]
    %v1044 = vld [vmem:[%s1018 + $0xc8] sm:$0xff]
    %v1045 = vld [vmem:[%s1018 + $0xd0] sm:$0xff]
    %v1046 = vld [vmem:[%s1018 + $0xd8] sm:$0xff]
    %v1047 = vld [vmem:[%s1018 + $0xe0] sm:$0xff]
    %v1048 = vld [vmem:[%s1018 + $0xe8] sm:$0xff]
    %v1049 = vld [vmem:[%s1018 + $0xf0] sm:$0xff]
    %v1050 = vld [vmem:[%s1018 + $0xf8] sm:$0xff]
    %1051 = vmatprep.subr.mxu0 0.0
    %1052 = vmatpush1.msra.mxu0 %v1010
    %1053 = vmatprep.subr.mxu0 0.0
    %1054 = vmatpush1.msra.mxu0 %v1011
    %1055 = vmatprep.subr.mxu0 0.0
    %1056 = vmatpush1.msra.mxu0 %v1012
    %1057 = vmatprep.subr.mxu0 0.0
    %1058 = vmatpush1.msra.mxu0 %v1013
    %1059 = vmatprep.subr.mxu0 0.0
    %1060 = vmatpush1.msra.mxu0 %v1014
    %1061 = vmatprep.subr.mxu0 0.0
    %1062 = vmatpush1.msra.mxu0 %v1015
    %1063 = vmatprep.subr.mxu0 0.0
    %1064 = vmatpush1.msra.mxu0 %v1016
    %1065 = vmatprep.subr.mxu0 0.0
    %1066 = vmatpush1.msra.mxu0 %v1017
    %1067 = vmatprep.subr.mxu0 0.0
    %1068 = vmatpush1.msra.mxu0 0.0
    %1069 = vmatprep.subr.mxu0 0.0
    %1070 = vmatpush1.msra.mxu0 0.0
    %1071 = vmatprep.subr.mxu0 0.0
    %1072 = vmatpush1.msra.mxu0 0.0
    %1073 = vmatprep.subr.mxu0 0.0
    %1074 = vmatpush1.msra.mxu0 0.0
    %1075 = vmatprep.subr.mxu0 0.0
    %1076 = vmatpush1.msra.mxu0 0.0
    %1077 = vmatprep.subr.mxu0 0.0
    %1078 = vmatpush1.msra.mxu0 0.0
    %1079 = vmatprep.subr.mxu0 0.0
    %1080 = vmatpush1.msra.mxu0 0.0
    %1081 = vmatprep.subr.mxu0 0.0
    %1082 = vmatpush1.msra.mxu0 0.0
    %1083 = vmatprep.subr.mxu0 0.0
    %1084 = vmatpush1.msra.mxu0 0.0
    %1085 = vmatprep.subr.mxu0 0.0
    %1086 = vmatpush1.msra.mxu0 0.0
    %1087 = vmatprep.subr.mxu0 0.0
    %1088 = vmatpush1.msra.mxu0 0.0
    %1089 = vmatprep.subr.mxu0 0.0
    %1090 = vmatpush1.msra.mxu0 0.0
    %1091 = vmatprep.subr.mxu0 0.0
    %1092 = vmatpush1.msra.mxu0 0.0
    %1093 = vmatprep.subr.mxu0 0.0
    %1094 = vmatpush1.msra.mxu0 0.0
    %1095 = vmatprep.subr.mxu0 0.0
    %1096 = vmatpush1.msra.mxu0 0.0
    %1097 = vmatprep.subr.mxu0 0.0
    %1098 = vmatpush1.msra.mxu0 0.0
    %1099 = vmatprep.subr.mxu0 0.0
    %1100 = vmatpush1.msra.mxu0 0.0
    %1101 = vmatprep.subr.mxu0 0.0
    %1102 = vmatpush1.msra.mxu0 0.0
    %1103 = vmatprep.subr.mxu0 0.0
    %1104 = vmatpush1.msra.mxu0 0.0
    %1105 = vmatprep.subr.mxu0 0.0
    %1106 = vmatpush1.msra.mxu0 0.0
    %1107 = vmatprep.subr.mxu0 0.0
    %1108 = vmatpush1.msra.mxu0 0.0
    %1109 = vmatprep.subr.mxu0 0.0
    %1110 = vmatpush1.msra.mxu0 0.0
    %1111 = vmatprep.subr.mxu0 0.0
    %1112 = vmatpush1.msra.mxu0 0.0
    %1113 = vmatprep.subr.mxu0 0.0
    %1114 = vmatpush1.msra.mxu0 0.0
    %1115 = vmatprep.mubr.f32.mxu0 0.0
    %1116 = vmatmul.mubr.f32.gmra.mrb[0].mxu0 %v136
    %v1117 = vpop.f32.mrb[0].mxu0
    %v1118 = vadd.f32 0.0, %v1117
    %v1119 = vpop.f32.mrb[0].mxu0
    %1120 = vmatprep.mubr.f32.mxu0 0.0
    %1121 = vmatmul.mubr.f32.gmra.mrb[0].mxu0 %v139
    %v1122 = vpop.f32.mrb[0].mxu0
    %v1123 = vadd.f32 0.0, %v1122
    %v1124 = vpop.f32.mrb[0].mxu0
    %1125 = vmatprep.mubr.f32.mxu0 0.0
    %1126 = vmatmul.mubr.f32.gmra.mrb[0].mxu0 %v142
    %v1127 = vpop.f32.mrb[0].mxu0
    %v1128 = vadd.f32 0.0, %v1127
    %v1129 = vpop.f32.mrb[0].mxu0
    %1130 = vmatprep.mubr.f32.mxu0 0.0
    %1131 = vmatmul.mubr.f32.gmra.mrb[0].mxu0 %v145
    %v1132 = vpop.f32.mrb[0].mxu0
    %v1133 = vadd.f32 0.0, %v1132
    %v1134 = vpop.f32.mrb[0].mxu0
    %1135 = vmatprep.mubr.f32.mxu0 0.0
    %1136 = vmatmul.mubr.f32.gmra.mrb[0].mxu0 %v148
    %v1137 = vpop.f32.mrb[0].mxu0
    %v1138 = vadd.f32 0.0, %v1137
    %v1139 = vpop.f32.mrb[0].mxu0
    %1140 = vmatprep.mubr.f32.mxu0 0.0
    %1141 = vmatmul.mubr.f32.gmra.mrb[0].mxu0 %v151
    %v1142 = vpop.f32.mrb[0].mxu0
    %v1143 = vadd.f32 0.0, %v1142
    %v1144 = vpop.f32.mrb[0].mxu0
    %1145 = vmatprep.mubr.f32.mxu0 0.0
    %1146 = vmatmul.mubr.f32.gmra.mrb[0].mxu0 %v154
    %v1147 = vpop.f32.mrb[0].mxu0
    %v1148 = vadd.f32 0.0, %v1147
    %v1149 = vpop.f32.mrb[0].mxu0
    %1150 = vmatprep.mubr.f32.mxu0 0.0
    %1151 = vmatmul.mubr.f32.gmra.mrb[0].mxu0 %v157
    %v1152 = vpop.f32.mrb[0].mxu0
    %v1153 = vadd.f32 0.0, %v1152
    %v1154 = vpop.f32.mrb[0].mxu0
    %1155 = vmatprep.mubr.f32.mxu0 0.0
    %1156 = vmatmul.mubr.f32.gmra.mrb[0].mxu0 %v160
    %v1157 = vpop.f32.mrb[0].mxu0
    %v1158 = vadd.f32 0.0, %v1157
    %v1159 = vpop.f32.mrb[0].mxu0
    %1160 = vmatprep.mubr.f32.mxu0 0.0
    %1161 = vmatmul.mubr.f32.gmra.mrb[0].mxu0 %v163
    %v1162 = vpop.f32.mrb[0].mxu0
    %v1163 = vadd.f32 0.0, %v1162
    %v1164 = vpop.f32.mrb[0].mxu0
    %1165 = vmatprep.mubr.f32.mxu0 0.0
    %1166 = vmatmul.mubr.f32.gmra.mrb[0].mxu0 %v166
    %v1167 = vpop.f32.mrb[0].mxu0
    %v1168 = vadd.f32 0.0, %v1167
    %v1169 = vpop.f32.mrb[0].mxu0
    %1170 = vmatprep.mubr.f32.mxu0 0.0
    %1171 = vmatmul.mubr.f32.gmra.mrb[0].mxu0 %v169
    %v1172 = vpop.f32.mrb[0].mxu0
    %v1173 = vadd.f32 0.0, %v1172
    %v1174 = vpop.f32.mrb[0].mxu0
    %1175 = vmatprep.mubr.f32.mxu0 0.0
    %1176 = vmatmul.mubr.f32.gmra.mrb[0].mxu0 %v172
    %v1177 = vpop.f32.mrb[0].mxu0
    %v1178 = vadd.f32 0.0, %v1177
    %v1179 = vpop.f32.mrb[0].mxu0
    %1180 = vmatprep.mubr.f32.mxu0 0.0
    %1181 = vmatmul.mubr.f32.gmra.mrb[0].mxu0 %v175
    %v1182 = vpop.f32.mrb[0].mxu0
    %v1183 = vadd.f32 0.0, %v1182
    %v1184 = vpop.f32.mrb[0].mxu0
    %1185 = vmatprep.mubr.f32.mxu0 0.0
    %1186 = vmatmul.mubr.f32.gmra.mrb[0].mxu0 %v178
    %v1187 = vpop.f32.mrb[0].mxu0
    %v1188 = vadd.f32 0.0, %v1187
    %v1189 = vpop.f32.mrb[0].mxu0
    %1190 = vmatprep.mubr.f32.mxu0 0.0
    %1191 = vmatmul.mubr.f32.gmra.mrb[0].mxu0 %v181
    %v1192 = vpop.f32.mrb[0].mxu0
    %v1193 = vadd.f32 0.0, %v1192
    %v1194 = vpop.f32.mrb[0].mxu0
    %1195 = vmatprep.mubr.f32.mxu0 0.0
    %1196 = vmatmul.mubr.f32.gmra.mrb[0].mxu0 %v184
    %v1197 = vpop.f32.mrb[0].mxu0
    %v1198 = vadd.f32 0.0, %v1197
    %v1199 = vpop.f32.mrb[0].mxu0
    %1200 = vmatprep.mubr.f32.mxu0 0.0
    %1201 = vmatmul.mubr.f32.gmra.mrb[0].mxu0 %v187
    %v1202 = vpop.f32.mrb[0].mxu0
    %v1203 = vadd.f32 0.0, %v1202
    %v1204 = vpop.f32.mrb[0].mxu0
    %1205 = vmatprep.mubr.f32.mxu0 0.0
    %1206 = vmatmul.mubr.f32.gmra.mrb[0].mxu0 %v190
    %v1207 = vpop.f32.mrb[0].mxu0
    %v1208 = vadd.f32 0.0, %v1207
    %v1209 = vpop.f32.mrb[0].mxu0
    %1210 = vmatprep.mubr.f32.mxu0 0.0
    %1211 = vmatmul.mubr.f32.gmra.mrb[0].mxu0 %v193
    %v1212 = vpop.f32.mrb[0].mxu0
    %v1213 = vadd.f32 0.0, %v1212
    %v1214 = vpop.f32.mrb[0].mxu0
    %1215 = vmatprep.mubr.f32.mxu0 0.0
    %1216 = vmatmul.mubr.f32.gmra.mrb[0].mxu0 %v196
    %v1217 = vpop.f32.mrb[0].mxu0
    %v1218 = vadd.f32 0.0, %v1217
    %v1219 = vpop.f32.mrb[0].mxu0
    %1220 = vmatprep.mubr.f32.mxu0 0.0
    %1221 = vmatmul.mubr.f32.gmra.mrb[0].mxu0 %v199
    %v1222 = vpop.f32.mrb[0].mxu0
    %v1223 = vadd.f32 0.0, %v1222
    %v1224 = vpop.f32.mrb[0].mxu0
    %1225 = vmatprep.mubr.f32.mxu0 0.0
    %1226 = vmatmul.mubr.f32.gmra.mrb[0].mxu0 %v202
    %v1227 = vpop.f32.mrb[0].mxu0
    %v1228 = vadd.f32 0.0, %v1227
    %v1229 = vpop.f32.mrb[0].mxu0
    %1230 = vmatprep.mubr.f32.mxu0 0.0
    %1231 = vmatmul.mubr.f32.gmra.mrb[0].mxu0 %v205
    %v1232 = vpop.f32.mrb[0].mxu0
    %v1233 = vadd.f32 0.0, %v1232
    %v1234 = vpop.f32.mrb[0].mxu0
    %1235 = vmatprep.mubr.f32.mxu0 0.0
    %1236 = vmatmul.mubr.f32.gmra.mrb[0].mxu0 %v208
    %v1237 = vpop.f32.mrb[0].mxu0
    %v1238 = vadd.f32 0.0, %v1237
    %v1239 = vpop.f32.mrb[0].mxu0
    %1240 = vmatprep.mubr.f32.mxu0 0.0
    %1241 = vmatmul.mubr.f32.gmra.mrb[0].mxu0 %v211
    %v1242 = vpop.f32.mrb[0].mxu0
    %v1243 = vadd.f32 0.0, %v1242
    %v1244 = vpop.f32.mrb[0].mxu0
    %1245 = vmatprep.mubr.f32.mxu0 0.0
    %1246 = vmatmul.mubr.f32.gmra.mrb[0].mxu0 %v214
    %v1247 = vpop.f32.mrb[0].mxu0
    %v1248 = vadd.f32 0.0, %v1247
    %v1249 = vpop.f32.mrb[0].mxu0
    %1250 = vmatprep.mubr.f32.mxu0 0.0
    %1251 = vmatmul.mubr.f32.gmra.mrb[0].mxu0 %v217
    %v1252 = vpop.f32.mrb[0].mxu0
    %v1253 = vadd.f32 0.0, %v1252
    %v1254 = vpop.f32.mrb[0].mxu0
    %1255 = vmatprep.mubr.f32.mxu0 0.0
    %1256 = vmatmul.mubr.f32.gmra.mrb[0].mxu0 %v220
    %v1257 = vpop.f32.mrb[0].mxu0
    %v1258 = vadd.f32 0.0, %v1257
    %v1259 = vpop.f32.mrb[0].mxu0
    %1260 = vmatprep.mubr.f32.mxu0 0.0
    %1261 = vmatmul.mubr.f32.gmra.mrb[0].mxu0 %v223
    %v1262 = vpop.f32.mrb[0].mxu0
    %v1263 = vadd.f32 0.0, %v1262
    %v1264 = vpop.f32.mrb[0].mxu0
    %1265 = vmatprep.mubr.f32.mxu0 0.0
    %1266 = vmatmul.mubr.f32.gmra.mrb[0].mxu0 %v226
    %v1267 = vpop.f32.mrb[0].mxu0
    %v1268 = vadd.f32 0.0, %v1267
    %v1269 = vpop.f32.mrb[0].mxu0
    %1270 = vmatprep.mubr.f32.mxu0 0.0
    %1271 = vmatmul.mubr.f32.gmra.mrb[0].mxu0 %v229
    %v1272 = vpop.f32.mrb[0].mxu0
    %v1273 = vadd.f32 0.0, %v1272
    %v1274 = vpop.f32.mrb[0].mxu0
    %1275 = vdwg.mxu0
    %v1276 = vadd.f32 %v1019, %v1118
    %v1277 = vadd.f32 %v1020, %v1123
    %v1278 = vadd.f32 %v1021, %v1128
    %v1279 = vadd.f32 %v1022, %v1133
    %v1280 = vadd.f32 %v1023, %v1138
    %v1281 = vadd.f32 %v1024, %v1143
    %v1282 = vadd.f32 %v1025, %v1148
    %v1283 = vadd.f32 %v1026, %v1153
    %v1284 = vadd.f32 %v1027, %v1158
    %v1285 = vadd.f32 %v1028, %v1163
    %v1286 = vadd.f32 %v1029, %v1168
    %v1287 = vadd.f32 %v1030, %v1173
    %v1288 = vadd.f32 %v1031, %v1178
    %v1289 = vadd.f32 %v1032, %v1183
    %v1290 = vadd.f32 %v1033, %v1188
    %v1291 = vadd.f32 %v1034, %v1193
    %v1292 = vadd.f32 %v1035, %v1198
    %v1293 = vadd.f32 %v1036, %v1203
    %v1294 = vadd.f32 %v1037, %v1208
    %v1295 = vadd.f32 %v1038, %v1213
    %v1296 = vadd.f32 %v1039, %v1218
    %v1297 = vadd.f32 %v1040, %v1223
    %v1298 = vadd.f32 %v1041, %v1228
    %v1299 = vadd.f32 %v1042, %v1233
    %v1300 = vadd.f32 %v1043, %v1238
    %v1301 = vadd.f32 %v1044, %v1243
    %v1302 = vadd.f32 %v1045, %v1248
    %v1303 = vadd.f32 %v1046, %v1253
    %v1304 = vadd.f32 %v1047, %v1258
    %v1305 = vadd.f32 %v1048, %v1263
    %v1306 = vadd.f32 %v1049, %v1268
    %v1307 = vadd.f32 %v1050, %v1273
    %v1308 = vtanh.pop %v1276
    %v1309 = vtanh.pop %v1277
    %v1310 = vtanh.pop %v1278
    %v1311 = vtanh.pop %v1279
    %v1312 = vtanh.pop %v1280
    %v1313 = vtanh.pop %v1281
    %v1314 = vtanh.pop %v1282
    %v1315 = vtanh.pop %v1283
    %v1316 = vtanh.pop %v1284
    %v1317 = vtanh.pop %v1285
    %v1318 = vtanh.pop %v1286
    %v1319 = vtanh.pop %v1287
    %v1320 = vtanh.pop %v1288
    %v1321 = vtanh.pop %v1289
    %v1322 = vtanh.pop %v1290
    %v1323 = vtanh.pop %v1291
    %v1324 = vtanh.pop %v1292
    %v1325 = vtanh.pop %v1293
    %v1326 = vtanh.pop %v1294
    %v1327 = vtanh.pop %v1295
    %v1328 = vtanh.pop %v1296
    %v1329 = vtanh.pop %v1297
    %v1330 = vtanh.pop %v1298
    %v1331 = vtanh.pop %v1299
    %v1332 = vtanh.pop %v1300
    %v1333 = vtanh.pop %v1301
    %v1334 = vtanh.pop %v1302
    %v1335 = vtanh.pop %v1303
    %v1336 = vtanh.pop %v1304
    %v1337 = vtanh.pop %v1305
    %v1338 = vtanh.pop %v1306
    %v1339 = vtanh.pop %v1307
    %v1340 = vmul.f32 %v1308, 0.5
    %v1341 = vmul.f32 %v1309, 0.5
    %v1342 = vmul.f32 %v1310, 0.5
    %v1343 = vmul.f32 %v1311, 0.5
    %v1344 = vmul.f32 %v1312, 0.5
    %v1345 = vmul.f32 %v1313, 0.5
    %v1346 = vmul.f32 %v1314, 0.5
    %v1347 = vmul.f32 %v1315, 0.5
    %v1348 = vadd.f32 %v1340, 0.5
    %v1349 = vadd.f32 %v1341, 0.5
    %v1350 = vadd.f32 %v1342, 0.5
    %v1351 = vadd.f32 %v1343, 0.5
    %v1352 = vadd.f32 %v1344, 0.5
    %v1353 = vadd.f32 %v1345, 0.5
    %v1354 = vadd.f32 %v1346, 0.5
    %v1355 = vadd.f32 %v1347, 0.5
    %v1356 = vmul.f32 %v1316, 0.5
    %v1357 = vmul.f32 %v1317, 0.5
    %v1358 = vmul.f32 %v1318, 0.5
    %v1359 = vmul.f32 %v1319, 0.5
    %v1360 = vmul.f32 %v1320, 0.5
    %v1361 = vmul.f32 %v1321, 0.5
    %v1362 = vmul.f32 %v1322, 0.5
    %v1363 = vmul.f32 %v1323, 0.5
    %v1364 = vadd.f32 %v1356, 0.5
    %v1365 = vadd.f32 %v1357, 0.5
    %v1366 = vadd.f32 %v1358, 0.5
    %v1367 = vadd.f32 %v1359, 0.5
    %v1368 = vadd.f32 %v1360, 0.5
    %v1369 = vadd.f32 %v1361, 0.5
    %v1370 = vadd.f32 %v1362, 0.5
    %v1371 = vadd.f32 %v1363, 0.5
    %v1372 = vmul.f32 %v1332, 0.5
    %v1373 = vmul.f32 %v1333, 0.5
    %v1374 = vmul.f32 %v1334, 0.5
    %v1375 = vmul.f32 %v1335, 0.5
    %v1376 = vmul.f32 %v1336, 0.5
    %v1377 = vmul.f32 %v1337, 0.5
    %v1378 = vmul.f32 %v1338, 0.5
    %v1379 = vmul.f32 %v1339, 0.5
    %v1380 = vadd.f32 %v1372, 0.5
    %v1381 = vadd.f32 %v1373, 0.5
    %v1382 = vadd.f32 %v1374, 0.5
    %v1383 = vadd.f32 %v1375, 0.5
    %v1384 = vadd.f32 %v1376, 0.5
    %v1385 = vadd.f32 %v1377, 0.5
    %v1386 = vadd.f32 %v1378, 0.5
    %v1387 = vadd.f32 %v1379, 0.5
    %v1388 = vmul.f32 %v1364, %v994
    %v1389 = vmul.f32 %v1365, %v995
    %v1390 = vmul.f32 %v1366, %v996
    %v1391 = vmul.f32 %v1367, %v997
    %v1392 = vmul.f32 %v1368, %v998
    %v1393 = vmul.f32 %v1369, %v999
    %v1394 = vmul.f32 %v1370, %v1000
    %v1395 = vmul.f32 %v1371, %v1001
    %v1396 = vmul.f32 %v1348, %v1324
    %v1397 = vmul.f32 %v1349, %v1325
    %v1398 = vmul.f32 %v1350, %v1326
    %v1399 = vmul.f32 %v1351, %v1327
    %v1400 = vmul.f32 %v1352, %v1328
    %v1401 = vmul.f32 %v1353, %v1329
    %v1402 = vmul.f32 %v1354, %v1330
    %v1403 = vmul.f32 %v1355, %v1331
    %v1404 = vadd.f32 %v1388, %v1396
    %v1405 = vadd.f32 %v1389, %v1397
    %v1406 = vadd.f32 %v1390, %v1398
    %v1407 = vadd.f32 %v1391, %v1399
    %v1408 = vadd.f32 %v1392, %v1400
    %v1409 = vadd.f32 %v1393, %v1401
    %v1410 = vadd.f32 %v1394, %v1402
    %v1411 = vadd.f32 %v1395, %v1403
    %v1412 = vtanh.pop %v1404
    %v1413 = vtanh.pop %v1405
    %v1414 = vtanh.pop %v1406
    %v1415 = vtanh.pop %v1407
    %v1416 = vtanh.pop %v1408
    %v1417 = vtanh.pop %v1409
    %v1418 = vtanh.pop %v1410
    %v1419 = vtanh.pop %v1411
    %v1420 = vmul.f32 %v1380, %v1412
    %v1421 = vmul.f32 %v1381, %v1413
    %v1422 = vmul.f32 %v1382, %v1414
    %v1423 = vmul.f32 %v1383, %v1415
    %v1424 = vmul.f32 %v1384, %v1416
    %v1425 = vmul.f32 %v1385, %v1417
    %v1426 = vmul.f32 %v1386, %v1418
    %v1427 = vmul.f32 %v1387, %v1419
    %s1428 = scalar_lea.vmem [#allocation5], 768
    %v1429 = vld [vmem:[%s1428] sm:$0xff]
    %v1430 = vld [vmem:[%s1428 + $0x8] sm:$0xff]
    %v1431 = vld [vmem:[%s1428 + $0x10] sm:$0xff]
    %v1432 = vld [vmem:[%s1428 + $0x18] sm:$0xff]
    %v1433 = vld [vmem:[%s1428 + $0x20] sm:$0xff]
    %v1434 = vld [vmem:[%s1428 + $0x28] sm:$0xff]
    %v1435 = vld [vmem:[%s1428 + $0x30] sm:$0xff]
    %v1436 = vld [vmem:[%s1428 + $0x38] sm:$0xff]
    %v1437 = vld [vmem:[%s1428 + $0x40] sm:$0xff]
    %v1438 = vld [vmem:[%s1428 + $0x48] sm:$0xff]
    %v1439 = vld [vmem:[%s1428 + $0x50] sm:$0xff]
    %v1440 = vld [vmem:[%s1428 + $0x58] sm:$0xff]
    %v1441 = vld [vmem:[%s1428 + $0x60] sm:$0xff]
    %v1442 = vld [vmem:[%s1428 + $0x68] sm:$0xff]
    %v1443 = vld [vmem:[%s1428 + $0x70] sm:$0xff]
    %v1444 = vld [vmem:[%s1428 + $0x78] sm:$0xff]
    %v1445 = vld [vmem:[%s1428 + $0x80] sm:$0xff]
    %v1446 = vld [vmem:[%s1428 + $0x88] sm:$0xff]
    %v1447 = vld [vmem:[%s1428 + $0x90] sm:$0xff]
    %v1448 = vld [vmem:[%s1428 + $0x98] sm:$0xff]
    %v1449 = vld [vmem:[%s1428 + $0xa0] sm:$0xff]
    %v1450 = vld [vmem:[%s1428 + $0xa8] sm:$0xff]
    %v1451 = vld [vmem:[%s1428 + $0xb0] sm:$0xff]
    %v1452 = vld [vmem:[%s1428 + $0xb8] sm:$0xff]
    %v1453 = vld [vmem:[%s1428 + $0xc0] sm:$0xff]
    %v1454 = vld [vmem:[%s1428 + $0xc8] sm:$0xff]
    %v1455 = vld [vmem:[%s1428 + $0xd0] sm:$0xff]
    %v1456 = vld [vmem:[%s1428 + $0xd8] sm:$0xff]
    %v1457 = vld [vmem:[%s1428 + $0xe0] sm:$0xff]
    %v1458 = vld [vmem:[%s1428 + $0xe8] sm:$0xff]
    %v1459 = vld [vmem:[%s1428 + $0xf0] sm:$0xff]
    %v1460 = vld [vmem:[%s1428 + $0xf8] sm:$0xff]
    %1461 = vmatprep.subr.mxu0 0.0
    %1462 = vmatpush1.msra.mxu0 %v1420
    %1463 = vmatprep.subr.mxu0 0.0
    %1464 = vmatpush1.msra.mxu0 %v1421
    %1465 = vmatprep.subr.mxu0 0.0
    %1466 = vmatpush1.msra.mxu0 %v1422
    %1467 = vmatprep.subr.mxu0 0.0
    %1468 = vmatpush1.msra.mxu0 %v1423
    %1469 = vmatprep.subr.mxu0 0.0
    %1470 = vmatpush1.msra.mxu0 %v1424
    %1471 = vmatprep.subr.mxu0 0.0
    %1472 = vmatpush1.msra.mxu0 %v1425
    %1473 = vmatprep.subr.mxu0 0.0
    %1474 = vmatpush1.msra.mxu0 %v1426
    %1475 = vmatprep.subr.mxu0 0.0
    %1476 = vmatpush1.msra.mxu0 %v1427
    %1477 = vmatprep.subr.mxu0 0.0
    %1478 = vmatpush1.msra.mxu0 0.0
    %1479 = vmatprep.subr.mxu0 0.0
    %1480 = vmatpush1.msra.mxu0 0.0
    %1481 = vmatprep.subr.mxu0 0.0
    %1482 = vmatpush1.msra.mxu0 0.0
    %1483 = vmatprep.subr.mxu0 0.0
    %1484 = vmatpush1.msra.mxu0 0.0
    %1485 = vmatprep.subr.mxu0 0.0
    %1486 = vmatpush1.msra.mxu0 0.0
    %1487 = vmatprep.subr.mxu0 0.0
    %1488 = vmatpush1.msra.mxu0 0.0
    %1489 = vmatprep.subr.mxu0 0.0
    %1490 = vmatpush1.msra.mxu0 0.0
    %1491 = vmatprep.subr.mxu0 0.0
    %1492 = vmatpush1.msra.mxu0 0.0
    %1493 = vmatprep.subr.mxu0 0.0
    %1494 = vmatpush1.msra.mxu0 0.0
    %1495 = vmatprep.subr.mxu0 0.0
    %1496 = vmatpush1.msra.mxu0 0.0
    %1497 = vmatprep.subr.mxu0 0.0
    %1498 = vmatpush1.msra.mxu0 0.0
    %1499 = vmatprep.subr.mxu0 0.0
    %1500 = vmatpush1.msra.mxu0 0.0
    %1501 = vmatprep.subr.mxu0 0.0
    %1502 = vmatpush1.msra.mxu0 0.0
    %1503 = vmatprep.subr.mxu0 0.0
    %1504 = vmatpush1.msra.mxu0 0.0
    %1505 = vmatprep.subr.mxu0 0.0
    %1506 = vmatpush1.msra.mxu0 0.0
    %1507 = vmatprep.subr.mxu0 0.0
    %1508 = vmatpush1.msra.mxu0 0.0
    %1509 = vmatprep.subr.mxu0 0.0
    %1510 = vmatpush1.msra.mxu0 0.0
    %1511 = vmatprep.subr.mxu0 0.0
    %1512 = vmatpush1.msra.mxu0 0.0
    %1513 = vmatprep.subr.mxu0 0.0
    %1514 = vmatpush1.msra.mxu0 0.0
    %1515 = vmatprep.subr.mxu0 0.0
    %1516 = vmatpush1.msra.mxu0 0.0
    %1517 = vmatprep.subr.mxu0 0.0
    %1518 = vmatpush1.msra.mxu0 0.0
    %1519 = vmatprep.subr.mxu0 0.0
    %1520 = vmatpush1.msra.mxu0 0.0
    %1521 = vmatprep.subr.mxu0 0.0
    %1522 = vmatpush1.msra.mxu0 0.0
    %1523 = vmatprep.subr.mxu0 0.0
    %1524 = vmatpush1.msra.mxu0 0.0
    %1525 = vmatprep.mubr.f32.mxu0 0.0
    %1526 = vmatmul.mubr.f32.gmra.mrb[0].mxu0 %v136
    %v1527 = vpop.f32.mrb[0].mxu0
    %v1528 = vadd.f32 0.0, %v1527
    %v1529 = vpop.f32.mrb[0].mxu0
    %1530 = vmatprep.mubr.f32.mxu0 0.0
    %1531 = vmatmul.mubr.f32.gmra.mrb[0].mxu0 %v139
    %v1532 = vpop.f32.mrb[0].mxu0
    %v1533 = vadd.f32 0.0, %v1532
    %v1534 = vpop.f32.mrb[0].mxu0
    %1535 = vmatprep.mubr.f32.mxu0 0.0
    %1536 = vmatmul.mubr.f32.gmra.mrb[0].mxu0 %v142
    %v1537 = vpop.f32.mrb[0].mxu0
    %v1538 = vadd.f32 0.0, %v1537
    %v1539 = vpop.f32.mrb[0].mxu0
    %1540 = vmatprep.mubr.f32.mxu0 0.0
    %1541 = vmatmul.mubr.f32.gmra.mrb[0].mxu0 %v145
    %v1542 = vpop.f32.mrb[0].mxu0
    %v1543 = vadd.f32 0.0, %v1542
    %v1544 = vpop.f32.mrb[0].mxu0
    %1545 = vmatprep.mubr.f32.mxu0 0.0
    %1546 = vmatmul.mubr.f32.gmra.mrb[0].mxu0 %v148
    %v1547 = vpop.f32.mrb[0].mxu0
    %v1548 = vadd.f32 0.0, %v1547
    %v1549 = vpop.f32.mrb[0].mxu0
    %1550 = vmatprep.mubr.f32.mxu0 0.0
    %1551 = vmatmul.mubr.f32.gmra.mrb[0].mxu0 %v151
    %v1552 = vpop.f32.mrb[0].mxu0
    %v1553 = vadd.f32 0.0, %v1552
    %v1554 = vpop.f32.mrb[0].mxu0
    %1555 = vmatprep.mubr.f32.mxu0 0.0
    %1556 = vmatmul.mubr.f32.gmra.mrb[0].mxu0 %v154
    %v1557 = vpop.f32.mrb[0].mxu0
    %v1558 = vadd.f32 0.0, %v1557
    %v1559 = vpop.f32.mrb[0].mxu0
    %1560 = vmatprep.mubr.f32.mxu0 0.0
    %1561 = vmatmul.mubr.f32.gmra.mrb[0].mxu0 %v157
    %v1562 = vpop.f32.mrb[0].mxu0
    %v1563 = vadd.f32 0.0, %v1562
    %v1564 = vpop.f32.mrb[0].mxu0
    %1565 = vmatprep.mubr.f32.mxu0 0.0
    %1566 = vmatmul.mubr.f32.gmra.mrb[0].mxu0 %v160
    %v1567 = vpop.f32.mrb[0].mxu0
    %v1568 = vadd.f32 0.0, %v1567
    %v1569 = vpop.f32.mrb[0].mxu0
    %1570 = vmatprep.mubr.f32.mxu0 0.0
    %1571 = vmatmul.mubr.f32.gmra.mrb[0].mxu0 %v163
    %v1572 = vpop.f32.mrb[0].mxu0
    %v1573 = vadd.f32 0.0, %v1572
    %v1574 = vpop.f32.mrb[0].mxu0
    %1575 = vmatprep.mubr.f32.mxu0 0.0
    %1576 = vmatmul.mubr.f32.gmra.mrb[0].mxu0 %v166
    %v1577 = vpop.f32.mrb[0].mxu0
    %v1578 = vadd.f32 0.0, %v1577
    %v1579 = vpop.f32.mrb[0].mxu0
    %1580 = vmatprep.mubr.f32.mxu0 0.0
    %1581 = vmatmul.mubr.f32.gmra.mrb[0].mxu0 %v169
    %v1582 = vpop.f32.mrb[0].mxu0
    %v1583 = vadd.f32 0.0, %v1582
    %v1584 = vpop.f32.mrb[0].mxu0
    %1585 = vmatprep.mubr.f32.mxu0 0.0
    %1586 = vmatmul.mubr.f32.gmra.mrb[0].mxu0 %v172
    %v1587 = vpop.f32.mrb[0].mxu0
    %v1588 = vadd.f32 0.0, %v1587
    %v1589 = vpop.f32.mrb[0].mxu0
    %1590 = vmatprep.mubr.f32.mxu0 0.0
    %1591 = vmatmul.mubr.f32.gmra.mrb[0].mxu0 %v175
    %v1592 = vpop.f32.mrb[0].mxu0
    %v1593 = vadd.f32 0.0, %v1592
    %v1594 = vpop.f32.mrb[0].mxu0
    %1595 = vmatprep.mubr.f32.mxu0 0.0
    %1596 = vmatmul.mubr.f32.gmra.mrb[0].mxu0 %v178
    %v1597 = vpop.f32.mrb[0].mxu0
    %v1598 = vadd.f32 0.0, %v1597
    %v1599 = vpop.f32.mrb[0].mxu0
    %1600 = vmatprep.mubr.f32.mxu0 0.0
    %1601 = vmatmul.mubr.f32.gmra.mrb[0].mxu0 %v181
    %v1602 = vpop.f32.mrb[0].mxu0
    %v1603 = vadd.f32 0.0, %v1602
    %v1604 = vpop.f32.mrb[0].mxu0
    %1605 = vmatprep.mubr.f32.mxu0 0.0
    %1606 = vmatmul.mubr.f32.gmra.mrb[0].mxu0 %v184
    %v1607 = vpop.f32.mrb[0].mxu0
    %v1608 = vadd.f32 0.0, %v1607
    %v1609 = vpop.f32.mrb[0].mxu0
    %1610 = vmatprep.mubr.f32.mxu0 0.0
    %1611 = vmatmul.mubr.f32.gmra.mrb[0].mxu0 %v187
    %v1612 = vpop.f32.mrb[0].mxu0
    %v1613 = vadd.f32 0.0, %v1612
    %v1614 = vpop.f32.mrb[0].mxu0
    %1615 = vmatprep.mubr.f32.mxu0 0.0
    %1616 = vmatmul.mubr.f32.gmra.mrb[0].mxu0 %v190
    %v1617 = vpop.f32.mrb[0].mxu0
    %v1618 = vadd.f32 0.0, %v1617
    %v1619 = vpop.f32.mrb[0].mxu0
    %1620 = vmatprep.mubr.f32.mxu0 0.0
    %1621 = vmatmul.mubr.f32.gmra.mrb[0].mxu0 %v193
    %v1622 = vpop.f32.mrb[0].mxu0
    %v1623 = vadd.f32 0.0, %v1622
    %v1624 = vpop.f32.mrb[0].mxu0
    %1625 = vmatprep.mubr.f32.mxu0 0.0
    %1626 = vmatmul.mubr.f32.gmra.mrb[0].mxu0 %v196
    %v1627 = vpop.f32.mrb[0].mxu0
    %v1628 = vadd.f32 0.0, %v1627
    %v1629 = vpop.f32.mrb[0].mxu0
    %1630 = vmatprep.mubr.f32.mxu0 0.0
    %1631 = vmatmul.mubr.f32.gmra.mrb[0].mxu0 %v199
    %v1632 = vpop.f32.mrb[0].mxu0
    %v1633 = vadd.f32 0.0, %v1632
    %v1634 = vpop.f32.mrb[0].mxu0
    %1635 = vmatprep.mubr.f32.mxu0 0.0
    %1636 = vmatmul.mubr.f32.gmra.mrb[0].mxu0 %v202
    %v1637 = vpop.f32.mrb[0].mxu0
    %v1638 = vadd.f32 0.0, %v1637
    %v1639 = vpop.f32.mrb[0].mxu0
    %1640 = vmatprep.mubr.f32.mxu0 0.0
    %1641 = vmatmul.mubr.f32.gmra.mrb[0].mxu0 %v205
    %v1642 = vpop.f32.mrb[0].mxu0
    %v1643 = vadd.f32 0.0, %v1642
    %v1644 = vpop.f32.mrb[0].mxu0
    %1645 = vmatprep.mubr.f32.mxu0 0.0
    %1646 = vmatmul.mubr.f32.gmra.mrb[0].mxu0 %v208
    %v1647 = vpop.f32.mrb[0].mxu0
    %v1648 = vadd.f32 0.0, %v1647
    %v1649 = vpop.f32.mrb[0].mxu0
    %1650 = vmatprep.mubr.f32.mxu0 0.0
    %1651 = vmatmul.mubr.f32.gmra.mrb[0].mxu0 %v211
    %v1652 = vpop.f32.mrb[0].mxu0
    %v1653 = vadd.f32 0.0, %v1652
    %v1654 = vpop.f32.mrb[0].mxu0
    %1655 = vmatprep.mubr.f32.mxu0 0.0
    %1656 = vmatmul.mubr.f32.gmra.mrb[0].mxu0 %v214
    %v1657 = vpop.f32.mrb[0].mxu0
    %v1658 = vadd.f32 0.0, %v1657
    %v1659 = vpop.f32.mrb[0].mxu0
    %1660 = vmatprep.mubr.f32.mxu0 0.0
    %1661 = vmatmul.mubr.f32.gmra.mrb[0].mxu0 %v217
    %v1662 = vpop.f32.mrb[0].mxu0
    %v1663 = vadd.f32 0.0, %v1662
    %v1664 = vpop.f32.mrb[0].mxu0
    %1665 = vmatprep.mubr.f32.mxu0 0.0
    %1666 = vmatmul.mubr.f32.gmra.mrb[0].mxu0 %v220
    %v1667 = vpop.f32.mrb[0].mxu0
    %v1668 = vadd.f32 0.0, %v1667
    %v1669 = vpop.f32.mrb[0].mxu0
    %1670 = vmatprep.mubr.f32.mxu0 0.0
    %1671 = vmatmul.mubr.f32.gmra.mrb[0].mxu0 %v223
    %v1672 = vpop.f32.mrb[0].mxu0
    %v1673 = vadd.f32 0.0, %v1672
    %v1674 = vpop.f32.mrb[0].mxu0
    %1675 = vmatprep.mubr.f32.mxu0 0.0
    %1676 = vmatmul.mubr.f32.gmra.mrb[0].mxu0 %v226
    %v1677 = vpop.f32.mrb[0].mxu0
    %v1678 = vadd.f32 0.0, %v1677
    %v1679 = vpop.f32.mrb[0].mxu0
    %1680 = vmatprep.mubr.f32.mxu0 0.0
    %1681 = vmatmul.mubr.f32.gmra.mrb[0].mxu0 %v229
    %v1682 = vpop.f32.mrb[0].mxu0
    %v1683 = vadd.f32 0.0, %v1682
    %v1684 = vpop.f32.mrb[0].mxu0
    %1685 = vdwg.mxu0
    %v1686 = vadd.f32 %v1429, %v1528
    %v1687 = vadd.f32 %v1430, %v1533
    %v1688 = vadd.f32 %v1431, %v1538
    %v1689 = vadd.f32 %v1432, %v1543
    %v1690 = vadd.f32 %v1433, %v1548
    %v1691 = vadd.f32 %v1434, %v1553
    %v1692 = vadd.f32 %v1435, %v1558
    %v1693 = vadd.f32 %v1436, %v1563
    %v1694 = vadd.f32 %v1437, %v1568
    %v1695 = vadd.f32 %v1438, %v1573
    %v1696 = vadd.f32 %v1439, %v1578
    %v1697 = vadd.f32 %v1440, %v1583
    %v1698 = vadd.f32 %v1441, %v1588
    %v1699 = vadd.f32 %v1442, %v1593
    %v1700 = vadd.f32 %v1443, %v1598
    %v1701 = vadd.f32 %v1444, %v1603
    %v1702 = vadd.f32 %v1445, %v1608
    %v1703 = vadd.f32 %v1446, %v1613
    %v1704 = vadd.f32 %v1447, %v1618
    %v1705 = vadd.f32 %v1448, %v1623
    %v1706 = vadd.f32 %v1449, %v1628
    %v1707 = vadd.f32 %v1450, %v1633
    %v1708 = vadd.f32 %v1451, %v1638
    %v1709 = vadd.f32 %v1452, %v1643
    %v1710 = vadd.f32 %v1453, %v1648
    %v1711 = vadd.f32 %v1454, %v1653
    %v1712 = vadd.f32 %v1455, %v1658
    %v1713 = vadd.f32 %v1456, %v1663
    %v1714 = vadd.f32 %v1457, %v1668
    %v1715 = vadd.f32 %v1458, %v1673
    %v1716 = vadd.f32 %v1459, %v1678
    %v1717 = vadd.f32 %v1460, %v1683
    %v1718 = vtanh.pop %v1686
    %v1719 = vtanh.pop %v1687
    %v1720 = vtanh.pop %v1688
    %v1721 = vtanh.pop %v1689
    %v1722 = vtanh.pop %v1690
    %v1723 = vtanh.pop %v1691
    %v1724 = vtanh.pop %v1692
    %v1725 = vtanh.pop %v1693
    %v1726 = vtanh.pop %v1694
    %v1727 = vtanh.pop %v1695
    %v1728 = vtanh.pop %v1696
    %v1729 = vtanh.pop %v1697
    %v1730 = vtanh.pop %v1698
    %v1731 = vtanh.pop %v1699
    %v1732 = vtanh.pop %v1700
    %v1733 = vtanh.pop %v1701
    %v1734 = vtanh.pop %v1702
    %v1735 = vtanh.pop %v1703
    %v1736 = vtanh.pop %v1704
    %v1737 = vtanh.pop %v1705
    %v1738 = vtanh.pop %v1706
    %v1739 = vtanh.pop %v1707
    %v1740 = vtanh.pop %v1708
    %v1741 = vtanh.pop %v1709
    %v1742 = vtanh.pop %v1710
    %v1743 = vtanh.pop %v1711
    %v1744 = vtanh.pop %v1712
    %v1745 = vtanh.pop %v1713
    %v1746 = vtanh.pop %v1714
    %v1747 = vtanh.pop %v1715
    %v1748 = vtanh.pop %v1716
    %v1749 = vtanh.pop %v1717
    %v1750 = vmul.f32 %v1718, 0.5
    %v1751 = vmul.f32 %v1719, 0.5
    %v1752 = vmul.f32 %v1720, 0.5
    %v1753 = vmul.f32 %v1721, 0.5
    %v1754 = vmul.f32 %v1722, 0.5
    %v1755 = vmul.f32 %v1723, 0.5
    %v1756 = vmul.f32 %v1724, 0.5
    %v1757 = vmul.f32 %v1725, 0.5
    %v1758 = vadd.f32 %v1750, 0.5
    %v1759 = vadd.f32 %v1751, 0.5
    %v1760 = vadd.f32 %v1752, 0.5
    %v1761 = vadd.f32 %v1753, 0.5
    %v1762 = vadd.f32 %v1754, 0.5
    %v1763 = vadd.f32 %v1755, 0.5
    %v1764 = vadd.f32 %v1756, 0.5
    %v1765 = vadd.f32 %v1757, 0.5
    %v1766 = vmul.f32 %v1726, 0.5
    %v1767 = vmul.f32 %v1727, 0.5
    %v1768 = vmul.f32 %v1728, 0.5
    %v1769 = vmul.f32 %v1729, 0.5
    %v1770 = vmul.f32 %v1730, 0.5
    %v1771 = vmul.f32 %v1731, 0.5
    %v1772 = vmul.f32 %v1732, 0.5
    %v1773 = vmul.f32 %v1733, 0.5
    %v1774 = vadd.f32 %v1766, 0.5
    %v1775 = vadd.f32 %v1767, 0.5
    %v1776 = vadd.f32 %v1768, 0.5
    %v1777 = vadd.f32 %v1769, 0.5
    %v1778 = vadd.f32 %v1770, 0.5
    %v1779 = vadd.f32 %v1771, 0.5
    %v1780 = vadd.f32 %v1772, 0.5
    %v1781 = vadd.f32 %v1773, 0.5
    %v1782 = vmul.f32 %v1742, 0.5
    %v1783 = vmul.f32 %v1743, 0.5
    %v1784 = vmul.f32 %v1744, 0.5
    %v1785 = vmul.f32 %v1745, 0.5
    %v1786 = vmul.f32 %v1746, 0.5
    %v1787 = vmul.f32 %v1747, 0.5
    %v1788 = vmul.f32 %v1748, 0.5
    %v1789 = vmul.f32 %v1749, 0.5
    %v1790 = vadd.f32 %v1782, 0.5
    %v1791 = vadd.f32 %v1783, 0.5
    %v1792 = vadd.f32 %v1784, 0.5
    %v1793 = vadd.f32 %v1785, 0.5
    %v1794 = vadd.f32 %v1786, 0.5
    %v1795 = vadd.f32 %v1787, 0.5
    %v1796 = vadd.f32 %v1788, 0.5
    %v1797 = vadd.f32 %v1789, 0.5
    %v1798 = vmul.f32 %v1774, %v1404
    %v1799 = vmul.f32 %v1775, %v1405
    %v1800 = vmul.f32 %v1776, %v1406
    %v1801 = vmul.f32 %v1777, %v1407
    %v1802 = vmul.f32 %v1778, %v1408
    %v1803 = vmul.f32 %v1779, %v1409
    %v1804 = vmul.f32 %v1780, %v1410
    %v1805 = vmul.f32 %v1781, %v1411
    %v1806 = vmul.f32 %v1758, %v1734
    %v1807 = vmul.f32 %v1759, %v1735
    %v1808 = vmul.f32 %v1760, %v1736
    %v1809 = vmul.f32 %v1761, %v1737
    %v1810 = vmul.f32 %v1762, %v1738
    %v1811 = vmul.f32 %v1763, %v1739
    %v1812 = vmul.f32 %v1764, %v1740
    %v1813 = vmul.f32 %v1765, %v1741
    %v1814 = vadd.f32 %v1798, %v1806
    %v1815 = vadd.f32 %v1799, %v1807
    %v1816 = vadd.f32 %v1800, %v1808
    %v1817 = vadd.f32 %v1801, %v1809
    %v1818 = vadd.f32 %v1802, %v1810
    %v1819 = vadd.f32 %v1803, %v1811
    %v1820 = vadd.f32 %v1804, %v1812
    %v1821 = vadd.f32 %v1805, %v1813
    %v1822 = vtanh.pop %v1814
    %v1823 = vtanh.pop %v1815
    %v1824 = vtanh.pop %v1816
    %v1825 = vtanh.pop %v1817
    %v1826 = vtanh.pop %v1818
    %v1827 = vtanh.pop %v1819
    %v1828 = vtanh.pop %v1820
    %v1829 = vtanh.pop %v1821
    %v1830 = vmul.f32 %v1790, %v1822
    %v1831 = vmul.f32 %v1791, %v1823
    %v1832 = vmul.f32 %v1792, %v1824
    %v1833 = vmul.f32 %v1793, %v1825
    %v1834 = vmul.f32 %v1794, %v1826
    %v1835 = vmul.f32 %v1795, %v1827
    %v1836 = vmul.f32 %v1796, %v1828
    %v1837 = vmul.f32 %v1797, %v1829
    %s1838 = scalar_lea.vmem [#allocation5], 1024
    %v1839 = vld [vmem:[%s1838] sm:$0xff]
    %v1840 = vld [vmem:[%s1838 + $0x8] sm:$0xff]
    %v1841 = vld [vmem:[%s1838 + $0x10] sm:$0xff]
    %v1842 = vld [vmem:[%s1838 + $0x18] sm:$0xff]
    %v1843 = vld [vmem:[%s1838 + $0x20] sm:$0xff]
    %v1844 = vld [vmem:[%s1838 + $0x28] sm:$0xff]
    %v1845 = vld [vmem:[%s1838 + $0x30] sm:$0xff]
    %v1846 = vld [vmem:[%s1838 + $0x38] sm:$0xff]
    %v1847 = vld [vmem:[%s1838 + $0x40] sm:$0xff]
    %v1848 = vld [vmem:[%s1838 + $0x48] sm:$0xff]
    %v1849 = vld [vmem:[%s1838 + $0x50] sm:$0xff]
    %v1850 = vld [vmem:[%s1838 + $0x58] sm:$0xff]
    %v1851 = vld [vmem:[%s1838 + $0x60] sm:$0xff]
    %v1852 = vld [vmem:[%s1838 + $0x68] sm:$0xff]
    %v1853 = vld [vmem:[%s1838 + $0x70] sm:$0xff]
    %v1854 = vld [vmem:[%s1838 + $0x78] sm:$0xff]
    %v1855 = vld [vmem:[%s1838 + $0x80] sm:$0xff]
    %v1856 = vld [vmem:[%s1838 + $0x88] sm:$0xff]
    %v1857 = vld [vmem:[%s1838 + $0x90] sm:$0xff]
    %v1858 = vld [vmem:[%s1838 + $0x98] sm:$0xff]
    %v1859 = vld [vmem:[%s1838 + $0xa0] sm:$0xff]
    %v1860 = vld [vmem:[%s1838 + $0xa8] sm:$0xff]
    %v1861 = vld [vmem:[%s1838 + $0xb0] sm:$0xff]
    %v1862 = vld [vmem:[%s1838 + $0xb8] sm:$0xff]
    %v1863 = vld [vmem:[%s1838 + $0xc0] sm:$0xff]
    %v1864 = vld [vmem:[%s1838 + $0xc8] sm:$0xff]
    %v1865 = vld [vmem:[%s1838 + $0xd0] sm:$0xff]
    %v1866 = vld [vmem:[%s1838 + $0xd8] sm:$0xff]
    %v1867 = vld [vmem:[%s1838 + $0xe0] sm:$0xff]
    %v1868 = vld [vmem:[%s1838 + $0xe8] sm:$0xff]
    %v1869 = vld [vmem:[%s1838 + $0xf0] sm:$0xff]
    %v1870 = vld [vmem:[%s1838 + $0xf8] sm:$0xff]
    %1871 = vmatprep.subr.mxu0 0.0
    %1872 = vmatpush1.msra.mxu0 %v1830
    %1873 = vmatprep.subr.mxu0 0.0
    %1874 = vmatpush1.msra.mxu0 %v1831
    %1875 = vmatprep.subr.mxu0 0.0
    %1876 = vmatpush1.msra.mxu0 %v1832
    %1877 = vmatprep.subr.mxu0 0.0
    %1878 = vmatpush1.msra.mxu0 %v1833
    %1879 = vmatprep.subr.mxu0 0.0
    %1880 = vmatpush1.msra.mxu0 %v1834
    %1881 = vmatprep.subr.mxu0 0.0
    %1882 = vmatpush1.msra.mxu0 %v1835
    %1883 = vmatprep.subr.mxu0 0.0
    %1884 = vmatpush1.msra.mxu0 %v1836
    %1885 = vmatprep.subr.mxu0 0.0
    %1886 = vmatpush1.msra.mxu0 %v1837
    %1887 = vmatprep.subr.mxu0 0.0
    %1888 = vmatpush1.msra.mxu0 0.0
    %1889 = vmatprep.subr.mxu0 0.0
    %1890 = vmatpush1.msra.mxu0 0.0
    %1891 = vmatprep.subr.mxu0 0.0
    %1892 = vmatpush1.msra.mxu0 0.0
    %1893 = vmatprep.subr.mxu0 0.0
    %1894 = vmatpush1.msra.mxu0 0.0
    %1895 = vmatprep.subr.mxu0 0.0
    %1896 = vmatpush1.msra.mxu0 0.0
    %1897 = vmatprep.subr.mxu0 0.0
    %1898 = vmatpush1.msra.mxu0 0.0
    %1899 = vmatprep.subr.mxu0 0.0
    %1900 = vmatpush1.msra.mxu0 0.0
    %1901 = vmatprep.subr.mxu0 0.0
    %1902 = vmatpush1.msra.mxu0 0.0
    %1903 = vmatprep.subr.mxu0 0.0
    %1904 = vmatpush1.msra.mxu0 0.0
    %1905 = vmatprep.subr.mxu0 0.0
    %1906 = vmatpush1.msra.mxu0 0.0
    %1907 = vmatprep.subr.mxu0 0.0
    %1908 = vmatpush1.msra.mxu0 0.0
    %1909 = vmatprep.subr.mxu0 0.0
    %1910 = vmatpush1.msra.mxu0 0.0
    %1911 = vmatprep.subr.mxu0 0.0
    %1912 = vmatpush1.msra.mxu0 0.0
    %1913 = vmatprep.subr.mxu0 0.0
    %1914 = vmatpush1.msra.mxu0 0.0
    %1915 = vmatprep.subr.mxu0 0.0
    %1916 = vmatpush1.msra.mxu0 0.0
    %1917 = vmatprep.subr.mxu0 0.0
    %1918 = vmatpush1.msra.mxu0 0.0
    %1919 = vmatprep.subr.mxu0 0.0
    %1920 = vmatpush1.msra.mxu0 0.0
    %1921 = vmatprep.subr.mxu0 0.0
    %1922 = vmatpush1.msra.mxu0 0.0
    %1923 = vmatprep.subr.mxu0 0.0
    %1924 = vmatpush1.msra.mxu0 0.0
    %1925 = vmatprep.subr.mxu0 0.0
    %1926 = vmatpush1.msra.mxu0 0.0
    %1927 = vmatprep.subr.mxu0 0.0
    %1928 = vmatpush1.msra.mxu0 0.0
    %1929 = vmatprep.subr.mxu0 0.0
    %1930 = vmatpush1.msra.mxu0 0.0
    %1931 = vmatprep.subr.mxu0 0.0
    %1932 = vmatpush1.msra.mxu0 0.0
    %1933 = vmatprep.subr.mxu0 0.0
    %1934 = vmatpush1.msra.mxu0 0.0
    %1935 = vmatprep.mubr.f32.mxu0 0.0
    %1936 = vmatmul.mubr.f32.gmra.mrb[0].mxu0 %v136
    %v1937 = vpop.f32.mrb[0].mxu0
    %v1938 = vadd.f32 0.0, %v1937
    %v1939 = vpop.f32.mrb[0].mxu0
    %1940 = vmatprep.mubr.f32.mxu0 0.0
    %1941 = vmatmul.mubr.f32.gmra.mrb[0].mxu0 %v139
    %v1942 = vpop.f32.mrb[0].mxu0
    %v1943 = vadd.f32 0.0, %v1942
    %v1944 = vpop.f32.mrb[0].mxu0
    %1945 = vmatprep.mubr.f32.mxu0 0.0
    %1946 = vmatmul.mubr.f32.gmra.mrb[0].mxu0 %v142
    %v1947 = vpop.f32.mrb[0].mxu0
    %v1948 = vadd.f32 0.0, %v1947
    %v1949 = vpop.f32.mrb[0].mxu0
    %1950 = vmatprep.mubr.f32.mxu0 0.0
    %1951 = vmatmul.mubr.f32.gmra.mrb[0].mxu0 %v145
    %v1952 = vpop.f32.mrb[0].mxu0
    %v1953 = vadd.f32 0.0, %v1952
    %v1954 = vpop.f32.mrb[0].mxu0
    %1955 = vmatprep.mubr.f32.mxu0 0.0
    %1956 = vmatmul.mubr.f32.gmra.mrb[0].mxu0 %v148
    %v1957 = vpop.f32.mrb[0].mxu0
    %v1958 = vadd.f32 0.0, %v1957
    %v1959 = vpop.f32.mrb[0].mxu0
    %1960 = vmatprep.mubr.f32.mxu0 0.0
    %1961 = vmatmul.mubr.f32.gmra.mrb[0].mxu0 %v151
    %v1962 = vpop.f32.mrb[0].mxu0
    %v1963 = vadd.f32 0.0, %v1962
    %v1964 = vpop.f32.mrb[0].mxu0
    %1965 = vmatprep.mubr.f32.mxu0 0.0
    %1966 = vmatmul.mubr.f32.gmra.mrb[0].mxu0 %v154
    %v1967 = vpop.f32.mrb[0].mxu0
    %v1968 = vadd.f32 0.0, %v1967
    %v1969 = vpop.f32.mrb[0].mxu0
    %1970 = vmatprep.mubr.f32.mxu0 0.0
    %1971 = vmatmul.mubr.f32.gmra.mrb[0].mxu0 %v157
    %v1972 = vpop.f32.mrb[0].mxu0
    %v1973 = vadd.f32 0.0, %v1972
    %v1974 = vpop.f32.mrb[0].mxu0
    %1975 = vmatprep.mubr.f32.mxu0 0.0
    %1976 = vmatmul.mubr.f32.gmra.mrb[0].mxu0 %v160
    %v1977 = vpop.f32.mrb[0].mxu0
    %v1978 = vadd.f32 0.0, %v1977
    %v1979 = vpop.f32.mrb[0].mxu0
    %1980 = vmatprep.mubr.f32.mxu0 0.0
    %1981 = vmatmul.mubr.f32.gmra.mrb[0].mxu0 %v163
    %v1982 = vpop.f32.mrb[0].mxu0
    %v1983 = vadd.f32 0.0, %v1982
    %v1984 = vpop.f32.mrb[0].mxu0
    %1985 = vmatprep.mubr.f32.mxu0 0.0
    %1986 = vmatmul.mubr.f32.gmra.mrb[0].mxu0 %v166
    %v1987 = vpop.f32.mrb[0].mxu0
    %v1988 = vadd.f32 0.0, %v1987
    %v1989 = vpop.f32.mrb[0].mxu0
    %1990 = vmatprep.mubr.f32.mxu0 0.0
    %1991 = vmatmul.mubr.f32.gmra.mrb[0].mxu0 %v169
    %v1992 = vpop.f32.mrb[0].mxu0
    %v1993 = vadd.f32 0.0, %v1992
    %v1994 = vpop.f32.mrb[0].mxu0
    %1995 = vmatprep.mubr.f32.mxu0 0.0
    %1996 = vmatmul.mubr.f32.gmra.mrb[0].mxu0 %v172
    %v1997 = vpop.f32.mrb[0].mxu0
    %v1998 = vadd.f32 0.0, %v1997
    %v1999 = vpop.f32.mrb[0].mxu0
    %2000 = vmatprep.mubr.f32.mxu0 0.0
    %2001 = vmatmul.mubr.f32.gmra.mrb[0].mxu0 %v175
    %v2002 = vpop.f32.mrb[0].mxu0
    %v2003 = vadd.f32 0.0, %v2002
    %v2004 = vpop.f32.mrb[0].mxu0
    %2005 = vmatprep.mubr.f32.mxu0 0.0
    %2006 = vmatmul.mubr.f32.gmra.mrb[0].mxu0 %v178
    %v2007 = vpop.f32.mrb[0].mxu0
    %v2008 = vadd.f32 0.0, %v2007
    %v2009 = vpop.f32.mrb[0].mxu0
    %2010 = vmatprep.mubr.f32.mxu0 0.0
    %2011 = vmatmul.mubr.f32.gmra.mrb[0].mxu0 %v181
    %v2012 = vpop.f32.mrb[0].mxu0
    %v2013 = vadd.f32 0.0, %v2012
    %v2014 = vpop.f32.mrb[0].mxu0
    %2015 = vmatprep.mubr.f32.mxu0 0.0
    %2016 = vmatmul.mubr.f32.gmra.mrb[0].mxu0 %v184
    %v2017 = vpop.f32.mrb[0].mxu0
    %v2018 = vadd.f32 0.0, %v2017
    %v2019 = vpop.f32.mrb[0].mxu0
    %2020 = vmatprep.mubr.f32.mxu0 0.0
    %2021 = vmatmul.mubr.f32.gmra.mrb[0].mxu0 %v187
    %v2022 = vpop.f32.mrb[0].mxu0
    %v2023 = vadd.f32 0.0, %v2022
    %v2024 = vpop.f32.mrb[0].mxu0
    %2025 = vmatprep.mubr.f32.mxu0 0.0
    %2026 = vmatmul.mubr.f32.gmra.mrb[0].mxu0 %v190
    %v2027 = vpop.f32.mrb[0].mxu0
    %v2028 = vadd.f32 0.0, %v2027
    %v2029 = vpop.f32.mrb[0].mxu0
    %2030 = vmatprep.mubr.f32.mxu0 0.0
    %2031 = vmatmul.mubr.f32.gmra.mrb[0].mxu0 %v193
    %v2032 = vpop.f32.mrb[0].mxu0
    %v2033 = vadd.f32 0.0, %v2032
    %v2034 = vpop.f32.mrb[0].mxu0
    %2035 = vmatprep.mubr.f32.mxu0 0.0
    %2036 = vmatmul.mubr.f32.gmra.mrb[0].mxu0 %v196
    %v2037 = vpop.f32.mrb[0].mxu0
    %v2038 = vadd.f32 0.0, %v2037
    %v2039 = vpop.f32.mrb[0].mxu0
    %2040 = vmatprep.mubr.f32.mxu0 0.0
    %2041 = vmatmul.mubr.f32.gmra.mrb[0].mxu0 %v199
    %v2042 = vpop.f32.mrb[0].mxu0
    %v2043 = vadd.f32 0.0, %v2042
    %v2044 = vpop.f32.mrb[0].mxu0
    %2045 = vmatprep.mubr.f32.mxu0 0.0
    %2046 = vmatmul.mubr.f32.gmra.mrb[0].mxu0 %v202
    %v2047 = vpop.f32.mrb[0].mxu0
    %v2048 = vadd.f32 0.0, %v2047
    %v2049 = vpop.f32.mrb[0].mxu0
    %2050 = vmatprep.mubr.f32.mxu0 0.0
    %2051 = vmatmul.mubr.f32.gmra.mrb[0].mxu0 %v205
    %v2052 = vpop.f32.mrb[0].mxu0
    %v2053 = vadd.f32 0.0, %v2052
    %v2054 = vpop.f32.mrb[0].mxu0
    %2055 = vmatprep.mubr.f32.mxu0 0.0
    %2056 = vmatmul.mubr.f32.gmra.mrb[0].mxu0 %v208
    %v2057 = vpop.f32.mrb[0].mxu0
    %v2058 = vadd.f32 0.0, %v2057
    %v2059 = vpop.f32.mrb[0].mxu0
    %2060 = vmatprep.mubr.f32.mxu0 0.0
    %2061 = vmatmul.mubr.f32.gmra.mrb[0].mxu0 %v211
    %v2062 = vpop.f32.mrb[0].mxu0
    %v2063 = vadd.f32 0.0, %v2062
    %v2064 = vpop.f32.mrb[0].mxu0
    %2065 = vmatprep.mubr.f32.mxu0 0.0
    %2066 = vmatmul.mubr.f32.gmra.mrb[0].mxu0 %v214
    %v2067 = vpop.f32.mrb[0].mxu0
    %v2068 = vadd.f32 0.0, %v2067
    %v2069 = vpop.f32.mrb[0].mxu0
    %2070 = vmatprep.mubr.f32.mxu0 0.0
    %2071 = vmatmul.mubr.f32.gmra.mrb[0].mxu0 %v217
    %v2072 = vpop.f32.mrb[0].mxu0
    %v2073 = vadd.f32 0.0, %v2072
    %v2074 = vpop.f32.mrb[0].mxu0
    %2075 = vmatprep.mubr.f32.mxu0 0.0
    %2076 = vmatmul.mubr.f32.gmra.mrb[0].mxu0 %v220
    %v2077 = vpop.f32.mrb[0].mxu0
    %v2078 = vadd.f32 0.0, %v2077
    %v2079 = vpop.f32.mrb[0].mxu0
    %2080 = vmatprep.mubr.f32.mxu0 0.0
    %2081 = vmatmul.mubr.f32.gmra.mrb[0].mxu0 %v223
    %v2082 = vpop.f32.mrb[0].mxu0
    %v2083 = vadd.f32 0.0, %v2082
    %v2084 = vpop.f32.mrb[0].mxu0
    %2085 = vmatprep.mubr.f32.mxu0 0.0
    %2086 = vmatmul.mubr.f32.gmra.mrb[0].mxu0 %v226
    %v2087 = vpop.f32.mrb[0].mxu0
    %v2088 = vadd.f32 0.0, %v2087
    %v2089 = vpop.f32.mrb[0].mxu0
    %2090 = vmatprep.mubr.f32.mxu0 0.0
    %2091 = vmatmul.mubr.f32.gmra.mrb[0].mxu0 %v229
    %v2092 = vpop.f32.mrb[0].mxu0
    %v2093 = vadd.f32 0.0, %v2092
    %v2094 = vpop.f32.mrb[0].mxu0
    %2095 = vdwg.mxu0
    %v2096 = vadd.f32 %v1839, %v1938
    %v2097 = vadd.f32 %v1840, %v1943
    %v2098 = vadd.f32 %v1841, %v1948
    %v2099 = vadd.f32 %v1842, %v1953
    %v2100 = vadd.f32 %v1843, %v1958
    %v2101 = vadd.f32 %v1844, %v1963
    %v2102 = vadd.f32 %v1845, %v1968
    %v2103 = vadd.f32 %v1846, %v1973
    %v2104 = vadd.f32 %v1847, %v1978
    %v2105 = vadd.f32 %v1848, %v1983
    %v2106 = vadd.f32 %v1849, %v1988
    %v2107 = vadd.f32 %v1850, %v1993
    %v2108 = vadd.f32 %v1851, %v1998
    %v2109 = vadd.f32 %v1852, %v2003
    %v2110 = vadd.f32 %v1853, %v2008
    %v2111 = vadd.f32 %v1854, %v2013
    %v2112 = vadd.f32 %v1855, %v2018
    %v2113 = vadd.f32 %v1856, %v2023
    %v2114 = vadd.f32 %v1857, %v2028
    %v2115 = vadd.f32 %v1858, %v2033
    %v2116 = vadd.f32 %v1859, %v2038
    %v2117 = vadd.f32 %v1860, %v2043
    %v2118 = vadd.f32 %v1861, %v2048
    %v2119 = vadd.f32 %v1862, %v2053
    %v2120 = vadd.f32 %v1863, %v2058
    %v2121 = vadd.f32 %v1864, %v2063
    %v2122 = vadd.f32 %v1865, %v2068
    %v2123 = vadd.f32 %v1866, %v2073
    %v2124 = vadd.f32 %v1867, %v2078
    %v2125 = vadd.f32 %v1868, %v2083
    %v2126 = vadd.f32 %v1869, %v2088
    %v2127 = vadd.f32 %v1870, %v2093
    %v2128 = vtanh.pop %v2096
    %v2129 = vtanh.pop %v2097
    %v2130 = vtanh.pop %v2098
    %v2131 = vtanh.pop %v2099
    %v2132 = vtanh.pop %v2100
    %v2133 = vtanh.pop %v2101
    %v2134 = vtanh.pop %v2102
    %v2135 = vtanh.pop %v2103
    %v2136 = vtanh.pop %v2104
    %v2137 = vtanh.pop %v2105
    %v2138 = vtanh.pop %v2106
    %v2139 = vtanh.pop %v2107
    %v2140 = vtanh.pop %v2108
    %v2141 = vtanh.pop %v2109
    %v2142 = vtanh.pop %v2110
    %v2143 = vtanh.pop %v2111
    %v2144 = vtanh.pop %v2112
    %v2145 = vtanh.pop %v2113
    %v2146 = vtanh.pop %v2114
    %v2147 = vtanh.pop %v2115
    %v2148 = vtanh.pop %v2116
    %v2149 = vtanh.pop %v2117
    %v2150 = vtanh.pop %v2118
    %v2151 = vtanh.pop %v2119
    %v2152 = vtanh.pop %v2120
    %v2153 = vtanh.pop %v2121
    %v2154 = vtanh.pop %v2122
    %v2155 = vtanh.pop %v2123
    %v2156 = vtanh.pop %v2124
    %v2157 = vtanh.pop %v2125
    %v2158 = vtanh.pop %v2126
    %v2159 = vtanh.pop %v2127
    %v2160 = vmul.f32 %v2128, 0.5
    %v2161 = vmul.f32 %v2129, 0.5
    %v2162 = vmul.f32 %v2130, 0.5
    %v2163 = vmul.f32 %v2131, 0.5
    %v2164 = vmul.f32 %v2132, 0.5
    %v2165 = vmul.f32 %v2133, 0.5
    %v2166 = vmul.f32 %v2134, 0.5
    %v2167 = vmul.f32 %v2135, 0.5
    %v2168 = vadd.f32 %v2160, 0.5
    %v2169 = vadd.f32 %v2161, 0.5
    %v2170 = vadd.f32 %v2162, 0.5
    %v2171 = vadd.f32 %v2163, 0.5
    %v2172 = vadd.f32 %v2164, 0.5
    %v2173 = vadd.f32 %v2165, 0.5
    %v2174 = vadd.f32 %v2166, 0.5
    %v2175 = vadd.f32 %v2167, 0.5
    %v2176 = vmul.f32 %v2136, 0.5
    %v2177 = vmul.f32 %v2137, 0.5
    %v2178 = vmul.f32 %v2138, 0.5
    %v2179 = vmul.f32 %v2139, 0.5
    %v2180 = vmul.f32 %v2140, 0.5
    %v2181 = vmul.f32 %v2141, 0.5
    %v2182 = vmul.f32 %v2142, 0.5
    %v2183 = vmul.f32 %v2143, 0.5
    %v2184 = vadd.f32 %v2176, 0.5
    %v2185 = vadd.f32 %v2177, 0.5
    %v2186 = vadd.f32 %v2178, 0.5
    %v2187 = vadd.f32 %v2179, 0.5
    %v2188 = vadd.f32 %v2180, 0.5
    %v2189 = vadd.f32 %v2181, 0.5
    %v2190 = vadd.f32 %v2182, 0.5
    %v2191 = vadd.f32 %v2183, 0.5
    %v2192 = vmul.f32 %v2152, 0.5
    %v2193 = vmul.f32 %v2153, 0.5
    %v2194 = vmul.f32 %v2154, 0.5
    %v2195 = vmul.f32 %v2155, 0.5
    %v2196 = vmul.f32 %v2156, 0.5
    %v2197 = vmul.f32 %v2157, 0.5
    %v2198 = vmul.f32 %v2158, 0.5
    %v2199 = vmul.f32 %v2159, 0.5
    %v2200 = vadd.f32 %v2192, 0.5
    %v2201 = vadd.f32 %v2193, 0.5
    %v2202 = vadd.f32 %v2194, 0.5
    %v2203 = vadd.f32 %v2195, 0.5
    %v2204 = vadd.f32 %v2196, 0.5
    %v2205 = vadd.f32 %v2197, 0.5
    %v2206 = vadd.f32 %v2198, 0.5
    %v2207 = vadd.f32 %v2199, 0.5
    %v2208 = vmul.f32 %v2184, %v1814
    %v2209 = vmul.f32 %v2185, %v1815
    %v2210 = vmul.f32 %v2186, %v1816
    %v2211 = vmul.f32 %v2187, %v1817
    %v2212 = vmul.f32 %v2188, %v1818
    %v2213 = vmul.f32 %v2189, %v1819
    %v2214 = vmul.f32 %v2190, %v1820
    %v2215 = vmul.f32 %v2191, %v1821
    %v2216 = vmul.f32 %v2168, %v2144
    %v2217 = vmul.f32 %v2169, %v2145
    %v2218 = vmul.f32 %v2170, %v2146
    %v2219 = vmul.f32 %v2171, %v2147
    %v2220 = vmul.f32 %v2172, %v2148
    %v2221 = vmul.f32 %v2173, %v2149
    %v2222 = vmul.f32 %v2174, %v2150
    %v2223 = vmul.f32 %v2175, %v2151
    %v2224 = vadd.f32 %v2208, %v2216
    %v2225 = vadd.f32 %v2209, %v2217
    %v2226 = vadd.f32 %v2210, %v2218
    %v2227 = vadd.f32 %v2211, %v2219
    %v2228 = vadd.f32 %v2212, %v2220
    %v2229 = vadd.f32 %v2213, %v2221
    %v2230 = vadd.f32 %v2214, %v2222
    %v2231 = vadd.f32 %v2215, %v2223
    %v2232 = vtanh.pop %v2224
    %v2233 = vtanh.pop %v2225
    %v2234 = vtanh.pop %v2226
    %v2235 = vtanh.pop %v2227
    %v2236 = vtanh.pop %v2228
    %v2237 = vtanh.pop %v2229
    %v2238 = vtanh.pop %v2230
    %v2239 = vtanh.pop %v2231
    %v2240 = vmul.f32 %v2200, %v2232
    %v2241 = vmul.f32 %v2201, %v2233
    %v2242 = vmul.f32 %v2202, %v2234
    %v2243 = vmul.f32 %v2203, %v2235
    %v2244 = vmul.f32 %v2204, %v2236
    %v2245 = vmul.f32 %v2205, %v2237
    %v2246 = vmul.f32 %v2206, %v2238
    %v2247 = vmul.f32 %v2207, %v2239
    %s2248 = scalar_lea.vmem [#allocation5], 1280
    %v2249 = vld [vmem:[%s2248] sm:$0xff]
    %v2250 = vld [vmem:[%s2248 + $0x8] sm:$0xff]
    %v2251 = vld [vmem:[%s2248 + $0x10] sm:$0xff]
    %v2252 = vld [vmem:[%s2248 + $0x18] sm:$0xff]
    %v2253 = vld [vmem:[%s2248 + $0x20] sm:$0xff]
    %v2254 = vld [vmem:[%s2248 + $0x28] sm:$0xff]
    %v2255 = vld [vmem:[%s2248 + $0x30] sm:$0xff]
    %v2256 = vld [vmem:[%s2248 + $0x38] sm:$0xff]
    %v2257 = vld [vmem:[%s2248 + $0x40] sm:$0xff]
    %v2258 = vld [vmem:[%s2248 + $0x48] sm:$0xff]
    %v2259 = vld [vmem:[%s2248 + $0x50] sm:$0xff]
    %v2260 = vld [vmem:[%s2248 + $0x58] sm:$0xff]
    %v2261 = vld [vmem:[%s2248 + $0x60] sm:$0xff]
    %v2262 = vld [vmem:[%s2248 + $0x68] sm:$0xff]
    %v2263 = vld [vmem:[%s2248 + $0x70] sm:$0xff]
    %v2264 = vld [vmem:[%s2248 + $0x78] sm:$0xff]
    %v2265 = vld [vmem:[%s2248 + $0x80] sm:$0xff]
    %v2266 = vld [vmem:[%s2248 + $0x88] sm:$0xff]
    %v2267 = vld [vmem:[%s2248 + $0x90] sm:$0xff]
    %v2268 = vld [vmem:[%s2248 + $0x98] sm:$0xff]
    %v2269 = vld [vmem:[%s2248 + $0xa0] sm:$0xff]
    %v2270 = vld [vmem:[%s2248 + $0xa8] sm:$0xff]
    %v2271 = vld [vmem:[%s2248 + $0xb0] sm:$0xff]
    %v2272 = vld [vmem:[%s2248 + $0xb8] sm:$0xff]
    %v2273 = vld [vmem:[%s2248 + $0xc0] sm:$0xff]
    %v2274 = vld [vmem:[%s2248 + $0xc8] sm:$0xff]
    %v2275 = vld [vmem:[%s2248 + $0xd0] sm:$0xff]
    %v2276 = vld [vmem:[%s2248 + $0xd8] sm:$0xff]
    %v2277 = vld [vmem:[%s2248 + $0xe0] sm:$0xff]
    %v2278 = vld [vmem:[%s2248 + $0xe8] sm:$0xff]
    %v2279 = vld [vmem:[%s2248 + $0xf0] sm:$0xff]
    %v2280 = vld [vmem:[%s2248 + $0xf8] sm:$0xff]
    %2281 = vmatprep.subr.mxu0 0.0
    %2282 = vmatpush1.msra.mxu0 %v2240
    %2283 = vmatprep.subr.mxu0 0.0
    %2284 = vmatpush1.msra.mxu0 %v2241
    %2285 = vmatprep.subr.mxu0 0.0
    %2286 = vmatpush1.msra.mxu0 %v2242
    %2287 = vmatprep.subr.mxu0 0.0
    %2288 = vmatpush1.msra.mxu0 %v2243
    %2289 = vmatprep.subr.mxu0 0.0
    %2290 = vmatpush1.msra.mxu0 %v2244
    %2291 = vmatprep.subr.mxu0 0.0
    %2292 = vmatpush1.msra.mxu0 %v2245
    %2293 = vmatprep.subr.mxu0 0.0
    %2294 = vmatpush1.msra.mxu0 %v2246
    %2295 = vmatprep.subr.mxu0 0.0
    %2296 = vmatpush1.msra.mxu0 %v2247
    %2297 = vmatprep.subr.mxu0 0.0
    %2298 = vmatpush1.msra.mxu0 0.0
    %2299 = vmatprep.subr.mxu0 0.0
    %2300 = vmatpush1.msra.mxu0 0.0
    %2301 = vmatprep.subr.mxu0 0.0
    %2302 = vmatpush1.msra.mxu0 0.0
    %2303 = vmatprep.subr.mxu0 0.0
    %2304 = vmatpush1.msra.mxu0 0.0
    %2305 = vmatprep.subr.mxu0 0.0
    %2306 = vmatpush1.msra.mxu0 0.0
    %2307 = vmatprep.subr.mxu0 0.0
    %2308 = vmatpush1.msra.mxu0 0.0
    %2309 = vmatprep.subr.mxu0 0.0
    %2310 = vmatpush1.msra.mxu0 0.0
    %2311 = vmatprep.subr.mxu0 0.0
    %2312 = vmatpush1.msra.mxu0 0.0
    %2313 = vmatprep.subr.mxu0 0.0
    %2314 = vmatpush1.msra.mxu0 0.0
    %2315 = vmatprep.subr.mxu0 0.0
    %2316 = vmatpush1.msra.mxu0 0.0
    %2317 = vmatprep.subr.mxu0 0.0
    %2318 = vmatpush1.msra.mxu0 0.0
    %2319 = vmatprep.subr.mxu0 0.0
    %2320 = vmatpush1.msra.mxu0 0.0
    %2321 = vmatprep.subr.mxu0 0.0
    %2322 = vmatpush1.msra.mxu0 0.0
    %2323 = vmatprep.subr.mxu0 0.0
    %2324 = vmatpush1.msra.mxu0 0.0
    %2325 = vmatprep.subr.mxu0 0.0
    %2326 = vmatpush1.msra.mxu0 0.0
    %2327 = vmatprep.subr.mxu0 0.0
    %2328 = vmatpush1.msra.mxu0 0.0
    %2329 = vmatprep.subr.mxu0 0.0
    %2330 = vmatpush1.msra.mxu0 0.0
    %2331 = vmatprep.subr.mxu0 0.0
    %2332 = vmatpush1.msra.mxu0 0.0
    %2333 = vmatprep.subr.mxu0 0.0
    %2334 = vmatpush1.msra.mxu0 0.0
    %2335 = vmatprep.subr.mxu0 0.0
    %2336 = vmatpush1.msra.mxu0 0.0
    %2337 = vmatprep.subr.mxu0 0.0
    %2338 = vmatpush1.msra.mxu0 0.0
    %2339 = vmatprep.subr.mxu0 0.0
    %2340 = vmatpush1.msra.mxu0 0.0
    %2341 = vmatprep.subr.mxu0 0.0
    %2342 = vmatpush1.msra.mxu0 0.0
    %2343 = vmatprep.subr.mxu0 0.0
    %2344 = vmatpush1.msra.mxu0 0.0
    %2345 = vmatprep.mubr.f32.mxu0 0.0
    %2346 = vmatmul.mubr.f32.gmra.mrb[0].mxu0 %v136
    %v2347 = vpop.f32.mrb[0].mxu0
    %v2348 = vadd.f32 0.0, %v2347
    %v2349 = vpop.f32.mrb[0].mxu0
    %2350 = vmatprep.mubr.f32.mxu0 0.0
    %2351 = vmatmul.mubr.f32.gmra.mrb[0].mxu0 %v139
    %v2352 = vpop.f32.mrb[0].mxu0
    %v2353 = vadd.f32 0.0, %v2352
    %v2354 = vpop.f32.mrb[0].mxu0
    %2355 = vmatprep.mubr.f32.mxu0 0.0
    %2356 = vmatmul.mubr.f32.gmra.mrb[0].mxu0 %v142
    %v2357 = vpop.f32.mrb[0].mxu0
    %v2358 = vadd.f32 0.0, %v2357
    %v2359 = vpop.f32.mrb[0].mxu0
    %2360 = vmatprep.mubr.f32.mxu0 0.0
    %2361 = vmatmul.mubr.f32.gmra.mrb[0].mxu0 %v145
    %v2362 = vpop.f32.mrb[0].mxu0
    %v2363 = vadd.f32 0.0, %v2362
    %v2364 = vpop.f32.mrb[0].mxu0
    %2365 = vmatprep.mubr.f32.mxu0 0.0
    %2366 = vmatmul.mubr.f32.gmra.mrb[0].mxu0 %v148
    %v2367 = vpop.f32.mrb[0].mxu0
    %v2368 = vadd.f32 0.0, %v2367
    %v2369 = vpop.f32.mrb[0].mxu0
    %2370 = vmatprep.mubr.f32.mxu0 0.0
    %2371 = vmatmul.mubr.f32.gmra.mrb[0].mxu0 %v151
    %v2372 = vpop.f32.mrb[0].mxu0
    %v2373 = vadd.f32 0.0, %v2372
    %v2374 = vpop.f32.mrb[0].mxu0
    %2375 = vmatprep.mubr.f32.mxu0 0.0
    %2376 = vmatmul.mubr.f32.gmra.mrb[0].mxu0 %v154
    %v2377 = vpop.f32.mrb[0].mxu0
    %v2378 = vadd.f32 0.0, %v2377
    %v2379 = vpop.f32.mrb[0].mxu0
    %2380 = vmatprep.mubr.f32.mxu0 0.0
    %2381 = vmatmul.mubr.f32.gmra.mrb[0].mxu0 %v157
    %v2382 = vpop.f32.mrb[0].mxu0
    %v2383 = vadd.f32 0.0, %v2382
    %v2384 = vpop.f32.mrb[0].mxu0
    %2385 = vmatprep.mubr.f32.mxu0 0.0
    %2386 = vmatmul.mubr.f32.gmra.mrb[0].mxu0 %v160
    %v2387 = vpop.f32.mrb[0].mxu0
    %v2388 = vadd.f32 0.0, %v2387
    %v2389 = vpop.f32.mrb[0].mxu0
    %2390 = vmatprep.mubr.f32.mxu0 0.0
    %2391 = vmatmul.mubr.f32.gmra.mrb[0].mxu0 %v163
    %v2392 = vpop.f32.mrb[0].mxu0
    %v2393 = vadd.f32 0.0, %v2392
    %v2394 = vpop.f32.mrb[0].mxu0
    %2395 = vmatprep.mubr.f32.mxu0 0.0
    %2396 = vmatmul.mubr.f32.gmra.mrb[0].mxu0 %v166
    %v2397 = vpop.f32.mrb[0].mxu0
    %v2398 = vadd.f32 0.0, %v2397
    %v2399 = vpop.f32.mrb[0].mxu0
    %2400 = vmatprep.mubr.f32.mxu0 0.0
    %2401 = vmatmul.mubr.f32.gmra.mrb[0].mxu0 %v169
    %v2402 = vpop.f32.mrb[0].mxu0
    %v2403 = vadd.f32 0.0, %v2402
    %v2404 = vpop.f32.mrb[0].mxu0
    %2405 = vmatprep.mubr.f32.mxu0 0.0
    %2406 = vmatmul.mubr.f32.gmra.mrb[0].mxu0 %v172
    %v2407 = vpop.f32.mrb[0].mxu0
    %v2408 = vadd.f32 0.0, %v2407
    %v2409 = vpop.f32.mrb[0].mxu0
    %2410 = vmatprep.mubr.f32.mxu0 0.0
    %2411 = vmatmul.mubr.f32.gmra.mrb[0].mxu0 %v175
    %v2412 = vpop.f32.mrb[0].mxu0
    %v2413 = vadd.f32 0.0, %v2412
    %v2414 = vpop.f32.mrb[0].mxu0
    %2415 = vmatprep.mubr.f32.mxu0 0.0
    %2416 = vmatmul.mubr.f32.gmra.mrb[0].mxu0 %v178
    %v2417 = vpop.f32.mrb[0].mxu0
    %v2418 = vadd.f32 0.0, %v2417
    %v2419 = vpop.f32.mrb[0].mxu0
    %2420 = vmatprep.mubr.f32.mxu0 0.0
    %2421 = vmatmul.mubr.f32.gmra.mrb[0].mxu0 %v181
    %v2422 = vpop.f32.mrb[0].mxu0
    %v2423 = vadd.f32 0.0, %v2422
    %v2424 = vpop.f32.mrb[0].mxu0
    %2425 = vmatprep.mubr.f32.mxu0 0.0
    %2426 = vmatmul.mubr.f32.gmra.mrb[0].mxu0 %v184
    %v2427 = vpop.f32.mrb[0].mxu0
    %v2428 = vadd.f32 0.0, %v2427
    %v2429 = vpop.f32.mrb[0].mxu0
    %2430 = vmatprep.mubr.f32.mxu0 0.0
    %2431 = vmatmul.mubr.f32.gmra.mrb[0].mxu0 %v187
    %v2432 = vpop.f32.mrb[0].mxu0
    %v2433 = vadd.f32 0.0, %v2432
    %v2434 = vpop.f32.mrb[0].mxu0
    %2435 = vmatprep.mubr.f32.mxu0 0.0
    %2436 = vmatmul.mubr.f32.gmra.mrb[0].mxu0 %v190
    %v2437 = vpop.f32.mrb[0].mxu0
    %v2438 = vadd.f32 0.0, %v2437
    %v2439 = vpop.f32.mrb[0].mxu0
    %2440 = vmatprep.mubr.f32.mxu0 0.0
    %2441 = vmatmul.mubr.f32.gmra.mrb[0].mxu0 %v193
    %v2442 = vpop.f32.mrb[0].mxu0
    %v2443 = vadd.f32 0.0, %v2442
    %v2444 = vpop.f32.mrb[0].mxu0
    %2445 = vmatprep.mubr.f32.mxu0 0.0
    %2446 = vmatmul.mubr.f32.gmra.mrb[0].mxu0 %v196
    %v2447 = vpop.f32.mrb[0].mxu0
    %v2448 = vadd.f32 0.0, %v2447
    %v2449 = vpop.f32.mrb[0].mxu0
    %2450 = vmatprep.mubr.f32.mxu0 0.0
    %2451 = vmatmul.mubr.f32.gmra.mrb[0].mxu0 %v199
    %v2452 = vpop.f32.mrb[0].mxu0
    %v2453 = vadd.f32 0.0, %v2452
    %v2454 = vpop.f32.mrb[0].mxu0
    %2455 = vmatprep.mubr.f32.mxu0 0.0
    %2456 = vmatmul.mubr.f32.gmra.mrb[0].mxu0 %v202
    %v2457 = vpop.f32.mrb[0].mxu0
    %v2458 = vadd.f32 0.0, %v2457
    %v2459 = vpop.f32.mrb[0].mxu0
    %2460 = vmatprep.mubr.f32.mxu0 0.0
    %2461 = vmatmul.mubr.f32.gmra.mrb[0].mxu0 %v205
    %v2462 = vpop.f32.mrb[0].mxu0
    %v2463 = vadd.f32 0.0, %v2462
    %v2464 = vpop.f32.mrb[0].mxu0
    %2465 = vmatprep.mubr.f32.mxu0 0.0
    %2466 = vmatmul.mubr.f32.gmra.mrb[0].mxu0 %v208
    %v2467 = vpop.f32.mrb[0].mxu0
    %v2468 = vadd.f32 0.0, %v2467
    %v2469 = vpop.f32.mrb[0].mxu0
    %2470 = vmatprep.mubr.f32.mxu0 0.0
    %2471 = vmatmul.mubr.f32.gmra.mrb[0].mxu0 %v211
    %v2472 = vpop.f32.mrb[0].mxu0
    %v2473 = vadd.f32 0.0, %v2472
    %v2474 = vpop.f32.mrb[0].mxu0
    %2475 = vmatprep.mubr.f32.mxu0 0.0
    %2476 = vmatmul.mubr.f32.gmra.mrb[0].mxu0 %v214
    %v2477 = vpop.f32.mrb[0].mxu0
    %v2478 = vadd.f32 0.0, %v2477
    %v2479 = vpop.f32.mrb[0].mxu0
    %2480 = vmatprep.mubr.f32.mxu0 0.0
    %2481 = vmatmul.mubr.f32.gmra.mrb[0].mxu0 %v217
    %v2482 = vpop.f32.mrb[0].mxu0
    %v2483 = vadd.f32 0.0, %v2482
    %v2484 = vpop.f32.mrb[0].mxu0
    %2485 = vmatprep.mubr.f32.mxu0 0.0
    %2486 = vmatmul.mubr.f32.gmra.mrb[0].mxu0 %v220
    %v2487 = vpop.f32.mrb[0].mxu0
    %v2488 = vadd.f32 0.0, %v2487
    %v2489 = vpop.f32.mrb[0].mxu0
    %2490 = vmatprep.mubr.f32.mxu0 0.0
    %2491 = vmatmul.mubr.f32.gmra.mrb[0].mxu0 %v223
    %v2492 = vpop.f32.mrb[0].mxu0
    %v2493 = vadd.f32 0.0, %v2492
    %v2494 = vpop.f32.mrb[0].mxu0
    %2495 = vmatprep.mubr.f32.mxu0 0.0
    %2496 = vmatmul.mubr.f32.gmra.mrb[0].mxu0 %v226
    %v2497 = vpop.f32.mrb[0].mxu0
    %v2498 = vadd.f32 0.0, %v2497
    %v2499 = vpop.f32.mrb[0].mxu0
    %2500 = vmatprep.mubr.f32.mxu0 0.0
    %2501 = vmatmul.mubr.f32.gmra.mrb[0].mxu0 %v229
    %v2502 = vpop.f32.mrb[0].mxu0
    %v2503 = vadd.f32 0.0, %v2502
    %v2504 = vpop.f32.mrb[0].mxu0
    %2505 = vdwg.mxu0
    %v2506 = vadd.f32 %v2249, %v2348
    %v2507 = vadd.f32 %v2250, %v2353
    %v2508 = vadd.f32 %v2251, %v2358
    %v2509 = vadd.f32 %v2252, %v2363
    %v2510 = vadd.f32 %v2253, %v2368
    %v2511 = vadd.f32 %v2254, %v2373
    %v2512 = vadd.f32 %v2255, %v2378
    %v2513 = vadd.f32 %v2256, %v2383
    %v2514 = vadd.f32 %v2257, %v2388
    %v2515 = vadd.f32 %v2258, %v2393
    %v2516 = vadd.f32 %v2259, %v2398
    %v2517 = vadd.f32 %v2260, %v2403
    %v2518 = vadd.f32 %v2261, %v2408
    %v2519 = vadd.f32 %v2262, %v2413
    %v2520 = vadd.f32 %v2263, %v2418
    %v2521 = vadd.f32 %v2264, %v2423
    %v2522 = vadd.f32 %v2265, %v2428
    %v2523 = vadd.f32 %v2266, %v2433
    %v2524 = vadd.f32 %v2267, %v2438
    %v2525 = vadd.f32 %v2268, %v2443
    %v2526 = vadd.f32 %v2269, %v2448
    %v2527 = vadd.f32 %v2270, %v2453
    %v2528 = vadd.f32 %v2271, %v2458
    %v2529 = vadd.f32 %v2272, %v2463
    %v2530 = vadd.f32 %v2273, %v2468
    %v2531 = vadd.f32 %v2274, %v2473
    %v2532 = vadd.f32 %v2275, %v2478
    %v2533 = vadd.f32 %v2276, %v2483
    %v2534 = vadd.f32 %v2277, %v2488
    %v2535 = vadd.f32 %v2278, %v2493
    %v2536 = vadd.f32 %v2279, %v2498
    %v2537 = vadd.f32 %v2280, %v2503
    %v2538 = vtanh.pop %v2506
    %v2539 = vtanh.pop %v2507
    %v2540 = vtanh.pop %v2508
    %v2541 = vtanh.pop %v2509
    %v2542 = vtanh.pop %v2510
    %v2543 = vtanh.pop %v2511
    %v2544 = vtanh.pop %v2512
    %v2545 = vtanh.pop %v2513
    %v2546 = vtanh.pop %v2514
    %v2547 = vtanh.pop %v2515
    %v2548 = vtanh.pop %v2516
    %v2549 = vtanh.pop %v2517
    %v2550 = vtanh.pop %v2518
    %v2551 = vtanh.pop %v2519
    %v2552 = vtanh.pop %v2520
    %v2553 = vtanh.pop %v2521
    %v2554 = vtanh.pop %v2522
    %v2555 = vtanh.pop %v2523
    %v2556 = vtanh.pop %v2524
    %v2557 = vtanh.pop %v2525
    %v2558 = vtanh.pop %v2526
    %v2559 = vtanh.pop %v2527
    %v2560 = vtanh.pop %v2528
    %v2561 = vtanh.pop %v2529
    %v2562 = vtanh.pop %v2530
    %v2563 = vtanh.pop %v2531
    %v2564 = vtanh.pop %v2532
    %v2565 = vtanh.pop %v2533
    %v2566 = vtanh.pop %v2534
    %v2567 = vtanh.pop %v2535
    %v2568 = vtanh.pop %v2536
    %v2569 = vtanh.pop %v2537
    %v2570 = vmul.f32 %v2538, 0.5
    %v2571 = vmul.f32 %v2539, 0.5
    %v2572 = vmul.f32 %v2540, 0.5
    %v2573 = vmul.f32 %v2541, 0.5
    %v2574 = vmul.f32 %v2542, 0.5
    %v2575 = vmul.f32 %v2543, 0.5
    %v2576 = vmul.f32 %v2544, 0.5
    %v2577 = vmul.f32 %v2545, 0.5
    %v2578 = vadd.f32 %v2570, 0.5
    %v2579 = vadd.f32 %v2571, 0.5
    %v2580 = vadd.f32 %v2572, 0.5
    %v2581 = vadd.f32 %v2573, 0.5
    %v2582 = vadd.f32 %v2574, 0.5
    %v2583 = vadd.f32 %v2575, 0.5
    %v2584 = vadd.f32 %v2576, 0.5
    %v2585 = vadd.f32 %v2577, 0.5
    %v2586 = vmul.f32 %v2546, 0.5
    %v2587 = vmul.f32 %v2547, 0.5
    %v2588 = vmul.f32 %v2548, 0.5
    %v2589 = vmul.f32 %v2549, 0.5
    %v2590 = vmul.f32 %v2550, 0.5
    %v2591 = vmul.f32 %v2551, 0.5
    %v2592 = vmul.f32 %v2552, 0.5
    %v2593 = vmul.f32 %v2553, 0.5
    %v2594 = vadd.f32 %v2586, 0.5
    %v2595 = vadd.f32 %v2587, 0.5
    %v2596 = vadd.f32 %v2588, 0.5
    %v2597 = vadd.f32 %v2589, 0.5
    %v2598 = vadd.f32 %v2590, 0.5
    %v2599 = vadd.f32 %v2591, 0.5
    %v2600 = vadd.f32 %v2592, 0.5
    %v2601 = vadd.f32 %v2593, 0.5
    %v2602 = vmul.f32 %v2562, 0.5
    %v2603 = vmul.f32 %v2563, 0.5
    %v2604 = vmul.f32 %v2564, 0.5
    %v2605 = vmul.f32 %v2565, 0.5
    %v2606 = vmul.f32 %v2566, 0.5
    %v2607 = vmul.f32 %v2567, 0.5
    %v2608 = vmul.f32 %v2568, 0.5
    %v2609 = vmul.f32 %v2569, 0.5
    %v2610 = vadd.f32 %v2602, 0.5
    %v2611 = vadd.f32 %v2603, 0.5
    %v2612 = vadd.f32 %v2604, 0.5
    %v2613 = vadd.f32 %v2605, 0.5
    %v2614 = vadd.f32 %v2606, 0.5
    %v2615 = vadd.f32 %v2607, 0.5
    %v2616 = vadd.f32 %v2608, 0.5
    %v2617 = vadd.f32 %v2609, 0.5
    %v2618 = vmul.f32 %v2594, %v2224
    %v2619 = vmul.f32 %v2595, %v2225
    %v2620 = vmul.f32 %v2596, %v2226
    %v2621 = vmul.f32 %v2597, %v2227
    %v2622 = vmul.f32 %v2598, %v2228
    %v2623 = vmul.f32 %v2599, %v2229
    %v2624 = vmul.f32 %v2600, %v2230
    %v2625 = vmul.f32 %v2601, %v2231
    %v2626 = vmul.f32 %v2578, %v2554
    %v2627 = vmul.f32 %v2579, %v2555
    %v2628 = vmul.f32 %v2580, %v2556
    %v2629 = vmul.f32 %v2581, %v2557
    %v2630 = vmul.f32 %v2582, %v2558
    %v2631 = vmul.f32 %v2583, %v2559
    %v2632 = vmul.f32 %v2584, %v2560
    %v2633 = vmul.f32 %v2585, %v2561
    %v2634 = vadd.f32 %v2618, %v2626
    %v2635 = vadd.f32 %v2619, %v2627
    %v2636 = vadd.f32 %v2620, %v2628
    %v2637 = vadd.f32 %v2621, %v2629
    %v2638 = vadd.f32 %v2622, %v2630
    %v2639 = vadd.f32 %v2623, %v2631
    %v2640 = vadd.f32 %v2624, %v2632
    %v2641 = vadd.f32 %v2625, %v2633
    %v2642 = vtanh.pop %v2634
    %v2643 = vtanh.pop %v2635
    %v2644 = vtanh.pop %v2636
    %v2645 = vtanh.pop %v2637
    %v2646 = vtanh.pop %v2638
    %v2647 = vtanh.pop %v2639
    %v2648 = vtanh.pop %v2640
    %v2649 = vtanh.pop %v2641
    %v2650 = vmul.f32 %v2610, %v2642
    %v2651 = vmul.f32 %v2611, %v2643
    %v2652 = vmul.f32 %v2612, %v2644
    %v2653 = vmul.f32 %v2613, %v2645
    %v2654 = vmul.f32 %v2614, %v2646
    %v2655 = vmul.f32 %v2615, %v2647
    %v2656 = vmul.f32 %v2616, %v2648
    %v2657 = vmul.f32 %v2617, %v2649
    %s2658 = scalar_lea.vmem [#allocation5], 1536
    %v2659 = vld [vmem:[%s2658] sm:$0xff]
    %v2660 = vld [vmem:[%s2658 + $0x8] sm:$0xff]
    %v2661 = vld [vmem:[%s2658 + $0x10] sm:$0xff]
    %v2662 = vld [vmem:[%s2658 + $0x18] sm:$0xff]
    %v2663 = vld [vmem:[%s2658 + $0x20] sm:$0xff]
    %v2664 = vld [vmem:[%s2658 + $0x28] sm:$0xff]
    %v2665 = vld [vmem:[%s2658 + $0x30] sm:$0xff]
    %v2666 = vld [vmem:[%s2658 + $0x38] sm:$0xff]
    %v2667 = vld [vmem:[%s2658 + $0x40] sm:$0xff]
    %v2668 = vld [vmem:[%s2658 + $0x48] sm:$0xff]
    %v2669 = vld [vmem:[%s2658 + $0x50] sm:$0xff]
    %v2670 = vld [vmem:[%s2658 + $0x58] sm:$0xff]
    %v2671 = vld [vmem:[%s2658 + $0x60] sm:$0xff]
    %v2672 = vld [vmem:[%s2658 + $0x68] sm:$0xff]
    %v2673 = vld [vmem:[%s2658 + $0x70] sm:$0xff]
    %v2674 = vld [vmem:[%s2658 + $0x78] sm:$0xff]
    %v2675 = vld [vmem:[%s2658 + $0x80] sm:$0xff]
    %v2676 = vld [vmem:[%s2658 + $0x88] sm:$0xff]
    %v2677 = vld [vmem:[%s2658 + $0x90] sm:$0xff]
    %v2678 = vld [vmem:[%s2658 + $0x98] sm:$0xff]
    %v2679 = vld [vmem:[%s2658 + $0xa0] sm:$0xff]
    %v2680 = vld [vmem:[%s2658 + $0xa8] sm:$0xff]
    %v2681 = vld [vmem:[%s2658 + $0xb0] sm:$0xff]
    %v2682 = vld [vmem:[%s2658 + $0xb8] sm:$0xff]
    %v2683 = vld [vmem:[%s2658 + $0xc0] sm:$0xff]
    %v2684 = vld [vmem:[%s2658 + $0xc8] sm:$0xff]
    %v2685 = vld [vmem:[%s2658 + $0xd0] sm:$0xff]
    %v2686 = vld [vmem:[%s2658 + $0xd8] sm:$0xff]
    %v2687 = vld [vmem:[%s2658 + $0xe0] sm:$0xff]
    %v2688 = vld [vmem:[%s2658 + $0xe8] sm:$0xff]
    %v2689 = vld [vmem:[%s2658 + $0xf0] sm:$0xff]
    %v2690 = vld [vmem:[%s2658 + $0xf8] sm:$0xff]
    %2691 = vmatprep.subr.mxu0 0.0
    %2692 = vmatpush1.msra.mxu0 %v2650
    %2693 = vmatprep.subr.mxu0 0.0
    %2694 = vmatpush1.msra.mxu0 %v2651
    %2695 = vmatprep.subr.mxu0 0.0
    %2696 = vmatpush1.msra.mxu0 %v2652
    %2697 = vmatprep.subr.mxu0 0.0
    %2698 = vmatpush1.msra.mxu0 %v2653
    %2699 = vmatprep.subr.mxu0 0.0
    %2700 = vmatpush1.msra.mxu0 %v2654
    %2701 = vmatprep.subr.mxu0 0.0
    %2702 = vmatpush1.msra.mxu0 %v2655
    %2703 = vmatprep.subr.mxu0 0.0
    %2704 = vmatpush1.msra.mxu0 %v2656
    %2705 = vmatprep.subr.mxu0 0.0
    %2706 = vmatpush1.msra.mxu0 %v2657
    %2707 = vmatprep.subr.mxu0 0.0
    %2708 = vmatpush1.msra.mxu0 0.0
    %2709 = vmatprep.subr.mxu0 0.0
    %2710 = vmatpush1.msra.mxu0 0.0
    %2711 = vmatprep.subr.mxu0 0.0
    %2712 = vmatpush1.msra.mxu0 0.0
    %2713 = vmatprep.subr.mxu0 0.0
    %2714 = vmatpush1.msra.mxu0 0.0
    %2715 = vmatprep.subr.mxu0 0.0
    %2716 = vmatpush1.msra.mxu0 0.0
    %2717 = vmatprep.subr.mxu0 0.0
    %2718 = vmatpush1.msra.mxu0 0.0
    %2719 = vmatprep.subr.mxu0 0.0
    %2720 = vmatpush1.msra.mxu0 0.0
    %2721 = vmatprep.subr.mxu0 0.0
    %2722 = vmatpush1.msra.mxu0 0.0
    %2723 = vmatprep.subr.mxu0 0.0
    %2724 = vmatpush1.msra.mxu0 0.0
    %2725 = vmatprep.subr.mxu0 0.0
    %2726 = vmatpush1.msra.mxu0 0.0
    %2727 = vmatprep.subr.mxu0 0.0
    %2728 = vmatpush1.msra.mxu0 0.0
    %2729 = vmatprep.subr.mxu0 0.0
    %2730 = vmatpush1.msra.mxu0 0.0
    %2731 = vmatprep.subr.mxu0 0.0
    %2732 = vmatpush1.msra.mxu0 0.0
    %2733 = vmatprep.subr.mxu0 0.0
    %2734 = vmatpush1.msra.mxu0 0.0
    %2735 = vmatprep.subr.mxu0 0.0
    %2736 = vmatpush1.msra.mxu0 0.0
    %2737 = vmatprep.subr.mxu0 0.0
    %2738 = vmatpush1.msra.mxu0 0.0
    %2739 = vmatprep.subr.mxu0 0.0
    %2740 = vmatpush1.msra.mxu0 0.0
    %2741 = vmatprep.subr.mxu0 0.0
    %2742 = vmatpush1.msra.mxu0 0.0
    %2743 = vmatprep.subr.mxu0 0.0
    %2744 = vmatpush1.msra.mxu0 0.0
    %2745 = vmatprep.subr.mxu0 0.0
    %2746 = vmatpush1.msra.mxu0 0.0
    %2747 = vmatprep.subr.mxu0 0.0
    %2748 = vmatpush1.msra.mxu0 0.0
    %2749 = vmatprep.subr.mxu0 0.0
    %2750 = vmatpush1.msra.mxu0 0.0
    %2751 = vmatprep.subr.mxu0 0.0
    %2752 = vmatpush1.msra.mxu0 0.0
    %2753 = vmatprep.subr.mxu0 0.0
    %2754 = vmatpush1.msra.mxu0 0.0
    %2755 = vmatprep.mubr.f32.mxu0 0.0
    %2756 = vmatmul.mubr.f32.gmra.mrb[0].mxu0 %v136
    %v2757 = vpop.f32.mrb[0].mxu0
    %v2758 = vadd.f32 0.0, %v2757
    %v2759 = vpop.f32.mrb[0].mxu0
    %2760 = vmatprep.mubr.f32.mxu0 0.0
    %2761 = vmatmul.mubr.f32.gmra.mrb[0].mxu0 %v139
    %v2762 = vpop.f32.mrb[0].mxu0
    %v2763 = vadd.f32 0.0, %v2762
    %v2764 = vpop.f32.mrb[0].mxu0
    %2765 = vmatprep.mubr.f32.mxu0 0.0
    %2766 = vmatmul.mubr.f32.gmra.mrb[0].mxu0 %v142
    %v2767 = vpop.f32.mrb[0].mxu0
    %v2768 = vadd.f32 0.0, %v2767
    %v2769 = vpop.f32.mrb[0].mxu0
    %2770 = vmatprep.mubr.f32.mxu0 0.0
    %2771 = vmatmul.mubr.f32.gmra.mrb[0].mxu0 %v145
    %v2772 = vpop.f32.mrb[0].mxu0
    %v2773 = vadd.f32 0.0, %v2772
    %v2774 = vpop.f32.mrb[0].mxu0
    %2775 = vmatprep.mubr.f32.mxu0 0.0
    %2776 = vmatmul.mubr.f32.gmra.mrb[0].mxu0 %v148
    %v2777 = vpop.f32.mrb[0].mxu0
    %v2778 = vadd.f32 0.0, %v2777
    %v2779 = vpop.f32.mrb[0].mxu0
    %2780 = vmatprep.mubr.f32.mxu0 0.0
    %2781 = vmatmul.mubr.f32.gmra.mrb[0].mxu0 %v151
    %v2782 = vpop.f32.mrb[0].mxu0
    %v2783 = vadd.f32 0.0, %v2782
    %v2784 = vpop.f32.mrb[0].mxu0
    %2785 = vmatprep.mubr.f32.mxu0 0.0
    %2786 = vmatmul.mubr.f32.gmra.mrb[0].mxu0 %v154
    %v2787 = vpop.f32.mrb[0].mxu0
    %v2788 = vadd.f32 0.0, %v2787
    %v2789 = vpop.f32.mrb[0].mxu0
    %2790 = vmatprep.mubr.f32.mxu0 0.0
    %2791 = vmatmul.mubr.f32.gmra.mrb[0].mxu0 %v157
    %v2792 = vpop.f32.mrb[0].mxu0
    %v2793 = vadd.f32 0.0, %v2792
    %v2794 = vpop.f32.mrb[0].mxu0
    %2795 = vmatprep.mubr.f32.mxu0 0.0
    %2796 = vmatmul.mubr.f32.gmra.mrb[0].mxu0 %v160
    %v2797 = vpop.f32.mrb[0].mxu0
    %v2798 = vadd.f32 0.0, %v2797
    %v2799 = vpop.f32.mrb[0].mxu0
    %2800 = vmatprep.mubr.f32.mxu0 0.0
    %2801 = vmatmul.mubr.f32.gmra.mrb[0].mxu0 %v163
    %v2802 = vpop.f32.mrb[0].mxu0
    %v2803 = vadd.f32 0.0, %v2802
    %v2804 = vpop.f32.mrb[0].mxu0
    %2805 = vmatprep.mubr.f32.mxu0 0.0
    %2806 = vmatmul.mubr.f32.gmra.mrb[0].mxu0 %v166
    %v2807 = vpop.f32.mrb[0].mxu0
    %v2808 = vadd.f32 0.0, %v2807
    %v2809 = vpop.f32.mrb[0].mxu0
    %2810 = vmatprep.mubr.f32.mxu0 0.0
    %2811 = vmatmul.mubr.f32.gmra.mrb[0].mxu0 %v169
    %v2812 = vpop.f32.mrb[0].mxu0
    %v2813 = vadd.f32 0.0, %v2812
    %v2814 = vpop.f32.mrb[0].mxu0
    %2815 = vmatprep.mubr.f32.mxu0 0.0
    %2816 = vmatmul.mubr.f32.gmra.mrb[0].mxu0 %v172
    %v2817 = vpop.f32.mrb[0].mxu0
    %v2818 = vadd.f32 0.0, %v2817
    %v2819 = vpop.f32.mrb[0].mxu0
    %2820 = vmatprep.mubr.f32.mxu0 0.0
    %2821 = vmatmul.mubr.f32.gmra.mrb[0].mxu0 %v175
    %v2822 = vpop.f32.mrb[0].mxu0
    %v2823 = vadd.f32 0.0, %v2822
    %v2824 = vpop.f32.mrb[0].mxu0
    %2825 = vmatprep.mubr.f32.mxu0 0.0
    %2826 = vmatmul.mubr.f32.gmra.mrb[0].mxu0 %v178
    %v2827 = vpop.f32.mrb[0].mxu0
    %v2828 = vadd.f32 0.0, %v2827
    %v2829 = vpop.f32.mrb[0].mxu0
    %2830 = vmatprep.mubr.f32.mxu0 0.0
    %2831 = vmatmul.mubr.f32.gmra.mrb[0].mxu0 %v181
    %v2832 = vpop.f32.mrb[0].mxu0
    %v2833 = vadd.f32 0.0, %v2832
    %v2834 = vpop.f32.mrb[0].mxu0
    %2835 = vmatprep.mubr.f32.mxu0 0.0
    %2836 = vmatmul.mubr.f32.gmra.mrb[0].mxu0 %v184
    %v2837 = vpop.f32.mrb[0].mxu0
    %v2838 = vadd.f32 0.0, %v2837
    %v2839 = vpop.f32.mrb[0].mxu0
    %2840 = vmatprep.mubr.f32.mxu0 0.0
    %2841 = vmatmul.mubr.f32.gmra.mrb[0].mxu0 %v187
    %v2842 = vpop.f32.mrb[0].mxu0
    %v2843 = vadd.f32 0.0, %v2842
    %v2844 = vpop.f32.mrb[0].mxu0
    %2845 = vmatprep.mubr.f32.mxu0 0.0
    %2846 = vmatmul.mubr.f32.gmra.mrb[0].mxu0 %v190
    %v2847 = vpop.f32.mrb[0].mxu0
    %v2848 = vadd.f32 0.0, %v2847
    %v2849 = vpop.f32.mrb[0].mxu0
    %2850 = vmatprep.mubr.f32.mxu0 0.0
    %2851 = vmatmul.mubr.f32.gmra.mrb[0].mxu0 %v193
    %v2852 = vpop.f32.mrb[0].mxu0
    %v2853 = vadd.f32 0.0, %v2852
    %v2854 = vpop.f32.mrb[0].mxu0
    %2855 = vmatprep.mubr.f32.mxu0 0.0
    %2856 = vmatmul.mubr.f32.gmra.mrb[0].mxu0 %v196
    %v2857 = vpop.f32.mrb[0].mxu0
    %v2858 = vadd.f32 0.0, %v2857
    %v2859 = vpop.f32.mrb[0].mxu0
    %2860 = vmatprep.mubr.f32.mxu0 0.0
    %2861 = vmatmul.mubr.f32.gmra.mrb[0].mxu0 %v199
    %v2862 = vpop.f32.mrb[0].mxu0
    %v2863 = vadd.f32 0.0, %v2862
    %v2864 = vpop.f32.mrb[0].mxu0
    %2865 = vmatprep.mubr.f32.mxu0 0.0
    %2866 = vmatmul.mubr.f32.gmra.mrb[0].mxu0 %v202
    %v2867 = vpop.f32.mrb[0].mxu0
    %v2868 = vadd.f32 0.0, %v2867
    %v2869 = vpop.f32.mrb[0].mxu0
    %2870 = vmatprep.mubr.f32.mxu0 0.0
    %2871 = vmatmul.mubr.f32.gmra.mrb[0].mxu0 %v205
    %v2872 = vpop.f32.mrb[0].mxu0
    %v2873 = vadd.f32 0.0, %v2872
    %v2874 = vpop.f32.mrb[0].mxu0
    %2875 = vmatprep.mubr.f32.mxu0 0.0
    %2876 = vmatmul.mubr.f32.gmra.mrb[0].mxu0 %v208
    %v2877 = vpop.f32.mrb[0].mxu0
    %v2878 = vadd.f32 0.0, %v2877
    %v2879 = vpop.f32.mrb[0].mxu0
    %2880 = vmatprep.mubr.f32.mxu0 0.0
    %2881 = vmatmul.mubr.f32.gmra.mrb[0].mxu0 %v211
    %v2882 = vpop.f32.mrb[0].mxu0
    %v2883 = vadd.f32 0.0, %v2882
    %v2884 = vpop.f32.mrb[0].mxu0
    %2885 = vmatprep.mubr.f32.mxu0 0.0
    %2886 = vmatmul.mubr.f32.gmra.mrb[0].mxu0 %v214
    %v2887 = vpop.f32.mrb[0].mxu0
    %v2888 = vadd.f32 0.0, %v2887
    %v2889 = vpop.f32.mrb[0].mxu0
    %2890 = vmatprep.mubr.f32.mxu0 0.0
    %2891 = vmatmul.mubr.f32.gmra.mrb[0].mxu0 %v217
    %v2892 = vpop.f32.mrb[0].mxu0
    %v2893 = vadd.f32 0.0, %v2892
    %v2894 = vpop.f32.mrb[0].mxu0
    %2895 = vmatprep.mubr.f32.mxu0 0.0
    %2896 = vmatmul.mubr.f32.gmra.mrb[0].mxu0 %v220
    %v2897 = vpop.f32.mrb[0].mxu0
    %v2898 = vadd.f32 0.0, %v2897
    %v2899 = vpop.f32.mrb[0].mxu0
    %2900 = vmatprep.mubr.f32.mxu0 0.0
    %2901 = vmatmul.mubr.f32.gmra.mrb[0].mxu0 %v223
    %v2902 = vpop.f32.mrb[0].mxu0
    %v2903 = vadd.f32 0.0, %v2902
    %v2904 = vpop.f32.mrb[0].mxu0
    %2905 = vmatprep.mubr.f32.mxu0 0.0
    %2906 = vmatmul.mubr.f32.gmra.mrb[0].mxu0 %v226
    %v2907 = vpop.f32.mrb[0].mxu0
    %v2908 = vadd.f32 0.0, %v2907
    %v2909 = vpop.f32.mrb[0].mxu0
    %2910 = vmatprep.mubr.f32.mxu0 0.0
    %2911 = vmatmul.mubr.f32.gmra.mrb[0].mxu0 %v229
    %v2912 = vpop.f32.mrb[0].mxu0
    %v2913 = vadd.f32 0.0, %v2912
    %v2914 = vpop.f32.mrb[0].mxu0
    %2915 = vdwg.mxu0
    %v2916 = vadd.f32 %v2659, %v2758
    %v2917 = vadd.f32 %v2660, %v2763
    %v2918 = vadd.f32 %v2661, %v2768
    %v2919 = vadd.f32 %v2662, %v2773
    %v2920 = vadd.f32 %v2663, %v2778
    %v2921 = vadd.f32 %v2664, %v2783
    %v2922 = vadd.f32 %v2665, %v2788
    %v2923 = vadd.f32 %v2666, %v2793
    %v2924 = vadd.f32 %v2667, %v2798
    %v2925 = vadd.f32 %v2668, %v2803
    %v2926 = vadd.f32 %v2669, %v2808
    %v2927 = vadd.f32 %v2670, %v2813
    %v2928 = vadd.f32 %v2671, %v2818
    %v2929 = vadd.f32 %v2672, %v2823
    %v2930 = vadd.f32 %v2673, %v2828
    %v2931 = vadd.f32 %v2674, %v2833
    %v2932 = vadd.f32 %v2675, %v2838
    %v2933 = vadd.f32 %v2676, %v2843
    %v2934 = vadd.f32 %v2677, %v2848
    %v2935 = vadd.f32 %v2678, %v2853
    %v2936 = vadd.f32 %v2679, %v2858
    %v2937 = vadd.f32 %v2680, %v2863
    %v2938 = vadd.f32 %v2681, %v2868
    %v2939 = vadd.f32 %v2682, %v2873
    %v2940 = vadd.f32 %v2683, %v2878
    %v2941 = vadd.f32 %v2684, %v2883
    %v2942 = vadd.f32 %v2685, %v2888
    %v2943 = vadd.f32 %v2686, %v2893
    %v2944 = vadd.f32 %v2687, %v2898
    %v2945 = vadd.f32 %v2688, %v2903
    %v2946 = vadd.f32 %v2689, %v2908
    %v2947 = vadd.f32 %v2690, %v2913
    %v2948 = vtanh.pop %v2916
    %v2949 = vtanh.pop %v2917
    %v2950 = vtanh.pop %v2918
    %v2951 = vtanh.pop %v2919
    %v2952 = vtanh.pop %v2920
    %v2953 = vtanh.pop %v2921
    %v2954 = vtanh.pop %v2922
    %v2955 = vtanh.pop %v2923
    %v2956 = vtanh.pop %v2924
    %v2957 = vtanh.pop %v2925
    %v2958 = vtanh.pop %v2926
    %v2959 = vtanh.pop %v2927
    %v2960 = vtanh.pop %v2928
    %v2961 = vtanh.pop %v2929
    %v2962 = vtanh.pop %v2930
    %v2963 = vtanh.pop %v2931
    %v2964 = vtanh.pop %v2932
    %v2965 = vtanh.pop %v2933
    %v2966 = vtanh.pop %v2934
    %v2967 = vtanh.pop %v2935
    %v2968 = vtanh.pop %v2936
    %v2969 = vtanh.pop %v2937
    %v2970 = vtanh.pop %v2938
    %v2971 = vtanh.pop %v2939
    %v2972 = vtanh.pop %v2940
    %v2973 = vtanh.pop %v2941
    %v2974 = vtanh.pop %v2942
    %v2975 = vtanh.pop %v2943
    %v2976 = vtanh.pop %v2944
    %v2977 = vtanh.pop %v2945
    %v2978 = vtanh.pop %v2946
    %v2979 = vtanh.pop %v2947
    %v2980 = vmul.f32 %v2948, 0.5
    %v2981 = vmul.f32 %v2949, 0.5
    %v2982 = vmul.f32 %v2950, 0.5
    %v2983 = vmul.f32 %v2951, 0.5
    %v2984 = vmul.f32 %v2952, 0.5
    %v2985 = vmul.f32 %v2953, 0.5
    %v2986 = vmul.f32 %v2954, 0.5
    %v2987 = vmul.f32 %v2955, 0.5
    %v2988 = vadd.f32 %v2980, 0.5
    %v2989 = vadd.f32 %v2981, 0.5
    %v2990 = vadd.f32 %v2982, 0.5
    %v2991 = vadd.f32 %v2983, 0.5
    %v2992 = vadd.f32 %v2984, 0.5
    %v2993 = vadd.f32 %v2985, 0.5
    %v2994 = vadd.f32 %v2986, 0.5
    %v2995 = vadd.f32 %v2987, 0.5
    %v2996 = vmul.f32 %v2956, 0.5
    %v2997 = vmul.f32 %v2957, 0.5
    %v2998 = vmul.f32 %v2958, 0.5
    %v2999 = vmul.f32 %v2959, 0.5
    %v3000 = vmul.f32 %v2960, 0.5
    %v3001 = vmul.f32 %v2961, 0.5
    %v3002 = vmul.f32 %v2962, 0.5
    %v3003 = vmul.f32 %v2963, 0.5
    %v3004 = vadd.f32 %v2996, 0.5
    %v3005 = vadd.f32 %v2997, 0.5
    %v3006 = vadd.f32 %v2998, 0.5
    %v3007 = vadd.f32 %v2999, 0.5
    %v3008 = vadd.f32 %v3000, 0.5
    %v3009 = vadd.f32 %v3001, 0.5
    %v3010 = vadd.f32 %v3002, 0.5
    %v3011 = vadd.f32 %v3003, 0.5
    %v3012 = vmul.f32 %v2972, 0.5
    %v3013 = vmul.f32 %v2973, 0.5
    %v3014 = vmul.f32 %v2974, 0.5
    %v3015 = vmul.f32 %v2975, 0.5
    %v3016 = vmul.f32 %v2976, 0.5
    %v3017 = vmul.f32 %v2977, 0.5
    %v3018 = vmul.f32 %v2978, 0.5
    %v3019 = vmul.f32 %v2979, 0.5
    %v3020 = vadd.f32 %v3012, 0.5
    %v3021 = vadd.f32 %v3013, 0.5
    %v3022 = vadd.f32 %v3014, 0.5
    %v3023 = vadd.f32 %v3015, 0.5
    %v3024 = vadd.f32 %v3016, 0.5
    %v3025 = vadd.f32 %v3017, 0.5
    %v3026 = vadd.f32 %v3018, 0.5
    %v3027 = vadd.f32 %v3019, 0.5
    %v3028 = vmul.f32 %v3004, %v2634
    %v3029 = vmul.f32 %v3005, %v2635
    %v3030 = vmul.f32 %v3006, %v2636
    %v3031 = vmul.f32 %v3007, %v2637
    %v3032 = vmul.f32 %v3008, %v2638
    %v3033 = vmul.f32 %v3009, %v2639
    %v3034 = vmul.f32 %v3010, %v2640
    %v3035 = vmul.f32 %v3011, %v2641
    %v3036 = vmul.f32 %v2988, %v2964
    %v3037 = vmul.f32 %v2989, %v2965
    %v3038 = vmul.f32 %v2990, %v2966
    %v3039 = vmul.f32 %v2991, %v2967
    %v3040 = vmul.f32 %v2992, %v2968
    %v3041 = vmul.f32 %v2993, %v2969
    %v3042 = vmul.f32 %v2994, %v2970
    %v3043 = vmul.f32 %v2995, %v2971
    %v3044 = vadd.f32 %v3028, %v3036
    %v3045 = vadd.f32 %v3029, %v3037
    %v3046 = vadd.f32 %v3030, %v3038
    %v3047 = vadd.f32 %v3031, %v3039
    %v3048 = vadd.f32 %v3032, %v3040
    %v3049 = vadd.f32 %v3033, %v3041
    %v3050 = vadd.f32 %v3034, %v3042
    %v3051 = vadd.f32 %v3035, %v3043
    %v3052 = vtanh.pop %v3044
    %v3053 = vtanh.pop %v3045
    %v3054 = vtanh.pop %v3046
    %v3055 = vtanh.pop %v3047
    %v3056 = vtanh.pop %v3048
    %v3057 = vtanh.pop %v3049
    %v3058 = vtanh.pop %v3050
    %v3059 = vtanh.pop %v3051
    %v3060 = vmul.f32 %v3020, %v3052
    %v3061 = vmul.f32 %v3021, %v3053
    %v3062 = vmul.f32 %v3022, %v3054
    %v3063 = vmul.f32 %v3023, %v3055
    %v3064 = vmul.f32 %v3024, %v3056
    %v3065 = vmul.f32 %v3025, %v3057
    %v3066 = vmul.f32 %v3026, %v3058
    %v3067 = vmul.f32 %v3027, %v3059
    %s3068 = scalar_lea.vmem [#allocation5], 1792
    %v3069 = vld [vmem:[%s3068] sm:$0xff]
    %v3070 = vld [vmem:[%s3068 + $0x8] sm:$0xff]
    %v3071 = vld [vmem:[%s3068 + $0x10] sm:$0xff]
    %v3072 = vld [vmem:[%s3068 + $0x18] sm:$0xff]
    %v3073 = vld [vmem:[%s3068 + $0x20] sm:$0xff]
    %v3074 = vld [vmem:[%s3068 + $0x28] sm:$0xff]
    %v3075 = vld [vmem:[%s3068 + $0x30] sm:$0xff]
    %v3076 = vld [vmem:[%s3068 + $0x38] sm:$0xff]
    %v3077 = vld [vmem:[%s3068 + $0x40] sm:$0xff]
    %v3078 = vld [vmem:[%s3068 + $0x48] sm:$0xff]
    %v3079 = vld [vmem:[%s3068 + $0x50] sm:$0xff]
    %v3080 = vld [vmem:[%s3068 + $0x58] sm:$0xff]
    %v3081 = vld [vmem:[%s3068 + $0x60] sm:$0xff]
    %v3082 = vld [vmem:[%s3068 + $0x68] sm:$0xff]
    %v3083 = vld [vmem:[%s3068 + $0x70] sm:$0xff]
    %v3084 = vld [vmem:[%s3068 + $0x78] sm:$0xff]
    %v3085 = vld [vmem:[%s3068 + $0x80] sm:$0xff]
    %v3086 = vld [vmem:[%s3068 + $0x88] sm:$0xff]
    %v3087 = vld [vmem:[%s3068 + $0x90] sm:$0xff]
    %v3088 = vld [vmem:[%s3068 + $0x98] sm:$0xff]
    %v3089 = vld [vmem:[%s3068 + $0xa0] sm:$0xff]
    %v3090 = vld [vmem:[%s3068 + $0xa8] sm:$0xff]
    %v3091 = vld [vmem:[%s3068 + $0xb0] sm:$0xff]
    %v3092 = vld [vmem:[%s3068 + $0xb8] sm:$0xff]
    %v3093 = vld [vmem:[%s3068 + $0xc0] sm:$0xff]
    %v3094 = vld [vmem:[%s3068 + $0xc8] sm:$0xff]
    %v3095 = vld [vmem:[%s3068 + $0xd0] sm:$0xff]
    %v3096 = vld [vmem:[%s3068 + $0xd8] sm:$0xff]
    %v3097 = vld [vmem:[%s3068 + $0xe0] sm:$0xff]
    %v3098 = vld [vmem:[%s3068 + $0xe8] sm:$0xff]
    %v3099 = vld [vmem:[%s3068 + $0xf0] sm:$0xff]
    %v3100 = vld [vmem:[%s3068 + $0xf8] sm:$0xff]
    %3101 = vmatprep.subr.mxu0 0.0
    %3102 = vmatpush1.msra.mxu0 %v3060
    %3103 = vmatprep.subr.mxu0 0.0
    %3104 = vmatpush1.msra.mxu0 %v3061
    %3105 = vmatprep.subr.mxu0 0.0
    %3106 = vmatpush1.msra.mxu0 %v3062
    %3107 = vmatprep.subr.mxu0 0.0
    %3108 = vmatpush1.msra.mxu0 %v3063
    %3109 = vmatprep.subr.mxu0 0.0
    %3110 = vmatpush1.msra.mxu0 %v3064
    %3111 = vmatprep.subr.mxu0 0.0
    %3112 = vmatpush1.msra.mxu0 %v3065
    %3113 = vmatprep.subr.mxu0 0.0
    %3114 = vmatpush1.msra.mxu0 %v3066
    %3115 = vmatprep.subr.mxu0 0.0
    %3116 = vmatpush1.msra.mxu0 %v3067
    %3117 = vmatprep.subr.mxu0 0.0
    %3118 = vmatpush1.msra.mxu0 0.0
    %3119 = vmatprep.subr.mxu0 0.0
    %3120 = vmatpush1.msra.mxu0 0.0
    %3121 = vmatprep.subr.mxu0 0.0
    %3122 = vmatpush1.msra.mxu0 0.0
    %3123 = vmatprep.subr.mxu0 0.0
    %3124 = vmatpush1.msra.mxu0 0.0
    %3125 = vmatprep.subr.mxu0 0.0
    %3126 = vmatpush1.msra.mxu0 0.0
    %3127 = vmatprep.subr.mxu0 0.0
    %3128 = vmatpush1.msra.mxu0 0.0
    %3129 = vmatprep.subr.mxu0 0.0
    %3130 = vmatpush1.msra.mxu0 0.0
    %3131 = vmatprep.subr.mxu0 0.0
    %3132 = vmatpush1.msra.mxu0 0.0
    %3133 = vmatprep.subr.mxu0 0.0
    %3134 = vmatpush1.msra.mxu0 0.0
    %3135 = vmatprep.subr.mxu0 0.0
    %3136 = vmatpush1.msra.mxu0 0.0
    %3137 = vmatprep.subr.mxu0 0.0
    %3138 = vmatpush1.msra.mxu0 0.0
    %3139 = vmatprep.subr.mxu0 0.0
    %3140 = vmatpush1.msra.mxu0 0.0
    %3141 = vmatprep.subr.mxu0 0.0
    %3142 = vmatpush1.msra.mxu0 0.0
    %3143 = vmatprep.subr.mxu0 0.0
    %3144 = vmatpush1.msra.mxu0 0.0
    %3145 = vmatprep.subr.mxu0 0.0
    %3146 = vmatpush1.msra.mxu0 0.0
    %3147 = vmatprep.subr.mxu0 0.0
    %3148 = vmatpush1.msra.mxu0 0.0
    %3149 = vmatprep.subr.mxu0 0.0
    %3150 = vmatpush1.msra.mxu0 0.0
    %3151 = vmatprep.subr.mxu0 0.0
    %3152 = vmatpush1.msra.mxu0 0.0
    %3153 = vmatprep.subr.mxu0 0.0
    %3154 = vmatpush1.msra.mxu0 0.0
    %3155 = vmatprep.subr.mxu0 0.0
    %3156 = vmatpush1.msra.mxu0 0.0
    %3157 = vmatprep.subr.mxu0 0.0
    %3158 = vmatpush1.msra.mxu0 0.0
    %3159 = vmatprep.subr.mxu0 0.0
    %3160 = vmatpush1.msra.mxu0 0.0
    %3161 = vmatprep.subr.mxu0 0.0
    %3162 = vmatpush1.msra.mxu0 0.0
    %3163 = vmatprep.subr.mxu0 0.0
    %3164 = vmatpush1.msra.mxu0 0.0
    %3165 = vmatprep.mubr.f32.mxu0 0.0
    %3166 = vmatmul.mubr.f32.gmra.mrb[0].mxu0 %v136
    %v3167 = vpop.f32.mrb[0].mxu0
    %v3168 = vadd.f32 0.0, %v3167
    %v3169 = vpop.f32.mrb[0].mxu0
    %3170 = vmatprep.mubr.f32.mxu0 0.0
    %3171 = vmatmul.mubr.f32.gmra.mrb[0].mxu0 %v139
    %v3172 = vpop.f32.mrb[0].mxu0
    %v3173 = vadd.f32 0.0, %v3172
    %v3174 = vpop.f32.mrb[0].mxu0
    %3175 = vmatprep.mubr.f32.mxu0 0.0
    %3176 = vmatmul.mubr.f32.gmra.mrb[0].mxu0 %v142
    %v3177 = vpop.f32.mrb[0].mxu0
    %v3178 = vadd.f32 0.0, %v3177
    %v3179 = vpop.f32.mrb[0].mxu0
    %3180 = vmatprep.mubr.f32.mxu0 0.0
    %3181 = vmatmul.mubr.f32.gmra.mrb[0].mxu0 %v145
    %v3182 = vpop.f32.mrb[0].mxu0
    %v3183 = vadd.f32 0.0, %v3182
    %v3184 = vpop.f32.mrb[0].mxu0
    %3185 = vmatprep.mubr.f32.mxu0 0.0
    %3186 = vmatmul.mubr.f32.gmra.mrb[0].mxu0 %v148
    %v3187 = vpop.f32.mrb[0].mxu0
    %v3188 = vadd.f32 0.0, %v3187
    %v3189 = vpop.f32.mrb[0].mxu0
    %3190 = vmatprep.mubr.f32.mxu0 0.0
    %3191 = vmatmul.mubr.f32.gmra.mrb[0].mxu0 %v151
    %v3192 = vpop.f32.mrb[0].mxu0
    %v3193 = vadd.f32 0.0, %v3192
    %v3194 = vpop.f32.mrb[0].mxu0
    %3195 = vmatprep.mubr.f32.mxu0 0.0
    %3196 = vmatmul.mubr.f32.gmra.mrb[0].mxu0 %v154
    %v3197 = vpop.f32.mrb[0].mxu0
    %v3198 = vadd.f32 0.0, %v3197
    %v3199 = vpop.f32.mrb[0].mxu0
    %3200 = vmatprep.mubr.f32.mxu0 0.0
    %3201 = vmatmul.mubr.f32.gmra.mrb[0].mxu0 %v157
    %v3202 = vpop.f32.mrb[0].mxu0
    %v3203 = vadd.f32 0.0, %v3202
    %v3204 = vpop.f32.mrb[0].mxu0
    %3205 = vmatprep.mubr.f32.mxu0 0.0
    %3206 = vmatmul.mubr.f32.gmra.mrb[0].mxu0 %v160
    %v3207 = vpop.f32.mrb[0].mxu0
    %v3208 = vadd.f32 0.0, %v3207
    %v3209 = vpop.f32.mrb[0].mxu0
    %3210 = vmatprep.mubr.f32.mxu0 0.0
    %3211 = vmatmul.mubr.f32.gmra.mrb[0].mxu0 %v163
    %v3212 = vpop.f32.mrb[0].mxu0
    %v3213 = vadd.f32 0.0, %v3212
    %v3214 = vpop.f32.mrb[0].mxu0
    %3215 = vmatprep.mubr.f32.mxu0 0.0
    %3216 = vmatmul.mubr.f32.gmra.mrb[0].mxu0 %v166
    %v3217 = vpop.f32.mrb[0].mxu0
    %v3218 = vadd.f32 0.0, %v3217
    %v3219 = vpop.f32.mrb[0].mxu0
    %3220 = vmatprep.mubr.f32.mxu0 0.0
    %3221 = vmatmul.mubr.f32.gmra.mrb[0].mxu0 %v169
    %v3222 = vpop.f32.mrb[0].mxu0
    %v3223 = vadd.f32 0.0, %v3222
    %v3224 = vpop.f32.mrb[0].mxu0
    %3225 = vmatprep.mubr.f32.mxu0 0.0
    %3226 = vmatmul.mubr.f32.gmra.mrb[0].mxu0 %v172
    %v3227 = vpop.f32.mrb[0].mxu0
    %v3228 = vadd.f32 0.0, %v3227
    %v3229 = vpop.f32.mrb[0].mxu0
    %3230 = vmatprep.mubr.f32.mxu0 0.0
    %3231 = vmatmul.mubr.f32.gmra.mrb[0].mxu0 %v175
    %v3232 = vpop.f32.mrb[0].mxu0
    %v3233 = vadd.f32 0.0, %v3232
    %v3234 = vpop.f32.mrb[0].mxu0
    %3235 = vmatprep.mubr.f32.mxu0 0.0
    %3236 = vmatmul.mubr.f32.gmra.mrb[0].mxu0 %v178
    %v3237 = vpop.f32.mrb[0].mxu0
    %v3238 = vadd.f32 0.0, %v3237
    %v3239 = vpop.f32.mrb[0].mxu0
    %3240 = vmatprep.mubr.f32.mxu0 0.0
    %3241 = vmatmul.mubr.f32.gmra.mrb[0].mxu0 %v181
    %v3242 = vpop.f32.mrb[0].mxu0
    %v3243 = vadd.f32 0.0, %v3242
    %v3244 = vpop.f32.mrb[0].mxu0
    %3245 = vmatprep.mubr.f32.mxu0 0.0
    %3246 = vmatmul.mubr.f32.gmra.mrb[0].mxu0 %v184
    %v3247 = vpop.f32.mrb[0].mxu0
    %v3248 = vadd.f32 0.0, %v3247
    %v3249 = vpop.f32.mrb[0].mxu0
    %3250 = vmatprep.mubr.f32.mxu0 0.0
    %3251 = vmatmul.mubr.f32.gmra.mrb[0].mxu0 %v187
    %v3252 = vpop.f32.mrb[0].mxu0
    %v3253 = vadd.f32 0.0, %v3252
    %v3254 = vpop.f32.mrb[0].mxu0
    %3255 = vmatprep.mubr.f32.mxu0 0.0
    %3256 = vmatmul.mubr.f32.gmra.mrb[0].mxu0 %v190
    %v3257 = vpop.f32.mrb[0].mxu0
    %v3258 = vadd.f32 0.0, %v3257
    %v3259 = vpop.f32.mrb[0].mxu0
    %3260 = vmatprep.mubr.f32.mxu0 0.0
    %3261 = vmatmul.mubr.f32.gmra.mrb[0].mxu0 %v193
    %v3262 = vpop.f32.mrb[0].mxu0
    %v3263 = vadd.f32 0.0, %v3262
    %v3264 = vpop.f32.mrb[0].mxu0
    %3265 = vmatprep.mubr.f32.mxu0 0.0
    %3266 = vmatmul.mubr.f32.gmra.mrb[0].mxu0 %v196
    %v3267 = vpop.f32.mrb[0].mxu0
    %v3268 = vadd.f32 0.0, %v3267
    %v3269 = vpop.f32.mrb[0].mxu0
    %3270 = vmatprep.mubr.f32.mxu0 0.0
    %3271 = vmatmul.mubr.f32.gmra.mrb[0].mxu0 %v199
    %v3272 = vpop.f32.mrb[0].mxu0
    %v3273 = vadd.f32 0.0, %v3272
    %v3274 = vpop.f32.mrb[0].mxu0
    %3275 = vmatprep.mubr.f32.mxu0 0.0
    %3276 = vmatmul.mubr.f32.gmra.mrb[0].mxu0 %v202
    %v3277 = vpop.f32.mrb[0].mxu0
    %v3278 = vadd.f32 0.0, %v3277
    %v3279 = vpop.f32.mrb[0].mxu0
    %3280 = vmatprep.mubr.f32.mxu0 0.0
    %3281 = vmatmul.mubr.f32.gmra.mrb[0].mxu0 %v205
    %v3282 = vpop.f32.mrb[0].mxu0
    %v3283 = vadd.f32 0.0, %v3282
    %v3284 = vpop.f32.mrb[0].mxu0
    %3285 = vmatprep.mubr.f32.mxu0 0.0
    %3286 = vmatmul.mubr.f32.gmra.mrb[0].mxu0 %v208
    %v3287 = vpop.f32.mrb[0].mxu0
    %v3288 = vadd.f32 0.0, %v3287
    %v3289 = vpop.f32.mrb[0].mxu0
    %3290 = vmatprep.mubr.f32.mxu0 0.0
    %3291 = vmatmul.mubr.f32.gmra.mrb[0].mxu0 %v211
    %v3292 = vpop.f32.mrb[0].mxu0
    %v3293 = vadd.f32 0.0, %v3292
    %v3294 = vpop.f32.mrb[0].mxu0
    %3295 = vmatprep.mubr.f32.mxu0 0.0
    %3296 = vmatmul.mubr.f32.gmra.mrb[0].mxu0 %v214
    %v3297 = vpop.f32.mrb[0].mxu0
    %v3298 = vadd.f32 0.0, %v3297
    %v3299 = vpop.f32.mrb[0].mxu0
    %3300 = vmatprep.mubr.f32.mxu0 0.0
    %3301 = vmatmul.mubr.f32.gmra.mrb[0].mxu0 %v217
    %v3302 = vpop.f32.mrb[0].mxu0
    %v3303 = vadd.f32 0.0, %v3302
    %v3304 = vpop.f32.mrb[0].mxu0
    %3305 = vmatprep.mubr.f32.mxu0 0.0
    %3306 = vmatmul.mubr.f32.gmra.mrb[0].mxu0 %v220
    %v3307 = vpop.f32.mrb[0].mxu0
    %v3308 = vadd.f32 0.0, %v3307
    %v3309 = vpop.f32.mrb[0].mxu0
    %3310 = vmatprep.mubr.f32.mxu0 0.0
    %3311 = vmatmul.mubr.f32.gmra.mrb[0].mxu0 %v223
    %v3312 = vpop.f32.mrb[0].mxu0
    %v3313 = vadd.f32 0.0, %v3312
    %v3314 = vpop.f32.mrb[0].mxu0
    %3315 = vmatprep.mubr.f32.mxu0 0.0
    %3316 = vmatmul.mubr.f32.gmra.mrb[0].mxu0 %v226
    %v3317 = vpop.f32.mrb[0].mxu0
    %v3318 = vadd.f32 0.0, %v3317
    %v3319 = vpop.f32.mrb[0].mxu0
    %3320 = vmatprep.mubr.f32.mxu0 0.0
    %3321 = vmatmul.mubr.f32.gmra.mrb[0].mxu0 %v229
    %v3322 = vpop.f32.mrb[0].mxu0
    %v3323 = vadd.f32 0.0, %v3322
    %v3324 = vpop.f32.mrb[0].mxu0
    %3325 = vdwg.mxu0
    %v3326 = vadd.f32 %v3069, %v3168
    %v3327 = vadd.f32 %v3070, %v3173
    %v3328 = vadd.f32 %v3071, %v3178
    %v3329 = vadd.f32 %v3072, %v3183
    %v3330 = vadd.f32 %v3073, %v3188
    %v3331 = vadd.f32 %v3074, %v3193
    %v3332 = vadd.f32 %v3075, %v3198
    %v3333 = vadd.f32 %v3076, %v3203
    %v3334 = vadd.f32 %v3077, %v3208
    %v3335 = vadd.f32 %v3078, %v3213
    %v3336 = vadd.f32 %v3079, %v3218
    %v3337 = vadd.f32 %v3080, %v3223
    %v3338 = vadd.f32 %v3081, %v3228
    %v3339 = vadd.f32 %v3082, %v3233
    %v3340 = vadd.f32 %v3083, %v3238
    %v3341 = vadd.f32 %v3084, %v3243
    %v3342 = vadd.f32 %v3085, %v3248
    %v3343 = vadd.f32 %v3086, %v3253
    %v3344 = vadd.f32 %v3087, %v3258
    %v3345 = vadd.f32 %v3088, %v3263
    %v3346 = vadd.f32 %v3089, %v3268
    %v3347 = vadd.f32 %v3090, %v3273
    %v3348 = vadd.f32 %v3091, %v3278
    %v3349 = vadd.f32 %v3092, %v3283
    %v3350 = vadd.f32 %v3093, %v3288
    %v3351 = vadd.f32 %v3094, %v3293
    %v3352 = vadd.f32 %v3095, %v3298
    %v3353 = vadd.f32 %v3096, %v3303
    %v3354 = vadd.f32 %v3097, %v3308
    %v3355 = vadd.f32 %v3098, %v3313
    %v3356 = vadd.f32 %v3099, %v3318
    %v3357 = vadd.f32 %v3100, %v3323
    %v3358 = vtanh.pop %v3326
    %v3359 = vtanh.pop %v3327
    %v3360 = vtanh.pop %v3328
    %v3361 = vtanh.pop %v3329
    %v3362 = vtanh.pop %v3330
    %v3363 = vtanh.pop %v3331
    %v3364 = vtanh.pop %v3332
    %v3365 = vtanh.pop %v3333
    %v3366 = vtanh.pop %v3334
    %v3367 = vtanh.pop %v3335
    %v3368 = vtanh.pop %v3336
    %v3369 = vtanh.pop %v3337
    %v3370 = vtanh.pop %v3338
    %v3371 = vtanh.pop %v3339
    %v3372 = vtanh.pop %v3340
    %v3373 = vtanh.pop %v3341
    %v3374 = vtanh.pop %v3342
    %v3375 = vtanh.pop %v3343
    %v3376 = vtanh.pop %v3344
    %v3377 = vtanh.pop %v3345
    %v3378 = vtanh.pop %v3346
    %v3379 = vtanh.pop %v3347
    %v3380 = vtanh.pop %v3348
    %v3381 = vtanh.pop %v3349
    %v3382 = vtanh.pop %v3350
    %v3383 = vtanh.pop %v3351
    %v3384 = vtanh.pop %v3352
    %v3385 = vtanh.pop %v3353
    %v3386 = vtanh.pop %v3354
    %v3387 = vtanh.pop %v3355
    %v3388 = vtanh.pop %v3356
    %v3389 = vtanh.pop %v3357
    %v3390 = vmul.f32 %v3358, 0.5
    %v3391 = vmul.f32 %v3359, 0.5
    %v3392 = vmul.f32 %v3360, 0.5
    %v3393 = vmul.f32 %v3361, 0.5
    %v3394 = vmul.f32 %v3362, 0.5
    %v3395 = vmul.f32 %v3363, 0.5
    %v3396 = vmul.f32 %v3364, 0.5
    %v3397 = vmul.f32 %v3365, 0.5
    %v3398 = vadd.f32 %v3390, 0.5
    %v3399 = vadd.f32 %v3391, 0.5
    %v3400 = vadd.f32 %v3392, 0.5
    %v3401 = vadd.f32 %v3393, 0.5
    %v3402 = vadd.f32 %v3394, 0.5
    %v3403 = vadd.f32 %v3395, 0.5
    %v3404 = vadd.f32 %v3396, 0.5
    %v3405 = vadd.f32 %v3397, 0.5
    %v3406 = vmul.f32 %v3366, 0.5
    %v3407 = vmul.f32 %v3367, 0.5
    %v3408 = vmul.f32 %v3368, 0.5
    %v3409 = vmul.f32 %v3369, 0.5
    %v3410 = vmul.f32 %v3370, 0.5
    %v3411 = vmul.f32 %v3371, 0.5
    %v3412 = vmul.f32 %v3372, 0.5
    %v3413 = vmul.f32 %v3373, 0.5
    %v3414 = vadd.f32 %v3406, 0.5
    %v3415 = vadd.f32 %v3407, 0.5
    %v3416 = vadd.f32 %v3408, 0.5
    %v3417 = vadd.f32 %v3409, 0.5
    %v3418 = vadd.f32 %v3410, 0.5
    %v3419 = vadd.f32 %v3411, 0.5
    %v3420 = vadd.f32 %v3412, 0.5
    %v3421 = vadd.f32 %v3413, 0.5
    %v3422 = vmul.f32 %v3382, 0.5
    %v3423 = vmul.f32 %v3383, 0.5
    %v3424 = vmul.f32 %v3384, 0.5
    %v3425 = vmul.f32 %v3385, 0.5
    %v3426 = vmul.f32 %v3386, 0.5
    %v3427 = vmul.f32 %v3387, 0.5
    %v3428 = vmul.f32 %v3388, 0.5
    %v3429 = vmul.f32 %v3389, 0.5
    %v3430 = vadd.f32 %v3422, 0.5
    %v3431 = vadd.f32 %v3423, 0.5
    %v3432 = vadd.f32 %v3424, 0.5
    %v3433 = vadd.f32 %v3425, 0.5
    %v3434 = vadd.f32 %v3426, 0.5
    %v3435 = vadd.f32 %v3427, 0.5
    %v3436 = vadd.f32 %v3428, 0.5
    %v3437 = vadd.f32 %v3429, 0.5
    %v3438 = vmul.f32 %v3414, %v3044
    %v3439 = vmul.f32 %v3415, %v3045
    %v3440 = vmul.f32 %v3416, %v3046
    %v3441 = vmul.f32 %v3417, %v3047
    %v3442 = vmul.f32 %v3418, %v3048
    %v3443 = vmul.f32 %v3419, %v3049
    %v3444 = vmul.f32 %v3420, %v3050
    %v3445 = vmul.f32 %v3421, %v3051
    %v3446 = vmul.f32 %v3398, %v3374
    %v3447 = vmul.f32 %v3399, %v3375
    %v3448 = vmul.f32 %v3400, %v3376
    %v3449 = vmul.f32 %v3401, %v3377
    %v3450 = vmul.f32 %v3402, %v3378
    %v3451 = vmul.f32 %v3403, %v3379
    %v3452 = vmul.f32 %v3404, %v3380
    %v3453 = vmul.f32 %v3405, %v3381
    %v3454 = vadd.f32 %v3438, %v3446
    %v3455 = vadd.f32 %v3439, %v3447
    %v3456 = vadd.f32 %v3440, %v3448
    %v3457 = vadd.f32 %v3441, %v3449
    %v3458 = vadd.f32 %v3442, %v3450
    %v3459 = vadd.f32 %v3443, %v3451
    %v3460 = vadd.f32 %v3444, %v3452
    %v3461 = vadd.f32 %v3445, %v3453
    %v3462 = vtanh.pop %v3454
    %v3463 = vtanh.pop %v3455
    %v3464 = vtanh.pop %v3456
    %v3465 = vtanh.pop %v3457
    %v3466 = vtanh.pop %v3458
    %v3467 = vtanh.pop %v3459
    %v3468 = vtanh.pop %v3460
    %v3469 = vtanh.pop %v3461
    %v3470 = vmul.f32 %v3430, %v3462
    %v3471 = vmul.f32 %v3431, %v3463
    %v3472 = vmul.f32 %v3432, %v3464
    %v3473 = vmul.f32 %v3433, %v3465
    %v3474 = vmul.f32 %v3434, %v3466
    %v3475 = vmul.f32 %v3435, %v3467
    %v3476 = vmul.f32 %v3436, %v3468
    %v3477 = vmul.f32 %v3437, %v3469
    %3478 = vst [vmem:[#allocation2] sm:$0xff] %v3470
    %3479 = vst [vmem:[#allocation2 + $0x8] sm:$0xff] %v3471
    %3480 = vst [vmem:[#allocation2 + $0x10] sm:$0xff] %v3472
    %3481 = vst [vmem:[#allocation2 + $0x18] sm:$0xff] %v3473
    %3482 = vst [vmem:[#allocation2 + $0x20] sm:$0xff] %v3474
    %3483 = vst [vmem:[#allocation2 + $0x28] sm:$0xff] %v3475
    %3484 = vst [vmem:[#allocation2 + $0x30] sm:$0xff] %v3476
    %3485 = vst [vmem:[#allocation2 + $0x38] sm:$0xff] %v3477
    %3486 = vst [vmem:[#allocation3] sm:$0xff] %v3454
    %3487 = vst [vmem:[#allocation3 + $0x8] sm:$0xff] %v3455
    %3488 = vst [vmem:[#allocation3 + $0x10] sm:$0xff] %v3456
    %3489 = vst [vmem:[#allocation3 + $0x18] sm:$0xff] %v3457
    %3490 = vst [vmem:[#allocation3 + $0x20] sm:$0xff] %v3458
    %3491 = vst [vmem:[#allocation3 + $0x28] sm:$0xff] %v3459
    %3492 = vst [vmem:[#allocation3 + $0x30] sm:$0xff] %v3460
    %3493 = vst [vmem:[#allocation3 + $0x38] sm:$0xff] %v3461
    // Predicated region
    $region26: #{tpu_custom_call.1} parent=1 // pred_check
      %p3494 = pneg %p34
    $region27: #{tpu_custom_call.1} parent=1 // pred_check_branch
      %3496 = sbr.rel (%p3494) target = $region29
    $region28: #{tpu_custom_call.1} parent=1 // pred_region
      %v3497 = vld [vmem:[#allocation2] sm:$0xff]
      %v3498 = vld [vmem:[#allocation2 + $0x8] sm:$0xff]
      %v3499 = vld [vmem:[#allocation2 + $0x10] sm:$0xff]
      %v3500 = vld [vmem:[#allocation2 + $0x18] sm:$0xff]
      %v3501 = vld [vmem:[#allocation2 + $0x20] sm:$0xff]
      %v3502 = vld [vmem:[#allocation2 + $0x28] sm:$0xff]
      %v3503 = vld [vmem:[#allocation2 + $0x30] sm:$0xff]
      %v3504 = vld [vmem:[#allocation2 + $0x38] sm:$0xff]
      %v3505 = vld [vmem:[%s2] sm:$0xff]
      %v3506 = vld [vmem:[%s2 + $0x8] sm:$0xff]
      %v3507 = vld [vmem:[%s2 + $0x10] sm:$0xff]
      %v3508 = vld [vmem:[%s2 + $0x18] sm:$0xff]
      %v3509 = vld [vmem:[%s2 + $0x20] sm:$0xff]
      %v3510 = vld [vmem:[%s2 + $0x28] sm:$0xff]
      %v3511 = vld [vmem:[%s2 + $0x30] sm:$0xff]
      %v3512 = vld [vmem:[%s2 + $0x38] sm:$0xff]
      %3514 = vset.pattern.permute.xlu0 0
      %3515 = vperm.xlu0 %3514, %v3505
      %v3516 = vpop.permute.xlu0 %3515
      %3519 = vset.pattern.permute.xlu0 0
      %3520 = vperm.xlu0 %3519, %v3506
      %v3521 = vpop.permute.xlu0 %3520
      %3524 = vset.pattern.permute.xlu0 0
      %3525 = vperm.xlu0 %3524, %v3507
      %v3526 = vpop.permute.xlu0 %3525
      %3529 = vset.pattern.permute.xlu0 0
      %3530 = vperm.xlu0 %3529, %v3508
      %v3531 = vpop.permute.xlu0 %3530
      %3534 = vset.pattern.permute.xlu0 0
      %3535 = vperm.xlu0 %3534, %v3509
      %v3536 = vpop.permute.xlu0 %3535
      %3539 = vset.pattern.permute.xlu0 0
      %3540 = vperm.xlu0 %3539, %v3510
      %v3541 = vpop.permute.xlu0 %3540
      %3544 = vset.pattern.permute.xlu0 0
      %3545 = vperm.xlu0 %3544, %v3511
      %v3546 = vpop.permute.xlu0 %3545
      %3549 = vset.pattern.permute.xlu0 0
      %3550 = vperm.xlu0 %3549, %v3512
      %v3551 = vpop.permute.xlu0 %3550
      %v3553 = vmul.f32 %v3497, %v3516
      %v3554 = vmul.f32 %v3498, %v3521
      %v3555 = vmul.f32 %v3499, %v3526
      %v3556 = vmul.f32 %v3500, %v3531
      %v3557 = vmul.f32 %v3501, %v3536
      %v3558 = vmul.f32 %v3502, %v3541
      %v3559 = vmul.f32 %v3503, %v3546
      %v3560 = vmul.f32 %v3504, %v3551
      %v3561 = vadd.f32 %v3553, %v3554
      %v3562 = vadd.f32 %v3561, %v3555
      %v3563 = vadd.f32 %v3562, %v3556
      %v3564 = vadd.f32 %v3563, %v3557
      %v3565 = vadd.f32 %v3564, %v3558
      %v3566 = vadd.f32 %v3565, %v3559
      %v3567 = vadd.f32 %v3566, %v3560
      %v3568 = vrot.slane %v3567, 4
      %v3569 = vadd.f32 %v3567, %v3568
      %v3570 = vrot.slane %v3569, 2
      %v3571 = vadd.f32 %v3569, %v3570
      %v3572 = vrot.slane %v3571, 1
      %v3573 = vadd.f32 %v3571, %v3572
      %v3574 = vld [vmem:[#allocation4] sm:$0x1]
      %3576 = vset.pattern.permute.xlu0 0
      %3577 = vperm.xlu0 %3576, %v3574
      %v3578 = vpop.permute.xlu0 %3577
      %v3580 = vlaneseq
      %v3581 = vshrl.u32 %v3580, 7
      %v3582 = vsub.s32 0, %v3581
      %v3583 = vrot.slane %v3578, %v3582
      %v3584 = vadd.f32 %v3573, %v3583
      %3585 = vst [vmem:[#allocation8] sm:$0x1] %v3584
    $region29: #{tpu_custom_call.1} parent=1 // pred_fallthru
      _
    // Predicated region
    $region30: #{tpu_custom_call.1} parent=1 // pred_check
      _
    $region31: #{tpu_custom_call.1} parent=1 // pred_check_branch
      %3587 = sbr.rel (0) target = $region33
    $region32: #{tpu_custom_call.1} parent=1 // pred_region
      %s3589 = ssub.s32 16, 16
      %3590 = vsyncadd [#allocation7], %s3589
      %s3592 = sshll.u32 [#allocation8], 4
      %s3593 = int_to_ptr.vmem [resolvable:$true] %s3592
      %3595 = dma.vmem_to_hbm [thread:$0]  %s3593, 16, %s4, [#allocation7]
    $region33: #{tpu_custom_call.1} parent=1 // pred_fallthru
      _
    // Predicated region
    $region34: #{tpu_custom_call.1} parent=1 // pred_check
      _
    $region35: #{tpu_custom_call.1} parent=1 // pred_check_branch
      %3597 = sbr.rel (0) target = $region37
    $region36: #{tpu_custom_call.1} parent=1 // pred_region
      %3598 = dma.done [#allocation7], 16
    $region37: #{tpu_custom_call.1} parent=1 // pred_fallthru
      _
    %3599 = vsyncpa [#allocation6], 1
    %3600 = vsyncpa [#allocation7], 1

</llo_original>
